<compile_context>
chip_gen: v7x
topology: tpu7x:2x2x1
jax: 0.10.0
libtpu: 0.0.40
codegen_flags: <defaults>
</compile_context>

<pallas_src>
import math
import jax
import jax.numpy as jnp
from jax.experimental import pallas as pl

# ----- small synthetic config (Qwen2-like GQA) -----
B = 2          # batch
L = 8          # seq_len
D = 32         # hidden_size
V = 128        # vocab_size
NUM_HEADS = 4
NUM_KV = 2
HEAD_DIM = D // NUM_HEADS
D_KV = NUM_KV * HEAD_DIM
LP1 = L + 1

# packed-operand column layout (shared by wsmall and bvec)
N_HX = 2 * D + 2 * D_KV      # [w1 | w3 | wk | wv]  -> 96 columns
N_GL = 2 * D                 # [wq*scale | wf1]      -> 64 columns


def _edit_kernel(h_ref, lm_ref, wsmall_ref, wedit_ref, bvec_ref, gladd_ref,
                 idx_ref, tok_ref, pred_ref):
    f32 = jnp.float32

    # static slices of the packed weight / bias operands
    w_hx = wsmall_ref[:, 0:N_HX]                              # (D, 96)  [w1|w3|wk|wv]
    w_gl = wsmall_ref[:, N_HX:N_HX + N_GL]                    # (D, 64)  [wq*scale|wf1]
    w_of = wsmall_ref[:, N_HX + N_GL:N_HX + N_GL + D]         # (D, 32)  wo @ wf2
    b_hx = bvec_ref[:, 0:N_HX]                                # (1, 96)  [0|0|bk|bv]
    b_gl = bvec_ref[:, N_HX:N_HX + N_GL]                      # (1, 64)  [bq*scale|0]
    widx_row = bvec_ref[:, N_HX + N_GL:N_HX + N_GL + D]       # (1, 32)  index_head^T
    wedit = wedit_ref[...]                                    # (D, V)
    gl_add = gladd_ref[...]                                   # (L+1, D) gap/boundary term

    # everything that consumes hidden_states in one MXU push: [h@w1 | h@w3 | k | v]
    hw = jnp.dot(h_ref[...], w_hx, preferred_element_type=f32) + b_hx   # (B*L, 96)

    # position-shift matrices: left[p] = h[p-1] (zero at p=0), right[p] = h[p] (zero at p=L)
    rr = jax.lax.broadcasted_iota(jnp.int32, (LP1, L), 0)
    cc = jax.lax.broadcasted_iota(jnp.int32, (LP1, L), 1)
    sel_l = (cc == rr - 1).astype(f32)                        # (L+1, L)
    sel_r = (cc == rr).astype(f32)                            # (L+1, L)

    lane = jax.lax.broadcasted_iota(jnp.int32, (1, LP1), 1)   # position index on lanes
    rep = NUM_HEADS // NUM_KV
    k_lo = 2 * D
    v_lo = 2 * D + D_KV

    for b in range(B):                      # batch folded into one kernel invocation
        hw_b = hw[b * L:(b + 1) * L, :]                       # (L, 96) aligned row slice

        # gap_local for every insertion position (boundary/gap folded into gl_add)
        gl_b = (jnp.dot(sel_l, hw_b[:, 0:D], preferred_element_type=f32)
                + jnp.dot(sel_r, hw_b[:, D:2 * D], preferred_element_type=f32)
                + gl_add)                                     # (L+1, D)

        # [q*scale | fuse_proj-left-half] in one MXU push
        gq = jnp.dot(gl_b, w_gl, preferred_element_type=f32) + b_gl     # (L+1, 2D)

        # head-batched non-causal attention (GQA: query head h uses kv group h // rep)
        q3 = jnp.stack(
            [gq[:, h * HEAD_DIM:(h + 1) * HEAD_DIM] for h in range(NUM_HEADS)], axis=0)
        k3 = jnp.stack(
            [hw_b[:, k_lo + (h // rep) * HEAD_DIM:k_lo + (h // rep + 1) * HEAD_DIM]
             for h in range(NUM_HEADS)], axis=0)
        v3 = jnp.stack(
            [hw_b[:, v_lo + (h // rep) * HEAD_DIM:v_lo + (h // rep + 1) * HEAD_DIM]
             for h in range(NUM_HEADS)], axis=0)
        s = jnp.einsum("hqd,hkd->hqk", q3, k3, preferred_element_type=f32)  # (H, L+1, L)
        s = s - jnp.max(s, axis=-1, keepdims=True)
        p = jnp.exp(s)
        p = p * pl.reciprocal(jnp.sum(p, axis=-1, keepdims=True), approx=True)
        ctx3 = jnp.einsum("hqk,hkd->hqd", p, v3, preferred_element_type=f32)  # (H, L+1, hd)
        attn_b = jnp.concatenate([ctx3[h] for h in range(NUM_HEADS)], axis=-1)  # (L+1, D)

        # fused gap state: gap_local @ wf1 + (attn @ wo) @ wf2   (wo@wf2 pre-fused)
        fused_b = gq[:, D:2 * D] + jnp.dot(attn_b, w_of, preferred_element_type=f32)

        # index head, lane-dense: positions live on the lane axis
        idx_row = jax.lax.dot_general(widx_row, fused_b, (((1,), (1,)), ((), ())),
                                      preferred_element_type=f32)        # (1, L+1)

        # argmax (first maximal index, matching jnp.argmax tie-break)
        mx = jnp.max(idx_row, axis=-1, keepdims=True)
        pred = jnp.min(jnp.where(idx_row == mx, lane, LP1),
                       axis=-1, keepdims=True)                           # (1, 1) int32

        # one-hot gather of the selected gap state -> edit head logits
        onehot = (lane == pred).astype(f32)                              # (1, L+1)
        gathered = jnp.dot(onehot, fused_b, preferred_element_type=f32)  # (1, D)
        edit = jnp.dot(gathered, wedit, preferred_element_type=f32)      # (1, V)

        lm_last = lm_ref[b, L - 1:L, :]                                  # (1, V)
        tok = jnp.where(pred == L, lm_last, edit)                        # (1, V)

        idx_ref[b:b + 1, :] = idx_row
        tok_ref[b:b + 1, :] = tok
        pred_ref[b:b + 1, :] = pred


@jax.jit
def edit_lm_forward(hidden_states, lm_logits, packed):
    """Inference-mode (target_index=None) EditLMHF head on top of backbone outputs."""
    Bc, Lc, Dc = hidden_states.shape
    assert (Bc, Lc, Dc) == (B, L, D)
    h2 = hidden_states.reshape(Bc * Lc, Dc)        # free bitcast: batch folded into rows

    idx, tok, pred = pl.pallas_call(
        _edit_kernel,
        out_shape=(
            jax.ShapeDtypeStruct((Bc, Lc + 1), jnp.float32),   # index_logits (lane-dense)
            jax.ShapeDtypeStruct((Bc, V), jnp.float32),        # token_logits
            jax.ShapeDtypeStruct((Bc, 1), jnp.int32),          # pred_index
        ),
        # no grid / no blocking: whole problem is resident in VMEM for one invocation
    )(h2, lm_logits, packed["wsmall"], packed["wedit"], packed["bvec"], packed["gl_add"])

    return dict(index_logits=idx, token_logits=tok, pred_index=pred[:, 0])


def pack_params(p):
    """One-time preprocessing of logical module params into packed kernel operands."""
    scale = 1.0 / math.sqrt(HEAD_DIM)
    gap2d = p["gap"].reshape(1, D)
    bnd2d = p["boundary"].reshape(1, D)

    # one matmul weight for everything consuming hidden_states: [w1 | w3 | wk | wv]
    w_hx = jnp.concatenate([p["w1"], p["w3"], p["wk"], p["wv"]], axis=1)          # (D, 96)
    b_hx = jnp.concatenate([jnp.zeros((1, 2 * D), jnp.float32), p["bk"], p["bv"]], axis=1)
    # one matmul weight for everything consuming gap_local: [wq*scale | wf1]
    w_gl = jnp.concatenate([p["wq"] * scale, p["wf1"]], axis=1)                   # (D, 64)
    b_gl = jnp.concatenate([p["bq"] * scale, jnp.zeros((1, D), jnp.float32)], axis=1)
    # o_proj followed by fuse_proj right half are chained linears -> fuse weights
    w_of = p["wo"] @ p["wf2"]                                                     # (D, D)

    wsmall = jnp.concatenate([w_hx, w_gl, w_of], axis=1)                          # (D, 192)
    bvec = jnp.concatenate([b_hx, b_gl, p["widx"].T], axis=1)                     # (1, 192)

    # per-position additive part of gap_local: gap token everywhere, boundary at the ends
    pos = jnp.arange(LP1, dtype=jnp.int32)[:, None]
    gl_add = (jnp.broadcast_to(gap2d @ p["w2"], (LP1, D))
              + (pos == 0).astype(jnp.float32) * (bnd2d @ p["w1"])
              + (pos == L).astype(jnp.float32) * (bnd2d @ p["w3"]))               # (L+1, D)

    return dict(wsmall=wsmall, wedit=p["wedit"], bvec=bvec, gl_add=gl_add)


def reference_forward(hidden_states, lm_logits, params):
    """Pure-JAX mirror of the PyTorch forward (inference branch)."""
    Bc, Lc, Dc = hidden_states.shape
    bnd = jnp.broadcast_to(params["boundary"], (Bc, 1, Dc))
    left = jnp.concatenate([bnd, hidden_states], 1)
    right = jnp.concatenate([hidden_states, bnd], 1)
    center = jnp.broadcast_to(params["gap"], (Bc, Lc + 1, Dc))
    triple = jnp.concatenate([left, center, right], -1)
    w_triple = jnp.concatenate([params["w1"], params["w2"], params["w3"]], 0)
    gap_local = triple @ w_triple
    q = gap_local @ params["wq"] + params["bq"]
    k = hidden_states @ params["wk"] + params["bk"]
    v = hidden_states @ params["wv"] + params["bv"]
    qs = q.reshape(Bc, Lc + 1, NUM_HEADS, HEAD_DIM).transpose(0, 2, 1, 3)
    ks = k.reshape(Bc, Lc, NUM_KV, HEAD_DIM).transpose(0, 2, 1, 3)
    vs = v.reshape(Bc, Lc, NUM_KV, HEAD_DIM).transpose(0, 2, 1, 3)
    rep = NUM_HEADS // NUM_KV
    ks = jnp.repeat(ks, rep, axis=1)
    vs = jnp.repeat(vs, rep, axis=1)
    s = jnp.einsum("bhqd,bhkd->bhqk", qs, ks) / jnp.sqrt(float(HEAD_DIM))
    a = jax.nn.softmax(s, -1)
    o = jnp.einsum("bhqk,bhkd->bhqd", a, vs).transpose(0, 2, 1, 3).reshape(Bc, Lc + 1, Dc)
    global_ctx = o @ params["wo"]
    w_fuse = jnp.concatenate([params["wf1"], params["wf2"]], 0)
    fused = jnp.concatenate([gap_local, global_ctx], -1) @ w_fuse
    idx_logits = (fused @ params["widx"])[..., 0]
    pred = jnp.argmax(idx_logits, -1)
    gathered = jnp.take_along_axis(fused, pred[:, None, None], axis=1)[:, 0]
    edit = gathered @ params["wedit"]
    tok = jnp.where((pred == Lc)[:, None], lm_logits[:, Lc - 1], edit)
    return dict(index_logits=idx_logits, token_logits=tok, pred_index=pred)


def make_params(key):
    ks = jax.random.split(key, 12)
    n = lambda k, shape, s=0.05: (s * jax.random.normal(k, shape)).astype(jnp.float32)
    return dict(
        gap=(0.02 * jax.random.normal(ks[0], (1, 1, D))).astype(jnp.float32),
        boundary=jnp.zeros((1, 1, D), jnp.float32),        # boundary_embed init = zeros
        w1=n(ks[1], (D, D)), w2=n(ks[2], (D, D)), w3=n(ks[3], (D, D)),   # triple_proj^T split
        wq=n(ks[4], (D, D)), bq=n(ks[5], (1, D)),
        wk=n(ks[6], (D, D_KV)), bk=n(ks[7], (1, D_KV)),
        wv=n(ks[8], (D, D_KV)), bv=n(ks[9], (1, D_KV)),
        wo=n(ks[10], (D, D)),
        wf1=n(ks[11], (D, D)), wf2=n(jax.random.fold_in(key, 100), (D, D)),  # fuse_proj^T split
        widx=n(jax.random.fold_in(key, 101), (D, 1)),
        # TODO(synk): edit_head would be initialized from the backbone lm_head; synthetic here.
        wedit=n(jax.random.fold_in(key, 102), (D, V)),
    )


if __name__ == "__main__":
    key = jax.random.PRNGKey(0)
    k_h, k_lm, k_p = jax.random.split(key, 3)
    # stand-ins for backbone(last_hidden_state, logits)
    hidden_states = jax.random.normal(k_h, (B, L, D), jnp.float32)
    lm_logits = jax.random.normal(k_lm, (B, L, V), jnp.float32)
    params = make_params(k_p)
    packed = pack_params(params)

    out = edit_lm_forward(hidden_states, lm_logits, packed)
    jax.block_until_ready(out)

    ref = reference_forward(hidden_states, lm_logits, params)
    assert jnp.allclose(out["index_logits"], ref["index_logits"], rtol=3e-2, atol=3e-2)
    assert jnp.allclose(out["token_logits"], ref["token_logits"], rtol=3e-2, atol=3e-2)
    assert jnp.array_equal(out["pred_index"], ref["pred_index"])

    print("KERNEL_OK")
</pallas_src>

<mosaic_0001>
module attributes {stable_mosaic.version = 11 : i64} {
  func.func @_edit_kernel(%arg0: memref<16x32xf32, #tpu.memory_space<vmem>>, %arg1: memref<2x8x128xf32, #tpu.memory_space<vmem>>, %arg2: memref<32x192xf32, #tpu.memory_space<vmem>>, %arg3: memref<32x128xf32, #tpu.memory_space<vmem>>, %arg4: memref<1x192xf32, #tpu.memory_space<vmem>>, %arg5: memref<9x32xf32, #tpu.memory_space<vmem>>, %arg6: memref<2x9xf32, #tpu.memory_space<vmem>>, %arg7: memref<2x128xf32, #tpu.memory_space<vmem>>, %arg8: memref<2x1xi32, #tpu.memory_space<vmem>>) attributes {dimension_semantics = [], scalar_prefetch = 0 : i64, scratch_operands = 0 : i64, tpu.core_type = #tpu.core_type<tc>} {
    %c0 = arith.constant 0 : index
    %c0_0 = arith.constant 0 : index
    %0 = vector.load %arg2[%c0, %c0_0] : memref<32x192xf32, #tpu.memory_space<vmem>>, vector<32x96xf32>
    %c0_1 = arith.constant 0 : index
    %c96 = arith.constant 96 : index
    %1 = vector.load %arg2[%c0_1, %c96] : memref<32x192xf32, #tpu.memory_space<vmem>>, vector<32x64xf32>
    %c0_2 = arith.constant 0 : index
    %c160 = arith.constant 160 : index
    %2 = vector.load %arg2[%c0_2, %c160] : memref<32x192xf32, #tpu.memory_space<vmem>>, vector<32x32xf32>
    %c0_3 = arith.constant 0 : index
    %c0_4 = arith.constant 0 : index
    %3 = vector.load %arg4[%c0_3, %c0_4] : memref<1x192xf32, #tpu.memory_space<vmem>>, vector<1x96xf32>
    %c0_5 = arith.constant 0 : index
    %c96_6 = arith.constant 96 : index
    %4 = vector.load %arg4[%c0_5, %c96_6] : memref<1x192xf32, #tpu.memory_space<vmem>>, vector<1x64xf32>
    %c0_7 = arith.constant 0 : index
    %c160_8 = arith.constant 160 : index
    %5 = vector.load %arg4[%c0_7, %c160_8] : memref<1x192xf32, #tpu.memory_space<vmem>>, vector<1x32xf32>
    %c0_9 = arith.constant 0 : index
    %c0_10 = arith.constant 0 : index
    %6 = vector.load %arg3[%c0_9, %c0_10] : memref<32x128xf32, #tpu.memory_space<vmem>>, vector<32x128xf32>
    %c0_11 = arith.constant 0 : index
    %c0_12 = arith.constant 0 : index
    %7 = vector.load %arg5[%c0_11, %c0_12] : memref<9x32xf32, #tpu.memory_space<vmem>>, vector<9x32xf32>
    %c0_13 = arith.constant 0 : index
    %c0_14 = arith.constant 0 : index
    %8 = vector.load %arg0[%c0_13, %c0_14] : memref<16x32xf32, #tpu.memory_space<vmem>>, vector<16x32xf32>
    %cst = arith.constant dense<0.000000e+00> : vector<16x96xf32>
    %9 = tpu.matmul %8, %0, %cst {dimension_numbers = #tpu.dot_dimension_numbers<[1], [0], [0], [1], [0, 0, 1, 1], [], []>} : vector<16x32xf32>, vector<32x96xf32>, vector<16x96xf32> -> vector<16x96xf32>
    %10 = vector.broadcast %3 : vector<1x96xf32> to vector<16x96xf32>
    %11 = arith.addf %9, %10 : vector<16x96xf32>
    %12 = tpu.iota {dimensions = array<i32: 0>} : vector<9x8xi32>
    %13 = tpu.iota {dimensions = array<i32: 1>} : vector<9x8xi32>
    %c1_i32 = arith.constant 1 : i32
    %14 = vector.broadcast %c1_i32 : i32 to vector<9x8xi32>
    %15 = arith.subi %12, %14 : vector<9x8xi32>
    %16 = arith.cmpi eq, %13, %15 : vector<9x8xi32>
    %17 = arith.extui %16 : vector<9x8xi1> to vector<9x8xi32>
    %18 = arith.sitofp %17 : vector<9x8xi32> to vector<9x8xf32>
    %19 = arith.cmpi eq, %13, %12 : vector<9x8xi32>
    %20 = arith.extui %19 : vector<9x8xi1> to vector<9x8xi32>
    %21 = arith.sitofp %20 : vector<9x8xi32> to vector<9x8xf32>
    %22 = tpu.iota {dimensions = array<i32: 1>} : vector<1x9xi32>
    %23 = vector.extract_strided_slice %11 {offsets = [0, 0], sizes = [8, 96], strides = [1, 1]} : vector<16x96xf32> to vector<8x96xf32>
    %24 = vector.extract_strided_slice %23 {offsets = [0, 0], sizes = [8, 32], strides = [1, 1]} : vector<8x96xf32> to vector<8x32xf32>
    %cst_15 = arith.constant dense<0.000000e+00> : vector<9x32xf32>
    %25 = tpu.matmul %18, %24, %cst_15 {dimension_numbers = #tpu.dot_dimension_numbers<[1], [0], [0], [1], [0, 0, 1, 1], [], []>} : vector<9x8xf32>, vector<8x32xf32>, vector<9x32xf32> -> vector<9x32xf32>
    %26 = vector.extract_strided_slice %23 {offsets = [0, 32], sizes = [8, 32], strides = [1, 1]} : vector<8x96xf32> to vector<8x32xf32>
    %cst_16 = arith.constant dense<0.000000e+00> : vector<9x32xf32>
    %27 = tpu.matmul %21, %26, %cst_16 {dimension_numbers = #tpu.dot_dimension_numbers<[1], [0], [0], [1], [0, 0, 1, 1], [], []>} : vector<9x8xf32>, vector<8x32xf32>, vector<9x32xf32> -> vector<9x32xf32>
    %28 = arith.addf %25, %27 : vector<9x32xf32>
    %29 = arith.addf %28, %7 : vector<9x32xf32>
    %cst_17 = arith.constant dense<0.000000e+00> : vector<9x64xf32>
    %30 = tpu.matmul %29, %1, %cst_17 {dimension_numbers = #tpu.dot_dimension_numbers<[1], [0], [0], [1], [0, 0, 1, 1], [], []>} : vector<9x32xf32>, vector<32x64xf32>, vector<9x64xf32> -> vector<9x64xf32>
    %31 = vector.broadcast %4 : vector<1x64xf32> to vector<9x64xf32>
    %32 = arith.addf %30, %31 : vector<9x64xf32>
    %33 = vector.extract_strided_slice %32 {offsets = [0, 0], sizes = [9, 8], strides = [1, 1]} : vector<9x64xf32> to vector<9x8xf32>
    %34 = vector.extract_strided_slice %32 {offsets = [0, 8], sizes = [9, 8], strides = [1, 1]} : vector<9x64xf32> to vector<9x8xf32>
    %35 = vector.extract_strided_slice %32 {offsets = [0, 16], sizes = [9, 8], strides = [1, 1]} : vector<9x64xf32> to vector<9x8xf32>
    %36 = vector.extract_strided_slice %32 {offsets = [0, 24], sizes = [9, 8], strides = [1, 1]} : vector<9x64xf32> to vector<9x8xf32>
    %37 = vector.shape_cast %33 : vector<9x8xf32> to vector<1x9x8xf32>
    %38 = vector.shape_cast %34 : vector<9x8xf32> to vector<1x9x8xf32>
    %39 = vector.shape_cast %35 : vector<9x8xf32> to vector<1x9x8xf32>
    %40 = vector.shape_cast %36 : vector<9x8xf32> to vector<1x9x8xf32>
    %41 = tpu.concatenate %37, %38, %39, %40 in 0 : vector<1x9x8xf32>, vector<1x9x8xf32>, vector<1x9x8xf32>, vector<1x9x8xf32> -> vector<4x9x8xf32>
    %42 = vector.extract_strided_slice %23 {offsets = [0, 64], sizes = [8, 8], strides = [1, 1]} : vector<8x96xf32> to vector<8x8xf32>
    %43 = vector.extract_strided_slice %23 {offsets = [0, 64], sizes = [8, 8], strides = [1, 1]} : vector<8x96xf32> to vector<8x8xf32>
    %44 = vector.extract_strided_slice %23 {offsets = [0, 72], sizes = [8, 8], strides = [1, 1]} : vector<8x96xf32> to vector<8x8xf32>
    %45 = vector.extract_strided_slice %23 {offsets = [0, 72], sizes = [8, 8], strides = [1, 1]} : vector<8x96xf32> to vector<8x8xf32>
    %46 = vector.shape_cast %42 : vector<8x8xf32> to vector<1x8x8xf32>
    %47 = vector.shape_cast %43 : vector<8x8xf32> to vector<1x8x8xf32>
    %48 = vector.shape_cast %44 : vector<8x8xf32> to vector<1x8x8xf32>
    %49 = vector.shape_cast %45 : vector<8x8xf32> to vector<1x8x8xf32>
    %50 = tpu.concatenate %46, %47, %48, %49 in 0 : vector<1x8x8xf32>, vector<1x8x8xf32>, vector<1x8x8xf32>, vector<1x8x8xf32> -> vector<4x8x8xf32>
    %51 = vector.extract_strided_slice %23 {offsets = [0, 80], sizes = [8, 8], strides = [1, 1]} : vector<8x96xf32> to vector<8x8xf32>
    %52 = vector.extract_strided_slice %23 {offsets = [0, 80], sizes = [8, 8], strides = [1, 1]} : vector<8x96xf32> to vector<8x8xf32>
    %53 = vector.extract_strided_slice %23 {offsets = [0, 88], sizes = [8, 8], strides = [1, 1]} : vector<8x96xf32> to vector<8x8xf32>
    %54 = vector.extract_strided_slice %23 {offsets = [0, 88], sizes = [8, 8], strides = [1, 1]} : vector<8x96xf32> to vector<8x8xf32>
    %55 = vector.shape_cast %51 : vector<8x8xf32> to vector<1x8x8xf32>
    %56 = vector.shape_cast %52 : vector<8x8xf32> to vector<1x8x8xf32>
    %57 = vector.shape_cast %53 : vector<8x8xf32> to vector<1x8x8xf32>
    %58 = vector.shape_cast %54 : vector<8x8xf32> to vector<1x8x8xf32>
    %59 = tpu.concatenate %55, %56, %57, %58 in 0 : vector<1x8x8xf32>, vector<1x8x8xf32>, vector<1x8x8xf32>, vector<1x8x8xf32> -> vector<4x8x8xf32>
    "tpu.trace_start"() <{level = 10 : i32, message = "hqd,hkd->hqk"}> : () -> ()
    %cst_18 = arith.constant dense<0.000000e+00> : vector<4x9x8xf32>
    %60 = tpu.matmul %41, %50, %cst_18 {dimension_numbers = #tpu.dot_dimension_numbers<[2], [2], [1], [1], [0, 0, 0, 1, 1, 1], [0], [0]>} : vector<4x9x8xf32>, vector<4x8x8xf32>, vector<4x9x8xf32> -> vector<4x9x8xf32>
    "tpu.trace_stop"() : () -> ()
    %cst_19 = arith.constant dense<0xFF800000> : vector<4x9xf32>
    %61 = vector.multi_reduction <maximumf>, %60, %cst_19 [2] : vector<4x9x8xf32> to vector<4x9xf32>
    %62 = vector.shape_cast %61 : vector<4x9xf32> to vector<4x9x1xf32>
    %63 = vector.broadcast %62 : vector<4x9x1xf32> to vector<4x9x8xf32>
    %64 = arith.subf %60, %63 : vector<4x9x8xf32>
    %65 = math.exp %64 : vector<4x9x8xf32>
    %cst_20 = arith.constant dense<0.000000e+00> : vector<4x9xf32>
    %66 = vector.multi_reduction <add>, %65, %cst_20 [2] : vector<4x9x8xf32> to vector<4x9xf32>
    %67 = vector.shape_cast %66 : vector<4x9xf32> to vector<4x9x1xf32>
    %68 = tpu.reciprocal %67 {approx = true} : vector<4x9x1xf32> -> vector<4x9x1xf32>
    %69 = vector.broadcast %68 : vector<4x9x1xf32> to vector<4x9x8xf32>
    %70 = arith.mulf %65, %69 : vector<4x9x8xf32>
    "tpu.trace_start"() <{level = 10 : i32, message = "hqk,hkd->hqd"}> : () -> ()
    %cst_21 = arith.constant dense<0.000000e+00> : vector<4x9x8xf32>
    %71 = tpu.matmul %70, %59, %cst_21 {dimension_numbers = #tpu.dot_dimension_numbers<[2], [1], [1], [2], [0, 0, 0, 1, 1, 2], [0], [0]>} : vector<4x9x8xf32>, vector<4x8x8xf32>, vector<4x9x8xf32> -> vector<4x9x8xf32>
    "tpu.trace_stop"() : () -> ()
    %72 = vector.extract_strided_slice %71 {offsets = [0, 0, 0], sizes = [1, 9, 8], strides = [1, 1, 1]} : vector<4x9x8xf32> to vector<1x9x8xf32>
    %73 = vector.shape_cast %72 : vector<1x9x8xf32> to vector<9x8xf32>
    %74 = vector.extract_strided_slice %71 {offsets = [1, 0, 0], sizes = [1, 9, 8], strides = [1, 1, 1]} : vector<4x9x8xf32> to vector<1x9x8xf32>
    %75 = vector.shape_cast %74 : vector<1x9x8xf32> to vector<9x8xf32>
    %76 = vector.extract_strided_slice %71 {offsets = [2, 0, 0], sizes = [1, 9, 8], strides = [1, 1, 1]} : vector<4x9x8xf32> to vector<1x9x8xf32>
    %77 = vector.shape_cast %76 : vector<1x9x8xf32> to vector<9x8xf32>
    %78 = vector.extract_strided_slice %71 {offsets = [3, 0, 0], sizes = [1, 9, 8], strides = [1, 1, 1]} : vector<4x9x8xf32> to vector<1x9x8xf32>
    %79 = vector.shape_cast %78 : vector<1x9x8xf32> to vector<9x8xf32>
    %80 = tpu.concatenate %73, %75, %77, %79 in 1 : vector<9x8xf32>, vector<9x8xf32>, vector<9x8xf32>, vector<9x8xf32> -> vector<9x32xf32>
    %81 = vector.extract_strided_slice %32 {offsets = [0, 32], sizes = [9, 32], strides = [1, 1]} : vector<9x64xf32> to vector<9x32xf32>
    %cst_22 = arith.constant dense<0.000000e+00> : vector<9x32xf32>
    %82 = tpu.matmul %80, %2, %cst_22 {dimension_numbers = #tpu.dot_dimension_numbers<[1], [0], [0], [1], [0, 0, 1, 1], [], []>} : vector<9x32xf32>, vector<32x32xf32>, vector<9x32xf32> -> vector<9x32xf32>
    %83 = arith.addf %81, %82 : vector<9x32xf32>
    %cst_23 = arith.constant dense<0.000000e+00> : vector<1x9xf32>
    %84 = tpu.matmul %5, %83, %cst_23 {dimension_numbers = #tpu.dot_dimension_numbers<[1], [1], [0], [0], [0, 0, 1, 0], [], []>} : vector<1x32xf32>, vector<9x32xf32>, vector<1x9xf32> -> vector<1x9xf32>
    %cst_24 = arith.constant dense<0xFF800000> : vector<1xf32>
    %85 = vector.multi_reduction <maximumf>, %84, %cst_24 [1] : vector<1x9xf32> to vector<1xf32>
    %86 = vector.shape_cast %85 : vector<1xf32> to vector<1x1xf32>
    %87 = vector.broadcast %86 : vector<1x1xf32> to vector<1x9xf32>
    %88 = arith.cmpf oeq, %84, %87 : vector<1x9xf32>
    %c9_i32 = arith.constant 9 : i32
    %89 = vector.broadcast %c9_i32 : i32 to vector<1x9xi32>
    %90 = arith.select %88, %22, %89 : vector<1x9xi1>, vector<1x9xi32>
    %cst_25 = arith.constant dense<2147483647> : vector<1xi32>
    %91 = vector.multi_reduction <minsi>, %90, %cst_25 [1] : vector<1x9xi32> to vector<1xi32>
    %92 = vector.shape_cast %91 : vector<1xi32> to vector<1x1xi32>
    %93 = vector.broadcast %92 : vector<1x1xi32> to vector<1x9xi32>
    %94 = arith.cmpi eq, %22, %93 : vector<1x9xi32>
    %95 = arith.extui %94 : vector<1x9xi1> to vector<1x9xi32>
    %96 = arith.sitofp %95 : vector<1x9xi32> to vector<1x9xf32>
    %cst_26 = arith.constant dense<0.000000e+00> : vector<1x32xf32>
    %97 = tpu.matmul %96, %83, %cst_26 {dimension_numbers = #tpu.dot_dimension_numbers<[1], [0], [0], [1], [0, 0, 1, 1], [], []>} : vector<1x9xf32>, vector<9x32xf32>, vector<1x32xf32> -> vector<1x32xf32>
    %cst_27 = arith.constant dense<0.000000e+00> : vector<1x128xf32>
    %98 = tpu.matmul %97, %6, %cst_27 {dimension_numbers = #tpu.dot_dimension_numbers<[1], [0], [0], [1], [0, 0, 1, 1], [], []>} : vector<1x32xf32>, vector<32x128xf32>, vector<1x128xf32> -> vector<1x128xf32>
    %c0_28 = arith.constant 0 : index
    %c7 = arith.constant 7 : index
    %c0_29 = arith.constant 0 : index
    %99 = vector.load %arg1[%c0_28, %c7, %c0_29] : memref<2x8x128xf32, #tpu.memory_space<vmem>>, vector<1x1x128xf32>
    %100 = vector.shape_cast %99 : vector<1x1x128xf32> to vector<1x128xf32>
    %c8_i32 = arith.constant 8 : i32
    %101 = vector.broadcast %c8_i32 : i32 to vector<1x1xi32>
    %102 = arith.cmpi eq, %92, %101 : vector<1x1xi32>
    %103 = vector.shape_cast %102 : vector<1x1xi1> to vector<1x1xi1>
    %104 = vector.broadcast %103 : vector<1x1xi1> to vector<1x128xi1>
    %105 = arith.select %104, %100, %98 : vector<1x128xi1>, vector<1x128xf32>
    %c0_30 = arith.constant 0 : index
    %c0_31 = arith.constant 0 : index
    %106 = vector.load %arg6[%c0_30, %c0_31] : memref<2x9xf32, #tpu.memory_space<vmem>>, vector<1x9xf32>
    tpu.vector_store %arg6[%c0_30, %c0_31], %84 {strides = array<i32>} : memref<2x9xf32, #tpu.memory_space<vmem>>, vector<1x9xf32>,
    %c0_32 = arith.constant 0 : index
    %c0_33 = arith.constant 0 : index
    %107 = vector.load %arg7[%c0_32, %c0_33] : memref<2x128xf32, #tpu.memory_space<vmem>>, vector<1x128xf32>
    tpu.vector_store %arg7[%c0_32, %c0_33], %105 {strides = array<i32>} : memref<2x128xf32, #tpu.memory_space<vmem>>, vector<1x128xf32>,
    %c0_34 = arith.constant 0 : index
    %c0_35 = arith.constant 0 : index
    %108 = vector.load %arg8[%c0_34, %c0_35] : memref<2x1xi32, #tpu.memory_space<vmem>>, vector<1x1xi32>
    tpu.vector_store %arg8[%c0_34, %c0_35], %92 {strides = array<i32>} : memref<2x1xi32, #tpu.memory_space<vmem>>, vector<1x1xi32>,
    %109 = vector.extract_strided_slice %11 {offsets = [8, 0], sizes = [8, 96], strides = [1, 1]} : vector<16x96xf32> to vector<8x96xf32>
    %110 = vector.extract_strided_slice %109 {offsets = [0, 0], sizes = [8, 32], strides = [1, 1]} : vector<8x96xf32> to vector<8x32xf32>
    %cst_36 = arith.constant dense<0.000000e+00> : vector<9x32xf32>
    %111 = tpu.matmul %18, %110, %cst_36 {dimension_numbers = #tpu.dot_dimension_numbers<[1], [0], [0], [1], [0, 0, 1, 1], [], []>} : vector<9x8xf32>, vector<8x32xf32>, vector<9x32xf32> -> vector<9x32xf32>
    %112 = vector.extract_strided_slice %109 {offsets = [0, 32], sizes = [8, 32], strides = [1, 1]} : vector<8x96xf32> to vector<8x32xf32>
    %cst_37 = arith.constant dense<0.000000e+00> : vector<9x32xf32>
    %113 = tpu.matmul %21, %112, %cst_37 {dimension_numbers = #tpu.dot_dimension_numbers<[1], [0], [0], [1], [0, 0, 1, 1], [], []>} : vector<9x8xf32>, vector<8x32xf32>, vector<9x32xf32> -> vector<9x32xf32>
    %114 = arith.addf %111, %113 : vector<9x32xf32>
    %115 = arith.addf %114, %7 : vector<9x32xf32>
    %cst_38 = arith.constant dense<0.000000e+00> : vector<9x64xf32>
    %116 = tpu.matmul %115, %1, %cst_38 {dimension_numbers = #tpu.dot_dimension_numbers<[1], [0], [0], [1], [0, 0, 1, 1], [], []>} : vector<9x32xf32>, vector<32x64xf32>, vector<9x64xf32> -> vector<9x64xf32>
    %117 = vector.broadcast %4 : vector<1x64xf32> to vector<9x64xf32>
    %118 = arith.addf %116, %117 : vector<9x64xf32>
    %119 = vector.extract_strided_slice %118 {offsets = [0, 0], sizes = [9, 8], strides = [1, 1]} : vector<9x64xf32> to vector<9x8xf32>
    %120 = vector.extract_strided_slice %118 {offsets = [0, 8], sizes = [9, 8], strides = [1, 1]} : vector<9x64xf32> to vector<9x8xf32>
    %121 = vector.extract_strided_slice %118 {offsets = [0, 16], sizes = [9, 8], strides = [1, 1]} : vector<9x64xf32> to vector<9x8xf32>
    %122 = vector.extract_strided_slice %118 {offsets = [0, 24], sizes = [9, 8], strides = [1, 1]} : vector<9x64xf32> to vector<9x8xf32>
    %123 = vector.shape_cast %119 : vector<9x8xf32> to vector<1x9x8xf32>
    %124 = vector.shape_cast %120 : vector<9x8xf32> to vector<1x9x8xf32>
    %125 = vector.shape_cast %121 : vector<9x8xf32> to vector<1x9x8xf32>
    %126 = vector.shape_cast %122 : vector<9x8xf32> to vector<1x9x8xf32>
    %127 = tpu.concatenate %123, %124, %125, %126 in 0 : vector<1x9x8xf32>, vector<1x9x8xf32>, vector<1x9x8xf32>, vector<1x9x8xf32> -> vector<4x9x8xf32>
    %128 = vector.extract_strided_slice %109 {offsets = [0, 64], sizes = [8, 8], strides = [1, 1]} : vector<8x96xf32> to vector<8x8xf32>
    %129 = vector.extract_strided_slice %109 {offsets = [0, 64], sizes = [8, 8], strides = [1, 1]} : vector<8x96xf32> to vector<8x8xf32>
    %130 = vector.extract_strided_slice %109 {offsets = [0, 72], sizes = [8, 8], strides = [1, 1]} : vector<8x96xf32> to vector<8x8xf32>
    %131 = vector.extract_strided_slice %109 {offsets = [0, 72], sizes = [8, 8], strides = [1, 1]} : vector<8x96xf32> to vector<8x8xf32>
    %132 = vector.shape_cast %128 : vector<8x8xf32> to vector<1x8x8xf32>
    %133 = vector.shape_cast %129 : vector<8x8xf32> to vector<1x8x8xf32>
    %134 = vector.shape_cast %130 : vector<8x8xf32> to vector<1x8x8xf32>
    %135 = vector.shape_cast %131 : vector<8x8xf32> to vector<1x8x8xf32>
    %136 = tpu.concatenate %132, %133, %134, %135 in 0 : vector<1x8x8xf32>, vector<1x8x8xf32>, vector<1x8x8xf32>, vector<1x8x8xf32> -> vector<4x8x8xf32>
    %137 = vector.extract_strided_slice %109 {offsets = [0, 80], sizes = [8, 8], strides = [1, 1]} : vector<8x96xf32> to vector<8x8xf32>
    %138 = vector.extract_strided_slice %109 {offsets = [0, 80], sizes = [8, 8], strides = [1, 1]} : vector<8x96xf32> to vector<8x8xf32>
    %139 = vector.extract_strided_slice %109 {offsets = [0, 88], sizes = [8, 8], strides = [1, 1]} : vector<8x96xf32> to vector<8x8xf32>
    %140 = vector.extract_strided_slice %109 {offsets = [0, 88], sizes = [8, 8], strides = [1, 1]} : vector<8x96xf32> to vector<8x8xf32>
    %141 = vector.shape_cast %137 : vector<8x8xf32> to vector<1x8x8xf32>
    %142 = vector.shape_cast %138 : vector<8x8xf32> to vector<1x8x8xf32>
    %143 = vector.shape_cast %139 : vector<8x8xf32> to vector<1x8x8xf32>
    %144 = vector.shape_cast %140 : vector<8x8xf32> to vector<1x8x8xf32>
    %145 = tpu.concatenate %141, %142, %143, %144 in 0 : vector<1x8x8xf32>, vector<1x8x8xf32>, vector<1x8x8xf32>, vector<1x8x8xf32> -> vector<4x8x8xf32>
    "tpu.trace_start"() <{level = 10 : i32, message = "hqd,hkd->hqk"}> : () -> ()
    %cst_39 = arith.constant dense<0.000000e+00> : vector<4x9x8xf32>
    %146 = tpu.matmul %127, %136, %cst_39 {dimension_numbers = #tpu.dot_dimension_numbers<[2], [2], [1], [1], [0, 0, 0, 1, 1, 1], [0], [0]>} : vector<4x9x8xf32>, vector<4x8x8xf32>, vector<4x9x8xf32> -> vector<4x9x8xf32>
    "tpu.trace_stop"() : () -> ()
    %cst_40 = arith.constant dense<0xFF800000> : vector<4x9xf32>
    %147 = vector.multi_reduction <maximumf>, %146, %cst_40 [2] : vector<4x9x8xf32> to vector<4x9xf32>
    %148 = vector.shape_cast %147 : vector<4x9xf32> to vector<4x9x1xf32>
    %149 = vector.broadcast %148 : vector<4x9x1xf32> to vector<4x9x8xf32>
    %150 = arith.subf %146, %149 : vector<4x9x8xf32>
    %151 = math.exp %150 : vector<4x9x8xf32>
    %cst_41 = arith.constant dense<0.000000e+00> : vector<4x9xf32>
    %152 = vector.multi_reduction <add>, %151, %cst_41 [2] : vector<4x9x8xf32> to vector<4x9xf32>
    %153 = vector.shape_cast %152 : vector<4x9xf32> to vector<4x9x1xf32>
    %154 = tpu.reciprocal %153 {approx = true} : vector<4x9x1xf32> -> vector<4x9x1xf32>
    %155 = vector.broadcast %154 : vector<4x9x1xf32> to vector<4x9x8xf32>
    %156 = arith.mulf %151, %155 : vector<4x9x8xf32>
    "tpu.trace_start"() <{level = 10 : i32, message = "hqk,hkd->hqd"}> : () -> ()
    %cst_42 = arith.constant dense<0.000000e+00> : vector<4x9x8xf32>
    %157 = tpu.matmul %156, %145, %cst_42 {dimension_numbers = #tpu.dot_dimension_numbers<[2], [1], [1], [2], [0, 0, 0, 1, 1, 2], [0], [0]>} : vector<4x9x8xf32>, vector<4x8x8xf32>, vector<4x9x8xf32> -> vector<4x9x8xf32>
    "tpu.trace_stop"() : () -> ()
    %158 = vector.extract_strided_slice %157 {offsets = [0, 0, 0], sizes = [1, 9, 8], strides = [1, 1, 1]} : vector<4x9x8xf32> to vector<1x9x8xf32>
    %159 = vector.shape_cast %158 : vector<1x9x8xf32> to vector<9x8xf32>
    %160 = vector.extract_strided_slice %157 {offsets = [1, 0, 0], sizes = [1, 9, 8], strides = [1, 1, 1]} : vector<4x9x8xf32> to vector<1x9x8xf32>
    %161 = vector.shape_cast %160 : vector<1x9x8xf32> to vector<9x8xf32>
    %162 = vector.extract_strided_slice %157 {offsets = [2, 0, 0], sizes = [1, 9, 8], strides = [1, 1, 1]} : vector<4x9x8xf32> to vector<1x9x8xf32>
    %163 = vector.shape_cast %162 : vector<1x9x8xf32> to vector<9x8xf32>
    %164 = vector.extract_strided_slice %157 {offsets = [3, 0, 0], sizes = [1, 9, 8], strides = [1, 1, 1]} : vector<4x9x8xf32> to vector<1x9x8xf32>
    %165 = vector.shape_cast %164 : vector<1x9x8xf32> to vector<9x8xf32>
    %166 = tpu.concatenate %159, %161, %163, %165 in 1 : vector<9x8xf32>, vector<9x8xf32>, vector<9x8xf32>, vector<9x8xf32> -> vector<9x32xf32>
    %167 = vector.extract_strided_slice %118 {offsets = [0, 32], sizes = [9, 32], strides = [1, 1]} : vector<9x64xf32> to vector<9x32xf32>
    %cst_43 = arith.constant dense<0.000000e+00> : vector<9x32xf32>
    %168 = tpu.matmul %166, %2, %cst_43 {dimension_numbers = #tpu.dot_dimension_numbers<[1], [0], [0], [1], [0, 0, 1, 1], [], []>} : vector<9x32xf32>, vector<32x32xf32>, vector<9x32xf32> -> vector<9x32xf32>
    %169 = arith.addf %167, %168 : vector<9x32xf32>
    %cst_44 = arith.constant dense<0.000000e+00> : vector<1x9xf32>
    %170 = tpu.matmul %5, %169, %cst_44 {dimension_numbers = #tpu.dot_dimension_numbers<[1], [1], [0], [0], [0, 0, 1, 0], [], []>} : vector<1x32xf32>, vector<9x32xf32>, vector<1x9xf32> -> vector<1x9xf32>
    %cst_45 = arith.constant dense<0xFF800000> : vector<1xf32>
    %171 = vector.multi_reduction <maximumf>, %170, %cst_45 [1] : vector<1x9xf32> to vector<1xf32>
    %172 = vector.shape_cast %171 : vector<1xf32> to vector<1x1xf32>
    %173 = vector.broadcast %172 : vector<1x1xf32> to vector<1x9xf32>
    %174 = arith.cmpf oeq, %170, %173 : vector<1x9xf32>
    %c9_i32_46 = arith.constant 9 : i32
    %175 = vector.broadcast %c9_i32_46 : i32 to vector<1x9xi32>
    %176 = arith.select %174, %22, %175 : vector<1x9xi1>, vector<1x9xi32>
    %cst_47 = arith.constant dense<2147483647> : vector<1xi32>
    %177 = vector.multi_reduction <minsi>, %176, %cst_47 [1] : vector<1x9xi32> to vector<1xi32>
    %178 = vector.shape_cast %177 : vector<1xi32> to vector<1x1xi32>
    %179 = vector.broadcast %178 : vector<1x1xi32> to vector<1x9xi32>
    %180 = arith.cmpi eq, %22, %179 : vector<1x9xi32>
    %181 = arith.extui %180 : vector<1x9xi1> to vector<1x9xi32>
    %182 = arith.sitofp %181 : vector<1x9xi32> to vector<1x9xf32>
    %cst_48 = arith.constant dense<0.000000e+00> : vector<1x32xf32>
    %183 = tpu.matmul %182, %169, %cst_48 {dimension_numbers = #tpu.dot_dimension_numbers<[1], [0], [0], [1], [0, 0, 1, 1], [], []>} : vector<1x9xf32>, vector<9x32xf32>, vector<1x32xf32> -> vector<1x32xf32>
    %cst_49 = arith.constant dense<0.000000e+00> : vector<1x128xf32>
    %184 = tpu.matmul %183, %6, %cst_49 {dimension_numbers = #tpu.dot_dimension_numbers<[1], [0], [0], [1], [0, 0, 1, 1], [], []>} : vector<1x32xf32>, vector<32x128xf32>, vector<1x128xf32> -> vector<1x128xf32>
    %c1 = arith.constant 1 : index
    %c7_50 = arith.constant 7 : index
    %c0_51 = arith.constant 0 : index
    %185 = vector.load %arg1[%c1, %c7_50, %c0_51] : memref<2x8x128xf32, #tpu.memory_space<vmem>>, vector<1x1x128xf32>
    %186 = vector.shape_cast %185 : vector<1x1x128xf32> to vector<1x128xf32>
    %c8_i32_52 = arith.constant 8 : i32
    %187 = vector.broadcast %c8_i32_52 : i32 to vector<1x1xi32>
    %188 = arith.cmpi eq, %178, %187 : vector<1x1xi32>
    %189 = vector.shape_cast %188 : vector<1x1xi1> to vector<1x1xi1>
    %190 = vector.broadcast %189 : vector<1x1xi1> to vector<1x128xi1>
    %191 = arith.select %190, %186, %184 : vector<1x128xi1>, vector<1x128xf32>
    %c1_53 = arith.constant 1 : index
    %c0_54 = arith.constant 0 : index
    %192 = vector.load %arg6[%c1_53, %c0_54] : memref<2x9xf32, #tpu.memory_space<vmem>>, vector<1x9xf32>
    tpu.vector_store %arg6[%c1_53, %c0_54], %170 {strides = array<i32>} : memref<2x9xf32, #tpu.memory_space<vmem>>, vector<1x9xf32>,
    %c1_55 = arith.constant 1 : index
    %c0_56 = arith.constant 0 : index
    %193 = vector.load %arg7[%c1_55, %c0_56] : memref<2x128xf32, #tpu.memory_space<vmem>>, vector<1x128xf32>
    tpu.vector_store %arg7[%c1_55, %c0_56], %191 {strides = array<i32>} : memref<2x128xf32, #tpu.memory_space<vmem>>, vector<1x128xf32>,
    %c1_57 = arith.constant 1 : index
    %c0_58 = arith.constant 0 : index
    %194 = vector.load %arg8[%c1_57, %c0_58] : memref<2x1xi32, #tpu.memory_space<vmem>>, vector<1x1xi32>
    tpu.vector_store %arg8[%c1_57, %c0_58], %178 {strides = array<i32>} : memref<2x1xi32, #tpu.memory_space<vmem>>, vector<1x1xi32>,
    return
  }
}

</mosaic_0001>

<llo_original>
// kernel: edit_lm_forward.1
$region0: #{edit_lm_forward.1}
  #allocation0 [shape = 'u32[]', space=smem, size = 0x4, offset = 0x4, fixed_abs, tag = 'smem constant byte address 0x4 - core index']
  #allocation1 [shape = 'u32[144,128]{1,0:T(1,128)}', space=vmem, size = 0x12000, scoped, tag = 'internal scratch']
  %s0 = inlined_call_operand.hbm [shape: f32[16,32], index: 0, kind: input, shape index: {}]
  %s1 = inlined_call_operand.hbm [shape: f32[2,8,128], index: 1, kind: input, shape index: {}]
  %s2 = inlined_call_operand.hbm [shape: f32[32,192], index: 2, kind: input, shape index: {}]
  %s3 = inlined_call_operand.hbm [shape: f32[32,128], index: 3, kind: input, shape index: {}]
  %s4 = inlined_call_operand.vmem [shape: f32[1,192], index: 4, kind: input, shape index: {}]
  %s5 = inlined_call_operand.hbm [shape: f32[9,32], index: 5, kind: input, shape index: {}]
  %s6 = inlined_call_operand.hbm [shape: f32[2,9], index: 6, kind: output, shape index: {0}]
  %s7 = inlined_call_operand.hbm [shape: f32[2,128], index: 7, kind: output, shape index: {1}]
  %s8 = inlined_call_operand.vmem [shape: s32[2,1], index: 8, kind: output, shape index: {2}]
  %9 = xla_tuple %s6, %s7, %s8
  %s10 = sld [smem:[#allocation0]]
  $region70: #{edit_lm_forward.1} parent=0
    _
  %s12 = ssub.s32 1, %s10
  %s13 = scalar_select 0, %s12, %s10
  $region1: #{edit_lm_forward.1} parent=0
    #allocation2 [shape = 'u8[8192]{0}', space=vmem, size = 0x2000, scoped, tag = 'input window, operand 0, single buffered']
    #allocation3 [shape = 's32[1]{0}', space=sflag, size = 0x4, scoped, tag = 'scoped memory for edit_lm_forward.1']
    #allocation4 [shape = 's32[1]{0}', space=sflag, size = 0x4, scoped, tag = 'scoped memory for edit_lm_forward.1']
    #allocation5 [shape = 'u8[8192]{0}', space=vmem, size = 0x2000, scoped, tag = 'input window, operand 1, single buffered']
    #allocation6 [shape = 's32[1]{0}', space=sflag, size = 0x4, scoped, tag = 'scoped memory for edit_lm_forward.1']
    #allocation7 [shape = 'u8[32768]{0}', space=vmem, size = 0x8000, scoped, tag = 'input window, operand 2, single buffered']
    #allocation8 [shape = 'u8[16384]{0}', space=vmem, size = 0x4000, scoped, tag = 'input window, operand 3, single buffered']
    #allocation9 [shape = 's32[1]{0}', space=sflag, size = 0x4, scoped, tag = 'scoped memory for edit_lm_forward.1']
    #allocation10 [shape = 'u8[8192]{0}', space=vmem, size = 0x2000, scoped, tag = 'input window, operand 5, single buffered']
    #allocation11 [shape = 'u8[1024]{0}', space=vmem, size = 0x400, scoped, tag = 'output window, operand 0, single buffered']
    #allocation12 [shape = 'u8[1024]{0}', space=vmem, size = 0x400, scoped, tag = 'output window, operand 1, single buffered']
    #allocation13 [shape = 's32[1]{0}', space=sflag, size = 0x4, scoped, tag = 'scoped memory for edit_lm_forward.1']
    %14 = vsyncpa [#allocation3], 0
    %15 = vsyncpa [#allocation6], 0
    %16 = vsyncpa [#allocation9], 0
    %17 = vsyncpa [#allocation4], 0
    %18 = vsyncpa [#allocation13], 0
    // Predicated region
    $region2: #{edit_lm_forward.1} parent=1 // pred_check
      _
    $region3: #{edit_lm_forward.1} parent=1 // pred_check_branch
      %20 = sbr.rel (0) target = $region5
    $region4: #{edit_lm_forward.1} parent=1 // pred_region
      %s22 = ssub.s32 256, 256
      %23 = vsyncadd [#allocation3], %s22
      %s24 = sshll.u32 [#allocation2], 4
      %s25 = int_to_ptr.vmem [resolvable:$true] %s24
      %30 = dma.hbm_to_vmem [thread:$0]  %s0, 256, %s25, [#allocation3], 128, 128, 8
    $region5: #{edit_lm_forward.1} parent=1 // pred_fallthru
      _
    // Predicated region
    $region6: #{edit_lm_forward.1} parent=1 // pred_check
      _
    $region7: #{edit_lm_forward.1} parent=1 // pred_check_branch
      %32 = sbr.rel (0) target = $region9
    $region8: #{edit_lm_forward.1} parent=1 // pred_region
      %s34 = ssub.s32 256, 256
      %35 = vsyncadd [#allocation6], %s34
      %s36 = sshll.u32 [#allocation5], 4
      %s37 = int_to_ptr.vmem [resolvable:$true] %s36
      %42 = dma.hbm_to_vmem [thread:$0]  %s1, 256, %s37, [#allocation6], 128, 128, 8
    $region9: #{edit_lm_forward.1} parent=1 // pred_fallthru
      _
    // Predicated region
    $region10: #{edit_lm_forward.1} parent=1 // pred_check
      _
    $region11: #{edit_lm_forward.1} parent=1 // pred_check_branch
      %44 = sbr.rel (0) target = $region13
    $region12: #{edit_lm_forward.1} parent=1 // pred_region
      %s46 = ssub.s32 1024, 1024
      %47 = vsyncadd [#allocation6], %s46
      %s48 = sshll.u32 [#allocation7], 4
      %s49 = int_to_ptr.vmem [resolvable:$true] %s48
      %54 = dma.hbm_to_vmem [thread:$0]  %s2, 1024, %s49, [#allocation6], 256, 256, 16
    $region13: #{edit_lm_forward.1} parent=1 // pred_fallthru
      _
    // Predicated region
    $region14: #{edit_lm_forward.1} parent=1 // pred_check
      _
    $region15: #{edit_lm_forward.1} parent=1 // pred_check_branch
      %56 = sbr.rel (0) target = $region17
    $region16: #{edit_lm_forward.1} parent=1 // pred_region
      %s58 = ssub.s32 512, 512
      %59 = vsyncadd [#allocation9], %s58
      %s60 = sshll.u32 [#allocation8], 4
      %s61 = int_to_ptr.vmem [resolvable:$true] %s60
      %66 = dma.hbm_to_vmem [thread:$0]  %s3, 512, %s61, [#allocation9], 128, 128, 8
    $region17: #{edit_lm_forward.1} parent=1 // pred_fallthru
      _
    // Predicated region
    $region18: #{edit_lm_forward.1} parent=1 // pred_check
      _
    $region19: #{edit_lm_forward.1} parent=1 // pred_check_branch
      %68 = sbr.rel (0) target = $region21
    $region20: #{edit_lm_forward.1} parent=1 // pred_region
      _
    $region21: #{edit_lm_forward.1} parent=1 // pred_fallthru
      _
    // Predicated region
    $region22: #{edit_lm_forward.1} parent=1 // pred_check
      _
    $region23: #{edit_lm_forward.1} parent=1 // pred_check_branch
      %70 = sbr.rel (0) target = $region25
    $region24: #{edit_lm_forward.1} parent=1 // pred_region
      %s72 = ssub.s32 256, 256
      %73 = vsyncadd [#allocation9], %s72
      %s74 = sshll.u32 [#allocation10], 4
      %s75 = int_to_ptr.vmem [resolvable:$true] %s74
      %80 = dma.hbm_to_vmem [thread:$0]  %s5, 256, %s75, [#allocation9], 128, 128, 8
    $region25: #{edit_lm_forward.1} parent=1 // pred_fallthru
      _
    // Predicated region
    $region26: #{edit_lm_forward.1} parent=1 // pred_check
      _
    $region27: #{edit_lm_forward.1} parent=1 // pred_check_branch
      %82 = sbr.rel (0) target = $region29
    $region28: #{edit_lm_forward.1} parent=1 // pred_region
      %83 = dma.done [#allocation3], 256
    $region29: #{edit_lm_forward.1} parent=1 // pred_fallthru
      _
    // Predicated region
    $region30: #{edit_lm_forward.1} parent=1 // pred_check
      _
    $region31: #{edit_lm_forward.1} parent=1 // pred_check_branch
      %85 = sbr.rel (0) target = $region33
    $region32: #{edit_lm_forward.1} parent=1 // pred_region
      %86 = dma.done [#allocation6], 256
    $region33: #{edit_lm_forward.1} parent=1 // pred_fallthru
      _
    // Predicated region
    $region34: #{edit_lm_forward.1} parent=1 // pred_check
      _
    $region35: #{edit_lm_forward.1} parent=1 // pred_check_branch
      %88 = sbr.rel (0) target = $region37
    $region36: #{edit_lm_forward.1} parent=1 // pred_region
      %89 = dma.done [#allocation6], 1024
    $region37: #{edit_lm_forward.1} parent=1 // pred_fallthru
      _
    // Predicated region
    $region38: #{edit_lm_forward.1} parent=1 // pred_check
      _
    $region39: #{edit_lm_forward.1} parent=1 // pred_check_branch
      %91 = sbr.rel (0) target = $region41
    $region40: #{edit_lm_forward.1} parent=1 // pred_region
      %92 = dma.done [#allocation9], 512
    $region41: #{edit_lm_forward.1} parent=1 // pred_fallthru
      _
    // Predicated region
    $region42: #{edit_lm_forward.1} parent=1 // pred_check
      _
    $region43: #{edit_lm_forward.1} parent=1 // pred_check_branch
      %94 = sbr.rel (0) target = $region45
    $region44: #{edit_lm_forward.1} parent=1 // pred_region
      %95 = dma.done [#allocation9], 256
    $region45: #{edit_lm_forward.1} parent=1 // pred_fallthru
      _
    %v96 = vld [vmem:[#allocation7] sm:$0xff]
    %v97 = vld [vmem:[#allocation7 + $0x10] sm:$0xff]
    %v98 = vld [vmem:[#allocation7 + $0x20] sm:$0xff]
    %v99 = vld [vmem:[#allocation7 + $0x30] sm:$0xff]
    %v100 = vld [vmem:[#allocation7 + $0x8] sm:$0xff]
    %v101 = vld [vmem:[#allocation7 + $0x18] sm:$0xff]
    %v102 = vld [vmem:[#allocation7 + $0x28] sm:$0xff]
    %v103 = vld [vmem:[#allocation7 + $0x38] sm:$0xff]
    %v104 = vld [vmem:[%s4] sm:$0x1]
    %v105 = vld [vmem:[%s4] sm:$0x3]
    %v106 = vld [vmem:[%s4 + $0x1] sm:$0x1]
    %v107 = vld [vmem:[#allocation8] sm:$0xff]
    %v108 = vld [vmem:[#allocation8 + $0x8] sm:$0xff]
    %v109 = vld [vmem:[#allocation8 + $0x10] sm:$0xff]
    %v110 = vld [vmem:[#allocation8 + $0x18] sm:$0xff]
    %v111 = vld [vmem:[#allocation10] sm:$0xff]
    %v112 = vld [vmem:[#allocation10 + $0x8] sm:$0x1]
    %v113 = vld [vmem:[#allocation2] sm:$0xff]
    %v114 = vld [vmem:[#allocation2 + $0x8] sm:$0xff]
    %v116 = vlaneseq
    %v117 = vshrl.u32 %v116, 7
    %v118 = vsub.s32 0, %v117
    %v119 = vrot.slane %v104, %v118
    %vm121 = vcmask 261120
    %v123 = vsel %vm121, %v113, 0
    %v126 = vsel %vm121, %v114, 0
    %128 = vmatprep.subr.mxu0 0.0
    %129 = vmatpush1.msra.mxu0 %v96
    %130 = vmatprep.subr.mxu0 0.0
    %131 = vmatpush1.msra.mxu0 %v97
    %132 = vmatprep.subr.mxu0 0.0
    %133 = vmatpush1.msra.mxu0 %v98
    %134 = vmatprep.subr.mxu0 0.0
    %135 = vmatpush1.msra.mxu0 %v99
    %136 = vmatprep.subr.mxu0 0.0
    %137 = vmatpush1.msra.mxu0 0.0
    %138 = vmatprep.subr.mxu0 0.0
    %139 = vmatpush1.msra.mxu0 0.0
    %140 = vmatprep.subr.mxu0 0.0
    %141 = vmatpush1.msra.mxu0 0.0
    %142 = vmatprep.subr.mxu0 0.0
    %143 = vmatpush1.msra.mxu0 0.0
    %144 = vmatprep.subr.mxu0 0.0
    %145 = vmatpush1.msra.mxu0 0.0
    %146 = vmatprep.subr.mxu0 0.0
    %147 = vmatpush1.msra.mxu0 0.0
    %148 = vmatprep.subr.mxu0 0.0
    %149 = vmatpush1.msra.mxu0 0.0
    %150 = vmatprep.subr.mxu0 0.0
    %151 = vmatpush1.msra.mxu0 0.0
    %152 = vmatprep.subr.mxu0 0.0
    %153 = vmatpush1.msra.mxu0 0.0
    %154 = vmatprep.subr.mxu0 0.0
    %155 = vmatpush1.msra.mxu0 0.0
    %156 = vmatprep.subr.mxu0 0.0
    %157 = vmatpush1.msra.mxu0 0.0
    %158 = vmatprep.subr.mxu0 0.0
    %159 = vmatpush1.msra.mxu0 0.0
    %160 = vmatprep.subr.mxu0 0.0
    %161 = vmatpush1.msra.mxu0 0.0
    %162 = vmatprep.subr.mxu0 0.0
    %163 = vmatpush1.msra.mxu0 0.0
    %164 = vmatprep.subr.mxu0 0.0
    %165 = vmatpush1.msra.mxu0 0.0
    %166 = vmatprep.subr.mxu0 0.0
    %167 = vmatpush1.msra.mxu0 0.0
    %168 = vmatprep.subr.mxu0 0.0
    %169 = vmatpush1.msra.mxu0 0.0
    %170 = vmatprep.subr.mxu0 0.0
    %171 = vmatpush1.msra.mxu0 0.0
    %172 = vmatprep.subr.mxu0 0.0
    %173 = vmatpush1.msra.mxu0 0.0
    %174 = vmatprep.subr.mxu0 0.0
    %175 = vmatpush1.msra.mxu0 0.0
    %176 = vmatprep.subr.mxu0 0.0
    %177 = vmatpush1.msra.mxu0 0.0
    %178 = vmatprep.subr.mxu0 0.0
    %179 = vmatpush1.msra.mxu0 0.0
    %180 = vmatprep.subr.mxu0 0.0
    %181 = vmatpush1.msra.mxu0 0.0
    %182 = vmatprep.subr.mxu0 0.0
    %183 = vmatpush1.msra.mxu0 0.0
    %184 = vmatprep.subr.mxu0 0.0
    %185 = vmatpush1.msra.mxu0 0.0
    %186 = vmatprep.subr.mxu0 0.0
    %187 = vmatpush1.msra.mxu0 0.0
    %188 = vmatprep.subr.mxu0 0.0
    %189 = vmatpush1.msra.mxu0 0.0
    %190 = vmatprep.subr.mxu0 0.0
    %191 = vmatpush1.msra.mxu0 0.0
    %192 = vmatprep.mubr.f32.mxu0 0.0
    %193 = vmatmul.mubr.f32.gmra.mrb[0].mxu0 %v123
    %v194 = vpop.f32.mrb[0].mxu0
    %v195 = vadd.f32 %v119, %v194
    %v196 = vpop.f32.mrb[0].mxu0
    %197 = vmatprep.mubr.f32.mxu0 0.0
    %198 = vmatmul.mubr.f32.gmra.mrb[0].mxu0 %v126
    %v199 = vpop.f32.mrb[0].mxu0
    %v200 = vadd.f32 %v119, %v199
    %v201 = vpop.f32.mrb[0].mxu0
    %202 = vdwg.mxu0
    %v203 = vlaneseq
    %v204 = vshrl.u32 %v203, 7
    %v205 = vadd.s32 %v204, 8
    %v206 = vlaneseq
    %v207 = vand.u32 %v206, 127
    %v208 = vsub.s32 %v204, 1
    %v209 = vsub.s32 %v205, 1
    %vm210 = vcmp.eq.s32.totalorder %v207, %v208
    %vm211 = vcmp.eq.s32.totalorder %v207, %v209
    %v212 = vsel %vm210, 1, 0
    %v213 = vsel %vm211, 1, 0
    %v214 = vcvt.s32.f32 %v212
    %v215 = vcvt.s32.f32 %v213
    %vm216 = vcmp.eq.s32.totalorder %v207, %v204
    %vm217 = vcmp.eq.s32.totalorder %v207, %v205
    %v218 = vsel %vm216, 1, 0
    %v219 = vsel %vm217, 1, 0
    %v220 = vcvt.s32.f32 %v218
    %v221 = vcvt.s32.f32 %v219
    %223 = vrot.lane.b32.xlu0 %v195, 96
    %v224 = vpop.permute.xlu0 %223
    %vm226 = vcmask 64512
    %v228 = vsel %vm226, %v220, 0
    %v231 = vsel %vm226, %v221, 0
    %233 = vmatprep.subr.mxu0 0.0
    %234 = vmatpush1.msra.mxu0 %v224
    %235 = vmatprep.subr.mxu0 0.0
    %236 = vmatpush1.msra.mxu0 0.0
    %237 = vmatprep.subr.mxu0 0.0
    %238 = vmatpush1.msra.mxu0 0.0
    %239 = vmatprep.subr.mxu0 0.0
    %240 = vmatpush1.msra.mxu0 0.0
    %241 = vmatprep.subr.mxu0 0.0
    %242 = vmatpush1.msra.mxu0 0.0
    %243 = vmatprep.subr.mxu0 0.0
    %244 = vmatpush1.msra.mxu0 0.0
    %245 = vmatprep.subr.mxu0 0.0
    %246 = vmatpush1.msra.mxu0 0.0
    %247 = vmatprep.subr.mxu0 0.0
    %248 = vmatpush1.msra.mxu0 0.0
    %249 = vmatprep.subr.mxu0 0.0
    %250 = vmatpush1.msra.mxu0 0.0
    %251 = vmatprep.subr.mxu0 0.0
    %252 = vmatpush1.msra.mxu0 0.0
    %253 = vmatprep.subr.mxu0 0.0
    %254 = vmatpush1.msra.mxu0 0.0
    %255 = vmatprep.subr.mxu0 0.0
    %256 = vmatpush1.msra.mxu0 0.0
    %257 = vmatprep.subr.mxu0 0.0
    %258 = vmatpush1.msra.mxu0 0.0
    %259 = vmatprep.subr.mxu0 0.0
    %260 = vmatpush1.msra.mxu0 0.0
    %261 = vmatprep.subr.mxu0 0.0
    %262 = vmatpush1.msra.mxu0 0.0
    %263 = vmatprep.subr.mxu0 0.0
    %264 = vmatpush1.msra.mxu0 0.0
    %265 = vmatprep.subr.mxu0 0.0
    %266 = vmatpush1.msra.mxu0 0.0
    %267 = vmatprep.subr.mxu0 0.0
    %268 = vmatpush1.msra.mxu0 0.0
    %269 = vmatprep.subr.mxu0 0.0
    %270 = vmatpush1.msra.mxu0 0.0
    %271 = vmatprep.subr.mxu0 0.0
    %272 = vmatpush1.msra.mxu0 0.0
    %273 = vmatprep.subr.mxu0 0.0
    %274 = vmatpush1.msra.mxu0 0.0
    %275 = vmatprep.subr.mxu0 0.0
    %276 = vmatpush1.msra.mxu0 0.0
    %277 = vmatprep.subr.mxu0 0.0
    %278 = vmatpush1.msra.mxu0 0.0
    %279 = vmatprep.subr.mxu0 0.0
    %280 = vmatpush1.msra.mxu0 0.0
    %281 = vmatprep.subr.mxu0 0.0
    %282 = vmatpush1.msra.mxu0 0.0
    %283 = vmatprep.subr.mxu0 0.0
    %284 = vmatpush1.msra.mxu0 0.0
    %285 = vmatprep.subr.mxu0 0.0
    %286 = vmatpush1.msra.mxu0 0.0
    %287 = vmatprep.subr.mxu0 0.0
    %288 = vmatpush1.msra.mxu0 0.0
    %289 = vmatprep.subr.mxu0 0.0
    %290 = vmatpush1.msra.mxu0 0.0
    %291 = vmatprep.subr.mxu0 0.0
    %292 = vmatpush1.msra.mxu0 0.0
    %293 = vmatprep.subr.mxu0 0.0
    %294 = vmatpush1.msra.mxu0 0.0
    %295 = vmatprep.subr.mxu0 0.0
    %296 = vmatpush1.msra.mxu0 0.0
    %297 = vmatprep.mubr.f32.mxu0 0.0
    %298 = vmatmul.mubr.f32.gmra.mrb[0].mxu0 %v228
    %v299 = vpop.f32.mrb[0].mxu0
    %v300 = vadd.f32 0.0, %v299
    %v301 = vpop.f32.mrb[0].mxu0
    %302 = vmatprep.mubr.f32.mxu0 0.0
    %303 = vmatmul.mubr.f32.gmra.mrb[0].mxu0 %v231
    %v304 = vpop.f32.mrb[0].mxu0
    %v305 = vadd.f32 0.0, %v304
    %v306 = vpop.f32.mrb[0].mxu0
    %307 = vdwg.mxu0
    %v309 = vsel %vm226, %v214, 0
    %v312 = vsel %vm226, %v215, 0
    %314 = vmatprep.subr.mxu0 0.0
    %315 = vmatpush1.msra.mxu0 %v195
    %316 = vmatprep.subr.mxu0 0.0
    %317 = vmatpush1.msra.mxu0 0.0
    %318 = vmatprep.subr.mxu0 0.0
    %319 = vmatpush1.msra.mxu0 0.0
    %320 = vmatprep.subr.mxu0 0.0
    %321 = vmatpush1.msra.mxu0 0.0
    %322 = vmatprep.subr.mxu0 0.0
    %323 = vmatpush1.msra.mxu0 0.0
    %324 = vmatprep.subr.mxu0 0.0
    %325 = vmatpush1.msra.mxu0 0.0
    %326 = vmatprep.subr.mxu0 0.0
    %327 = vmatpush1.msra.mxu0 0.0
    %328 = vmatprep.subr.mxu0 0.0
    %329 = vmatpush1.msra.mxu0 0.0
    %330 = vmatprep.subr.mxu0 0.0
    %331 = vmatpush1.msra.mxu0 0.0
    %332 = vmatprep.subr.mxu0 0.0
    %333 = vmatpush1.msra.mxu0 0.0
    %334 = vmatprep.subr.mxu0 0.0
    %335 = vmatpush1.msra.mxu0 0.0
    %336 = vmatprep.subr.mxu0 0.0
    %337 = vmatpush1.msra.mxu0 0.0
    %338 = vmatprep.subr.mxu0 0.0
    %339 = vmatpush1.msra.mxu0 0.0
    %340 = vmatprep.subr.mxu0 0.0
    %341 = vmatpush1.msra.mxu0 0.0
    %342 = vmatprep.subr.mxu0 0.0
    %343 = vmatpush1.msra.mxu0 0.0
    %344 = vmatprep.subr.mxu0 0.0
    %345 = vmatpush1.msra.mxu0 0.0
    %346 = vmatprep.subr.mxu0 0.0
    %347 = vmatpush1.msra.mxu0 0.0
    %348 = vmatprep.subr.mxu0 0.0
    %349 = vmatpush1.msra.mxu0 0.0
    %350 = vmatprep.subr.mxu0 0.0
    %351 = vmatpush1.msra.mxu0 0.0
    %352 = vmatprep.subr.mxu0 0.0
    %353 = vmatpush1.msra.mxu0 0.0
    %354 = vmatprep.subr.mxu0 0.0
    %355 = vmatpush1.msra.mxu0 0.0
    %356 = vmatprep.subr.mxu0 0.0
    %357 = vmatpush1.msra.mxu0 0.0
    %358 = vmatprep.subr.mxu0 0.0
    %359 = vmatpush1.msra.mxu0 0.0
    %360 = vmatprep.subr.mxu0 0.0
    %361 = vmatpush1.msra.mxu0 0.0
    %362 = vmatprep.subr.mxu0 0.0
    %363 = vmatpush1.msra.mxu0 0.0
    %364 = vmatprep.subr.mxu0 0.0
    %365 = vmatpush1.msra.mxu0 0.0
    %366 = vmatprep.subr.mxu0 0.0
    %367 = vmatpush1.msra.mxu0 0.0
    %368 = vmatprep.subr.mxu0 0.0
    %369 = vmatpush1.msra.mxu0 0.0
    %370 = vmatprep.subr.mxu0 0.0
    %371 = vmatpush1.msra.mxu0 0.0
    %372 = vmatprep.subr.mxu0 0.0
    %373 = vmatpush1.msra.mxu0 0.0
    %374 = vmatprep.subr.mxu0 0.0
    %375 = vmatpush1.msra.mxu0 0.0
    %376 = vmatprep.subr.mxu0 0.0
    %377 = vmatpush1.msra.mxu0 0.0
    %378 = vmatprep.mubr.f32.mxu0 0.0
    %379 = vmatmul.mubr.f32.gmra.mrb[0].mxu0 %v309
    %v380 = vpop.f32.mrb[0].mxu0
    %v381 = vadd.f32 %v300, %v380
    %v382 = vpop.f32.mrb[0].mxu0
    %383 = vmatprep.mubr.f32.mxu0 0.0
    %384 = vmatmul.mubr.f32.gmra.mrb[0].mxu0 %v312
    %v385 = vpop.f32.mrb[0].mxu0
    %v386 = vadd.f32 %v305, %v385
    %v387 = vpop.f32.mrb[0].mxu0
    %388 = vdwg.mxu0
    %v389 = vadd.f32 %v381, %v111
    %v390 = vadd.f32 %v386, %v112
    %v392 = vlaneseq
    %v393 = vshrl.u32 %v392, 7
    %v394 = vsub.s32 0, %v393
    %v395 = vrot.slane %v105, %v394
    %v396 = vlaneseq
    %v397 = vshrl.u32 %v396, 7
    %v398 = vsub.s32 1, %v397
    %v399 = vrot.slane %v105, %v398
    %408 = vrot.lane.b32.xlu0 %v96, 32
    %v409 = vpop.permute.xlu0 %408
    %410 = vrot.lane.b32.xlu0 %v100, 32
    %v411 = vpop.permute.xlu0 %410
    %412 = vrot.lane.b32.xlu0 %v97, 32
    %v413 = vpop.permute.xlu0 %412
    %414 = vrot.lane.b32.xlu0 %v101, 32
    %v415 = vpop.permute.xlu0 %414
    %416 = vrot.lane.b32.xlu0 %v98, 32
    %v417 = vpop.permute.xlu0 %416
    %418 = vrot.lane.b32.xlu0 %v102, 32
    %v419 = vpop.permute.xlu0 %418
    %420 = vrot.lane.b32.xlu0 %v99, 32
    %v421 = vpop.permute.xlu0 %420
    %422 = vrot.lane.b32.xlu0 %v103, 32
    %v423 = vpop.permute.xlu0 %422
    %v424 = vsel %vm121, %v409, %v411
    %v425 = vsel %vm121, %v413, %v415
    %v426 = vsel %vm121, %v417, %v419
    %v427 = vsel %vm121, %v421, %v423
    %432 = vrot.lane.b32.xlu0 %v395, 32
    %v433 = vpop.permute.xlu0 %432
    %434 = vrot.lane.b32.xlu0 %v399, 32
    %v435 = vpop.permute.xlu0 %434
    %v436 = vsel %vm121, %v433, %v435
    %v439 = vsel %vm121, %v389, 0
    %v442 = vsel %vm121, %v390, 0
    %444 = vmatprep.subr.mxu0 0.0
    %445 = vmatpush1.msra.mxu0 %v424
    %446 = vmatprep.subr.mxu0 0.0
    %447 = vmatpush1.msra.mxu0 %v425
    %448 = vmatprep.subr.mxu0 0.0
    %449 = vmatpush1.msra.mxu0 %v426
    %450 = vmatprep.subr.mxu0 0.0
    %451 = vmatpush1.msra.mxu0 %v427
    %452 = vmatprep.subr.mxu0 0.0
    %453 = vmatpush1.msra.mxu0 0.0
    %454 = vmatprep.subr.mxu0 0.0
    %455 = vmatpush1.msra.mxu0 0.0
    %456 = vmatprep.subr.mxu0 0.0
    %457 = vmatpush1.msra.mxu0 0.0
    %458 = vmatprep.subr.mxu0 0.0
    %459 = vmatpush1.msra.mxu0 0.0
    %460 = vmatprep.subr.mxu0 0.0
    %461 = vmatpush1.msra.mxu0 0.0
    %462 = vmatprep.subr.mxu0 0.0
    %463 = vmatpush1.msra.mxu0 0.0
    %464 = vmatprep.subr.mxu0 0.0
    %465 = vmatpush1.msra.mxu0 0.0
    %466 = vmatprep.subr.mxu0 0.0
    %467 = vmatpush1.msra.mxu0 0.0
    %468 = vmatprep.subr.mxu0 0.0
    %469 = vmatpush1.msra.mxu0 0.0
    %470 = vmatprep.subr.mxu0 0.0
    %471 = vmatpush1.msra.mxu0 0.0
    %472 = vmatprep.subr.mxu0 0.0
    %473 = vmatpush1.msra.mxu0 0.0
    %474 = vmatprep.subr.mxu0 0.0
    %475 = vmatpush1.msra.mxu0 0.0
    %476 = vmatprep.subr.mxu0 0.0
    %477 = vmatpush1.msra.mxu0 0.0
    %478 = vmatprep.subr.mxu0 0.0
    %479 = vmatpush1.msra.mxu0 0.0
    %480 = vmatprep.subr.mxu0 0.0
    %481 = vmatpush1.msra.mxu0 0.0
    %482 = vmatprep.subr.mxu0 0.0
    %483 = vmatpush1.msra.mxu0 0.0
    %484 = vmatprep.subr.mxu0 0.0
    %485 = vmatpush1.msra.mxu0 0.0
    %486 = vmatprep.subr.mxu0 0.0
    %487 = vmatpush1.msra.mxu0 0.0
    %488 = vmatprep.subr.mxu0 0.0
    %489 = vmatpush1.msra.mxu0 0.0
    %490 = vmatprep.subr.mxu0 0.0
    %491 = vmatpush1.msra.mxu0 0.0
    %492 = vmatprep.subr.mxu0 0.0
    %493 = vmatpush1.msra.mxu0 0.0
    %494 = vmatprep.subr.mxu0 0.0
    %495 = vmatpush1.msra.mxu0 0.0
    %496 = vmatprep.subr.mxu0 0.0
    %497 = vmatpush1.msra.mxu0 0.0
    %498 = vmatprep.subr.mxu0 0.0
    %499 = vmatpush1.msra.mxu0 0.0
    %500 = vmatprep.subr.mxu0 0.0
    %501 = vmatpush1.msra.mxu0 0.0
    %502 = vmatprep.subr.mxu0 0.0
    %503 = vmatpush1.msra.mxu0 0.0
    %504 = vmatprep.subr.mxu0 0.0
    %505 = vmatpush1.msra.mxu0 0.0
    %506 = vmatprep.subr.mxu0 0.0
    %507 = vmatpush1.msra.mxu0 0.0
    %508 = vmatprep.mubr.f32.mxu0 0.0
    %509 = vmatmul.mubr.f32.gmra.mrb[0].mxu0 %v439
    %v510 = vpop.f32.mrb[0].mxu0
    %v511 = vadd.f32 %v436, %v510
    %v512 = vpop.f32.mrb[0].mxu0
    %513 = vmatprep.mubr.f32.mxu0 0.0
    %514 = vmatmul.mubr.f32.gmra.mrb[0].mxu0 %v442
    %v515 = vpop.f32.mrb[0].mxu0
    %v516 = vadd.f32 %v436, %v515
    %v517 = vpop.f32.mrb[0].mxu0
    %518 = vdwg.mxu0
    %521 = vrot.lane.b32.xlu0 %v511, 120
    %v522 = vpop.permute.xlu0 %521
    %523 = vrot.lane.b32.xlu0 %v516, 120
    %v524 = vpop.permute.xlu0 %523
    %525 = vrot.lane.b32.xlu0 %v511, 112
    %v526 = vpop.permute.xlu0 %525
    %527 = vrot.lane.b32.xlu0 %v516, 112
    %v528 = vpop.permute.xlu0 %527
    %529 = vrot.lane.b32.xlu0 %v511, 104
    %v530 = vpop.permute.xlu0 %529
    %531 = vrot.lane.b32.xlu0 %v516, 104
    %v532 = vpop.permute.xlu0 %531
    %533 = vrot.lane.b32.xlu0 %v195, 120
    %v534 = vpop.permute.xlu0 %533
    %535 = vrot.lane.b32.xlu0 %v195, 64
    %v536 = vpop.permute.xlu0 %535
    %v537 = vsel %vm226, %v511, 0
    %v539 = vsel %vm226, %v516, 0
    %v541 = vsel %vm226, %v536, 0
    %543 = vmatprep.subr.mxu0 0.0
    %544 = vmatpush1.xpose.msra.mxu0 %v541
    %545 = vmatprep.subr.mxu0 0.0
    %546 = vmatpush1.xpose.msra.mxu0 0.0
    %547 = vmatprep.subr.mxu0 0.0
    %548 = vmatpush1.xpose.msra.mxu0 0.0
    %549 = vmatprep.subr.mxu0 0.0
    %550 = vmatpush1.xpose.msra.mxu0 0.0
    %551 = vmatprep.subr.mxu0 0.0
    %552 = vmatpush1.xpose.msra.mxu0 0.0
    %553 = vmatprep.subr.mxu0 0.0
    %554 = vmatpush1.xpose.msra.mxu0 0.0
    %555 = vmatprep.subr.mxu0 0.0
    %556 = vmatpush1.xpose.msra.mxu0 0.0
    %557 = vmatprep.subr.mxu0 0.0
    %558 = vmatpush1.xpose.msra.mxu0 0.0
    %559 = vmatprep.subr.mxu0 0.0
    %560 = vmatpush1.xpose.msra.mxu0 0.0
    %561 = vmatprep.subr.mxu0 0.0
    %562 = vmatpush1.xpose.msra.mxu0 0.0
    %563 = vmatprep.subr.mxu0 0.0
    %564 = vmatpush1.xpose.msra.mxu0 0.0
    %565 = vmatprep.subr.mxu0 0.0
    %566 = vmatpush1.xpose.msra.mxu0 0.0
    %567 = vmatprep.subr.mxu0 0.0
    %568 = vmatpush1.xpose.msra.mxu0 0.0
    %569 = vmatprep.subr.mxu0 0.0
    %570 = vmatpush1.xpose.msra.mxu0 0.0
    %571 = vmatprep.subr.mxu0 0.0
    %572 = vmatpush1.xpose.msra.mxu0 0.0
    %573 = vmatprep.subr.mxu0 0.0
    %574 = vmatpush1.xpose.msra.mxu0 0.0
    %575 = vmatprep.subr.mxu0 0.0
    %576 = vmatpush1.xpose.msra.mxu0 0.0
    %577 = vmatprep.subr.mxu0 0.0
    %578 = vmatpush1.xpose.msra.mxu0 0.0
    %579 = vmatprep.subr.mxu0 0.0
    %580 = vmatpush1.xpose.msra.mxu0 0.0
    %581 = vmatprep.subr.mxu0 0.0
    %582 = vmatpush1.xpose.msra.mxu0 0.0
    %583 = vmatprep.subr.mxu0 0.0
    %584 = vmatpush1.xpose.msra.mxu0 0.0
    %585 = vmatprep.subr.mxu0 0.0
    %586 = vmatpush1.xpose.msra.mxu0 0.0
    %587 = vmatprep.subr.mxu0 0.0
    %588 = vmatpush1.xpose.msra.mxu0 0.0
    %589 = vmatprep.subr.mxu0 0.0
    %590 = vmatpush1.xpose.msra.mxu0 0.0
    %591 = vmatprep.subr.mxu0 0.0
    %592 = vmatpush1.xpose.msra.mxu0 0.0
    %593 = vmatprep.subr.mxu0 0.0
    %594 = vmatpush1.xpose.msra.mxu0 0.0
    %595 = vmatprep.subr.mxu0 0.0
    %596 = vmatpush1.xpose.msra.mxu0 0.0
    %597 = vmatprep.subr.mxu0 0.0
    %598 = vmatpush1.xpose.msra.mxu0 0.0
    %599 = vmatprep.subr.mxu0 0.0
    %600 = vmatpush1.xpose.msra.mxu0 0.0
    %601 = vmatprep.subr.mxu0 0.0
    %602 = vmatpush1.xpose.msra.mxu0 0.0
    %603 = vmatprep.subr.mxu0 0.0
    %604 = vmatpush1.xpose.msra.mxu0 0.0
    %605 = vmatprep.subr.mxu0 0.0
    %606 = vmatpush1.xpose.msra.mxu0 0.0
    %607 = vmatprep.mubr.f32.mxu0 0.0
    %608 = vmatmul.mubr.f32.gmra.mrb[0].mxu0 %v537
    %v609 = vpop.f32.mrb[0].mxu0
    %v610 = vadd.f32 0.0, %v609
    %v611 = vpop.f32.mrb[0].mxu0
    %612 = vmatprep.mubr.f32.mxu0 0.0
    %613 = vmatmul.mubr.f32.gmra.mrb[0].mxu0 %v539
    %v614 = vpop.f32.mrb[0].mxu0
    %v615 = vadd.f32 0.0, %v614
    %v616 = vpop.f32.mrb[0].mxu0
    %617 = vdwg.mxu0
    %v618 = vsel %vm226, %v522, 0
    %v620 = vsel %vm226, %v524, 0
    %622 = vmatprep.subr.mxu0 0.0
    %623 = vmatpush1.xpose.msra.mxu0 %v541
    %624 = vmatprep.subr.mxu0 0.0
    %625 = vmatpush1.xpose.msra.mxu0 0.0
    %626 = vmatprep.subr.mxu0 0.0
    %627 = vmatpush1.xpose.msra.mxu0 0.0
    %628 = vmatprep.subr.mxu0 0.0
    %629 = vmatpush1.xpose.msra.mxu0 0.0
    %630 = vmatprep.subr.mxu0 0.0
    %631 = vmatpush1.xpose.msra.mxu0 0.0
    %632 = vmatprep.subr.mxu0 0.0
    %633 = vmatpush1.xpose.msra.mxu0 0.0
    %634 = vmatprep.subr.mxu0 0.0
    %635 = vmatpush1.xpose.msra.mxu0 0.0
    %636 = vmatprep.subr.mxu0 0.0
    %637 = vmatpush1.xpose.msra.mxu0 0.0
    %638 = vmatprep.subr.mxu0 0.0
    %639 = vmatpush1.xpose.msra.mxu0 0.0
    %640 = vmatprep.subr.mxu0 0.0
    %641 = vmatpush1.xpose.msra.mxu0 0.0
    %642 = vmatprep.subr.mxu0 0.0
    %643 = vmatpush1.xpose.msra.mxu0 0.0
    %644 = vmatprep.subr.mxu0 0.0
    %645 = vmatpush1.xpose.msra.mxu0 0.0
    %646 = vmatprep.subr.mxu0 0.0
    %647 = vmatpush1.xpose.msra.mxu0 0.0
    %648 = vmatprep.subr.mxu0 0.0
    %649 = vmatpush1.xpose.msra.mxu0 0.0
    %650 = vmatprep.subr.mxu0 0.0
    %651 = vmatpush1.xpose.msra.mxu0 0.0
    %652 = vmatprep.subr.mxu0 0.0
    %653 = vmatpush1.xpose.msra.mxu0 0.0
    %654 = vmatprep.subr.mxu0 0.0
    %655 = vmatpush1.xpose.msra.mxu0 0.0
    %656 = vmatprep.subr.mxu0 0.0
    %657 = vmatpush1.xpose.msra.mxu0 0.0
    %658 = vmatprep.subr.mxu0 0.0
    %659 = vmatpush1.xpose.msra.mxu0 0.0
    %660 = vmatprep.subr.mxu0 0.0
    %661 = vmatpush1.xpose.msra.mxu0 0.0
    %662 = vmatprep.subr.mxu0 0.0
    %663 = vmatpush1.xpose.msra.mxu0 0.0
    %664 = vmatprep.subr.mxu0 0.0
    %665 = vmatpush1.xpose.msra.mxu0 0.0
    %666 = vmatprep.subr.mxu0 0.0
    %667 = vmatpush1.xpose.msra.mxu0 0.0
    %668 = vmatprep.subr.mxu0 0.0
    %669 = vmatpush1.xpose.msra.mxu0 0.0
    %670 = vmatprep.subr.mxu0 0.0
    %671 = vmatpush1.xpose.msra.mxu0 0.0
    %672 = vmatprep.subr.mxu0 0.0
    %673 = vmatpush1.xpose.msra.mxu0 0.0
    %674 = vmatprep.subr.mxu0 0.0
    %675 = vmatpush1.xpose.msra.mxu0 0.0
    %676 = vmatprep.subr.mxu0 0.0
    %677 = vmatpush1.xpose.msra.mxu0 0.0
    %678 = vmatprep.subr.mxu0 0.0
    %679 = vmatpush1.xpose.msra.mxu0 0.0
    %680 = vmatprep.subr.mxu0 0.0
    %681 = vmatpush1.xpose.msra.mxu0 0.0
    %682 = vmatprep.subr.mxu0 0.0
    %683 = vmatpush1.xpose.msra.mxu0 0.0
    %684 = vmatprep.subr.mxu0 0.0
    %685 = vmatpush1.xpose.msra.mxu0 0.0
    %686 = vmatprep.mubr.f32.mxu0 0.0
    %687 = vmatmul.mubr.f32.gmra.mrb[0].mxu0 %v618
    %v688 = vpop.f32.mrb[0].mxu0
    %v689 = vadd.f32 0.0, %v688
    %v690 = vpop.f32.mrb[0].mxu0
    %691 = vmatprep.mubr.f32.mxu0 0.0
    %692 = vmatmul.mubr.f32.gmra.mrb[0].mxu0 %v620
    %v693 = vpop.f32.mrb[0].mxu0
    %v694 = vadd.f32 0.0, %v693
    %v695 = vpop.f32.mrb[0].mxu0
    %696 = vdwg.mxu0
    %697 = vrot.lane.b32.xlu0 %v534, 64
    %v698 = vpop.permute.xlu0 %697
    %v699 = vsel %vm226, %v526, 0
    %v701 = vsel %vm226, %v528, 0
    %v703 = vsel %vm226, %v698, 0
    %705 = vmatprep.subr.mxu0 0.0
    %706 = vmatpush1.xpose.msra.mxu0 %v703
    %707 = vmatprep.subr.mxu0 0.0
    %708 = vmatpush1.xpose.msra.mxu0 0.0
    %709 = vmatprep.subr.mxu0 0.0
    %710 = vmatpush1.xpose.msra.mxu0 0.0
    %711 = vmatprep.subr.mxu0 0.0
    %712 = vmatpush1.xpose.msra.mxu0 0.0
    %713 = vmatprep.subr.mxu0 0.0
    %714 = vmatpush1.xpose.msra.mxu0 0.0
    %715 = vmatprep.subr.mxu0 0.0
    %716 = vmatpush1.xpose.msra.mxu0 0.0
    %717 = vmatprep.subr.mxu0 0.0
    %718 = vmatpush1.xpose.msra.mxu0 0.0
    %719 = vmatprep.subr.mxu0 0.0
    %720 = vmatpush1.xpose.msra.mxu0 0.0
    %721 = vmatprep.subr.mxu0 0.0
    %722 = vmatpush1.xpose.msra.mxu0 0.0
    %723 = vmatprep.subr.mxu0 0.0
    %724 = vmatpush1.xpose.msra.mxu0 0.0
    %725 = vmatprep.subr.mxu0 0.0
    %726 = vmatpush1.xpose.msra.mxu0 0.0
    %727 = vmatprep.subr.mxu0 0.0
    %728 = vmatpush1.xpose.msra.mxu0 0.0
    %729 = vmatprep.subr.mxu0 0.0
    %730 = vmatpush1.xpose.msra.mxu0 0.0
    %731 = vmatprep.subr.mxu0 0.0
    %732 = vmatpush1.xpose.msra.mxu0 0.0
    %733 = vmatprep.subr.mxu0 0.0
    %734 = vmatpush1.xpose.msra.mxu0 0.0
    %735 = vmatprep.subr.mxu0 0.0
    %736 = vmatpush1.xpose.msra.mxu0 0.0
    %737 = vmatprep.subr.mxu0 0.0
    %738 = vmatpush1.xpose.msra.mxu0 0.0
    %739 = vmatprep.subr.mxu0 0.0
    %740 = vmatpush1.xpose.msra.mxu0 0.0
    %741 = vmatprep.subr.mxu0 0.0
    %742 = vmatpush1.xpose.msra.mxu0 0.0
    %743 = vmatprep.subr.mxu0 0.0
    %744 = vmatpush1.xpose.msra.mxu0 0.0
    %745 = vmatprep.subr.mxu0 0.0
    %746 = vmatpush1.xpose.msra.mxu0 0.0
    %747 = vmatprep.subr.mxu0 0.0
    %748 = vmatpush1.xpose.msra.mxu0 0.0
    %749 = vmatprep.subr.mxu0 0.0
    %750 = vmatpush1.xpose.msra.mxu0 0.0
    %751 = vmatprep.subr.mxu0 0.0
    %752 = vmatpush1.xpose.msra.mxu0 0.0
    %753 = vmatprep.subr.mxu0 0.0
    %754 = vmatpush1.xpose.msra.mxu0 0.0
    %755 = vmatprep.subr.mxu0 0.0
    %756 = vmatpush1.xpose.msra.mxu0 0.0
    %757 = vmatprep.subr.mxu0 0.0
    %758 = vmatpush1.xpose.msra.mxu0 0.0
    %759 = vmatprep.subr.mxu0 0.0
    %760 = vmatpush1.xpose.msra.mxu0 0.0
    %761 = vmatprep.subr.mxu0 0.0
    %762 = vmatpush1.xpose.msra.mxu0 0.0
    %763 = vmatprep.subr.mxu0 0.0
    %764 = vmatpush1.xpose.msra.mxu0 0.0
    %765 = vmatprep.subr.mxu0 0.0
    %766 = vmatpush1.xpose.msra.mxu0 0.0
    %767 = vmatprep.subr.mxu0 0.0
    %768 = vmatpush1.xpose.msra.mxu0 0.0
    %769 = vmatprep.mubr.f32.mxu0 0.0
    %770 = vmatmul.mubr.f32.gmra.mrb[0].mxu0 %v699
    %v771 = vpop.f32.mrb[0].mxu0
    %v772 = vadd.f32 0.0, %v771
    %v773 = vpop.f32.mrb[0].mxu0
    %774 = vmatprep.mubr.f32.mxu0 0.0
    %775 = vmatmul.mubr.f32.gmra.mrb[0].mxu0 %v701
    %v776 = vpop.f32.mrb[0].mxu0
    %v777 = vadd.f32 0.0, %v776
    %v778 = vpop.f32.mrb[0].mxu0
    %779 = vdwg.mxu0
    %v780 = vsel %vm226, %v530, 0
    %v782 = vsel %vm226, %v532, 0
    %784 = vmatprep.subr.mxu0 0.0
    %785 = vmatpush1.xpose.msra.mxu0 %v703
    %786 = vmatprep.subr.mxu0 0.0
    %787 = vmatpush1.xpose.msra.mxu0 0.0
    %788 = vmatprep.subr.mxu0 0.0
    %789 = vmatpush1.xpose.msra.mxu0 0.0
    %790 = vmatprep.subr.mxu0 0.0
    %791 = vmatpush1.xpose.msra.mxu0 0.0
    %792 = vmatprep.subr.mxu0 0.0
    %793 = vmatpush1.xpose.msra.mxu0 0.0
    %794 = vmatprep.subr.mxu0 0.0
    %795 = vmatpush1.xpose.msra.mxu0 0.0
    %796 = vmatprep.subr.mxu0 0.0
    %797 = vmatpush1.xpose.msra.mxu0 0.0
    %798 = vmatprep.subr.mxu0 0.0
    %799 = vmatpush1.xpose.msra.mxu0 0.0
    %800 = vmatprep.subr.mxu0 0.0
    %801 = vmatpush1.xpose.msra.mxu0 0.0
    %802 = vmatprep.subr.mxu0 0.0
    %803 = vmatpush1.xpose.msra.mxu0 0.0
    %804 = vmatprep.subr.mxu0 0.0
    %805 = vmatpush1.xpose.msra.mxu0 0.0
    %806 = vmatprep.subr.mxu0 0.0
    %807 = vmatpush1.xpose.msra.mxu0 0.0
    %808 = vmatprep.subr.mxu0 0.0
    %809 = vmatpush1.xpose.msra.mxu0 0.0
    %810 = vmatprep.subr.mxu0 0.0
    %811 = vmatpush1.xpose.msra.mxu0 0.0
    %812 = vmatprep.subr.mxu0 0.0
    %813 = vmatpush1.xpose.msra.mxu0 0.0
    %814 = vmatprep.subr.mxu0 0.0
    %815 = vmatpush1.xpose.msra.mxu0 0.0
    %816 = vmatprep.subr.mxu0 0.0
    %817 = vmatpush1.xpose.msra.mxu0 0.0
    %818 = vmatprep.subr.mxu0 0.0
    %819 = vmatpush1.xpose.msra.mxu0 0.0
    %820 = vmatprep.subr.mxu0 0.0
    %821 = vmatpush1.xpose.msra.mxu0 0.0
    %822 = vmatprep.subr.mxu0 0.0
    %823 = vmatpush1.xpose.msra.mxu0 0.0
    %824 = vmatprep.subr.mxu0 0.0
    %825 = vmatpush1.xpose.msra.mxu0 0.0
    %826 = vmatprep.subr.mxu0 0.0
    %827 = vmatpush1.xpose.msra.mxu0 0.0
    %828 = vmatprep.subr.mxu0 0.0
    %829 = vmatpush1.xpose.msra.mxu0 0.0
    %830 = vmatprep.subr.mxu0 0.0
    %831 = vmatpush1.xpose.msra.mxu0 0.0
    %832 = vmatprep.subr.mxu0 0.0
    %833 = vmatpush1.xpose.msra.mxu0 0.0
    %834 = vmatprep.subr.mxu0 0.0
    %835 = vmatpush1.xpose.msra.mxu0 0.0
    %836 = vmatprep.subr.mxu0 0.0
    %837 = vmatpush1.xpose.msra.mxu0 0.0
    %838 = vmatprep.subr.mxu0 0.0
    %839 = vmatpush1.xpose.msra.mxu0 0.0
    %840 = vmatprep.subr.mxu0 0.0
    %841 = vmatpush1.xpose.msra.mxu0 0.0
    %842 = vmatprep.subr.mxu0 0.0
    %843 = vmatpush1.xpose.msra.mxu0 0.0
    %844 = vmatprep.subr.mxu0 0.0
    %845 = vmatpush1.xpose.msra.mxu0 0.0
    %846 = vmatprep.subr.mxu0 0.0
    %847 = vmatpush1.xpose.msra.mxu0 0.0
    %848 = vmatprep.mubr.f32.mxu0 0.0
    %849 = vmatmul.mubr.f32.gmra.mrb[0].mxu0 %v780
    %v850 = vpop.f32.mrb[0].mxu0
    %v851 = vadd.f32 0.0, %v850
    %v852 = vpop.f32.mrb[0].mxu0
    %853 = vmatprep.mubr.f32.mxu0 0.0
    %854 = vmatmul.mubr.f32.gmra.mrb[0].mxu0 %v782
    %v855 = vpop.f32.mrb[0].mxu0
    %v856 = vadd.f32 0.0, %v855
    %v857 = vpop.f32.mrb[0].mxu0
    %858 = vdwg.mxu0
    %v859 = vsel %vm226, %v610, -inf
    %860 = vmax.xlane.f32.xlu0 %v859
    %v861 = vpop.xlane.xlu0 %860
    %vm862 = vcmask 57344
    %v863 = vsel %vm862, %v615, -inf
    %864 = vmax.xlane.f32.xlu0 %v863
    %v865 = vpop.xlane.xlu0 %864
    %v866 = vsel %vm226, %v689, -inf
    %867 = vmax.xlane.f32.xlu0 %v866
    %v868 = vpop.xlane.xlu0 %867
    %v869 = vsel %vm862, %v694, -inf
    %870 = vmax.xlane.f32.xlu0 %v869
    %v871 = vpop.xlane.xlu0 %870
    %v872 = vsel %vm226, %v772, -inf
    %873 = vmax.xlane.f32.xlu0 %v872
    %v874 = vpop.xlane.xlu0 %873
    %v875 = vsel %vm862, %v777, -inf
    %876 = vmax.xlane.f32.xlu0 %v875
    %v877 = vpop.xlane.xlu0 %876
    %v878 = vsel %vm226, %v851, -inf
    %879 = vmax.xlane.f32.xlu0 %v878
    %v880 = vpop.xlane.xlu0 %879
    %v881 = vsel %vm862, %v856, -inf
    %882 = vmax.xlane.f32.xlu0 %v881
    %v883 = vpop.xlane.xlu0 %882
    %v884 = vsub.f32 %v610, %v861
    %v885 = vsub.f32 %v615, %v865
    %v886 = vsub.f32 %v689, %v868
    %v887 = vsub.f32 %v694, %v871
    %v888 = vsub.f32 %v772, %v874
    %v889 = vsub.f32 %v777, %v877
    %v890 = vsub.f32 %v851, %v880
    %v891 = vsub.f32 %v856, %v883
    %v892 = vmul.f32 %v884, 1.442695
    %v893 = vpow.pop %v892
    %v894 = vmul.f32 %v885, 1.442695
    %v895 = vpow.pop %v894
    %v896 = vmul.f32 %v886, 1.442695
    %v897 = vpow.pop %v896
    %v898 = vmul.f32 %v887, 1.442695
    %v899 = vpow.pop %v898
    %v900 = vmul.f32 %v888, 1.442695
    %v901 = vpow.pop %v900
    %v902 = vmul.f32 %v889, 1.442695
    %v903 = vpow.pop %v902
    %v904 = vmul.f32 %v890, 1.442695
    %v905 = vpow.pop %v904
    %v906 = vmul.f32 %v891, 1.442695
    %v907 = vpow.pop %v906
    %v908 = vsel %vm226, %v893, 0.0
    %909 = vadd.xlane.f32.xlu0 %v908
    %v910 = vpop.xlane.xlu0 %909
    %v911 = vsel %vm862, %v895, 0.0
    %912 = vadd.xlane.f32.xlu0 %v911
    %v913 = vpop.xlane.xlu0 %912
    %v914 = vsel %vm226, %v897, 0.0
    %915 = vadd.xlane.f32.xlu0 %v914
    %v916 = vpop.xlane.xlu0 %915
    %v917 = vsel %vm862, %v899, 0.0
    %918 = vadd.xlane.f32.xlu0 %v917
    %v919 = vpop.xlane.xlu0 %918
    %v920 = vsel %vm226, %v901, 0.0
    %921 = vadd.xlane.f32.xlu0 %v920
    %v922 = vpop.xlane.xlu0 %921
    %v923 = vsel %vm862, %v903, 0.0
    %924 = vadd.xlane.f32.xlu0 %v923
    %v925 = vpop.xlane.xlu0 %924
    %v926 = vsel %vm226, %v905, 0.0
    %927 = vadd.xlane.f32.xlu0 %v926
    %v928 = vpop.xlane.xlu0 %927
    %v929 = vsel %vm862, %v907, 0.0
    %930 = vadd.xlane.f32.xlu0 %v929
    %v931 = vpop.xlane.xlu0 %930
    %v932 = vrcp.pop %v910
    %v933 = vrcp.pop %v913
    %v934 = vrcp.pop %v916
    %v935 = vrcp.pop %v919
    %v936 = vrcp.pop %v922
    %v937 = vrcp.pop %v925
    %v938 = vrcp.pop %v928
    %v939 = vrcp.pop %v931
    %v940 = vmul.f32 %v893, %v932
    %v941 = vmul.f32 %v895, %v933
    %v942 = vmul.f32 %v897, %v934
    %v943 = vmul.f32 %v899, %v935
    %v944 = vmul.f32 %v901, %v936
    %v945 = vmul.f32 %v903, %v937
    %v946 = vmul.f32 %v905, %v938
    %v947 = vmul.f32 %v907, %v939
    %948 = vrot.lane.b32.xlu0 %v195, 48
    %v949 = vpop.permute.xlu0 %948
    %v952 = vsel %vm226, %v940, 0
    %v955 = vsel %vm226, %v941, 0
    %957 = vmatprep.subr.mxu0 0.0
    %958 = vmatpush1.msra.mxu0 %v949
    %959 = vmatprep.subr.mxu0 0.0
    %960 = vmatpush1.msra.mxu0 0.0
    %961 = vmatprep.subr.mxu0 0.0
    %962 = vmatpush1.msra.mxu0 0.0
    %963 = vmatprep.subr.mxu0 0.0
    %964 = vmatpush1.msra.mxu0 0.0
    %965 = vmatprep.subr.mxu0 0.0
    %966 = vmatpush1.msra.mxu0 0.0
    %967 = vmatprep.subr.mxu0 0.0
    %968 = vmatpush1.msra.mxu0 0.0
    %969 = vmatprep.subr.mxu0 0.0
    %970 = vmatpush1.msra.mxu0 0.0
    %971 = vmatprep.subr.mxu0 0.0
    %972 = vmatpush1.msra.mxu0 0.0
    %973 = vmatprep.subr.mxu0 0.0
    %974 = vmatpush1.msra.mxu0 0.0
    %975 = vmatprep.subr.mxu0 0.0
    %976 = vmatpush1.msra.mxu0 0.0
    %977 = vmatprep.subr.mxu0 0.0
    %978 = vmatpush1.msra.mxu0 0.0
    %979 = vmatprep.subr.mxu0 0.0
    %980 = vmatpush1.msra.mxu0 0.0
    %981 = vmatprep.subr.mxu0 0.0
    %982 = vmatpush1.msra.mxu0 0.0
    %983 = vmatprep.subr.mxu0 0.0
    %984 = vmatpush1.msra.mxu0 0.0
    %985 = vmatprep.subr.mxu0 0.0
    %986 = vmatpush1.msra.mxu0 0.0
    %987 = vmatprep.subr.mxu0 0.0
    %988 = vmatpush1.msra.mxu0 0.0
    %989 = vmatprep.subr.mxu0 0.0
    %990 = vmatpush1.msra.mxu0 0.0
    %991 = vmatprep.subr.mxu0 0.0
    %992 = vmatpush1.msra.mxu0 0.0
    %993 = vmatprep.subr.mxu0 0.0
    %994 = vmatpush1.msra.mxu0 0.0
    %995 = vmatprep.subr.mxu0 0.0
    %996 = vmatpush1.msra.mxu0 0.0
    %997 = vmatprep.subr.mxu0 0.0
    %998 = vmatpush1.msra.mxu0 0.0
    %999 = vmatprep.subr.mxu0 0.0
    %1000 = vmatpush1.msra.mxu0 0.0
    %1001 = vmatprep.subr.mxu0 0.0
    %1002 = vmatpush1.msra.mxu0 0.0
    %1003 = vmatprep.subr.mxu0 0.0
    %1004 = vmatpush1.msra.mxu0 0.0
    %1005 = vmatprep.subr.mxu0 0.0
    %1006 = vmatpush1.msra.mxu0 0.0
    %1007 = vmatprep.subr.mxu0 0.0
    %1008 = vmatpush1.msra.mxu0 0.0
    %1009 = vmatprep.subr.mxu0 0.0
    %1010 = vmatpush1.msra.mxu0 0.0
    %1011 = vmatprep.subr.mxu0 0.0
    %1012 = vmatpush1.msra.mxu0 0.0
    %1013 = vmatprep.subr.mxu0 0.0
    %1014 = vmatpush1.msra.mxu0 0.0
    %1015 = vmatprep.subr.mxu0 0.0
    %1016 = vmatpush1.msra.mxu0 0.0
    %1017 = vmatprep.subr.mxu0 0.0
    %1018 = vmatpush1.msra.mxu0 0.0
    %1019 = vmatprep.subr.mxu0 0.0
    %1020 = vmatpush1.msra.mxu0 0.0
    %1021 = vmatprep.mubr.f32.mxu0 0.0
    %1022 = vmatmul.mubr.f32.gmra.mrb[0].mxu0 %v952
    %v1023 = vpop.f32.mrb[0].mxu0
    %v1024 = vadd.f32 0.0, %v1023
    %v1025 = vpop.f32.mrb[0].mxu0
    %1026 = vmatprep.mubr.f32.mxu0 0.0
    %1027 = vmatmul.mubr.f32.gmra.mrb[0].mxu0 %v955
    %v1028 = vpop.f32.mrb[0].mxu0
    %v1029 = vadd.f32 0.0, %v1028
    %v1030 = vpop.f32.mrb[0].mxu0
    %1031 = vdwg.mxu0
    %v1033 = vsel %vm226, %v942, 0
    %v1036 = vsel %vm226, %v943, 0
    %1038 = vmatprep.subr.mxu0 0.0
    %1039 = vmatpush1.msra.mxu0 %v949
    %1040 = vmatprep.subr.mxu0 0.0
    %1041 = vmatpush1.msra.mxu0 0.0
    %1042 = vmatprep.subr.mxu0 0.0
    %1043 = vmatpush1.msra.mxu0 0.0
    %1044 = vmatprep.subr.mxu0 0.0
    %1045 = vmatpush1.msra.mxu0 0.0
    %1046 = vmatprep.subr.mxu0 0.0
    %1047 = vmatpush1.msra.mxu0 0.0
    %1048 = vmatprep.subr.mxu0 0.0
    %1049 = vmatpush1.msra.mxu0 0.0
    %1050 = vmatprep.subr.mxu0 0.0
    %1051 = vmatpush1.msra.mxu0 0.0
    %1052 = vmatprep.subr.mxu0 0.0
    %1053 = vmatpush1.msra.mxu0 0.0
    %1054 = vmatprep.subr.mxu0 0.0
    %1055 = vmatpush1.msra.mxu0 0.0
    %1056 = vmatprep.subr.mxu0 0.0
    %1057 = vmatpush1.msra.mxu0 0.0
    %1058 = vmatprep.subr.mxu0 0.0
    %1059 = vmatpush1.msra.mxu0 0.0
    %1060 = vmatprep.subr.mxu0 0.0
    %1061 = vmatpush1.msra.mxu0 0.0
    %1062 = vmatprep.subr.mxu0 0.0
    %1063 = vmatpush1.msra.mxu0 0.0
    %1064 = vmatprep.subr.mxu0 0.0
    %1065 = vmatpush1.msra.mxu0 0.0
    %1066 = vmatprep.subr.mxu0 0.0
    %1067 = vmatpush1.msra.mxu0 0.0
    %1068 = vmatprep.subr.mxu0 0.0
    %1069 = vmatpush1.msra.mxu0 0.0
    %1070 = vmatprep.subr.mxu0 0.0
    %1071 = vmatpush1.msra.mxu0 0.0
    %1072 = vmatprep.subr.mxu0 0.0
    %1073 = vmatpush1.msra.mxu0 0.0
    %1074 = vmatprep.subr.mxu0 0.0
    %1075 = vmatpush1.msra.mxu0 0.0
    %1076 = vmatprep.subr.mxu0 0.0
    %1077 = vmatpush1.msra.mxu0 0.0
    %1078 = vmatprep.subr.mxu0 0.0
    %1079 = vmatpush1.msra.mxu0 0.0
    %1080 = vmatprep.subr.mxu0 0.0
    %1081 = vmatpush1.msra.mxu0 0.0
    %1082 = vmatprep.subr.mxu0 0.0
    %1083 = vmatpush1.msra.mxu0 0.0
    %1084 = vmatprep.subr.mxu0 0.0
    %1085 = vmatpush1.msra.mxu0 0.0
    %1086 = vmatprep.subr.mxu0 0.0
    %1087 = vmatpush1.msra.mxu0 0.0
    %1088 = vmatprep.subr.mxu0 0.0
    %1089 = vmatpush1.msra.mxu0 0.0
    %1090 = vmatprep.subr.mxu0 0.0
    %1091 = vmatpush1.msra.mxu0 0.0
    %1092 = vmatprep.subr.mxu0 0.0
    %1093 = vmatpush1.msra.mxu0 0.0
    %1094 = vmatprep.subr.mxu0 0.0
    %1095 = vmatpush1.msra.mxu0 0.0
    %1096 = vmatprep.subr.mxu0 0.0
    %1097 = vmatpush1.msra.mxu0 0.0
    %1098 = vmatprep.subr.mxu0 0.0
    %1099 = vmatpush1.msra.mxu0 0.0
    %1100 = vmatprep.subr.mxu0 0.0
    %1101 = vmatpush1.msra.mxu0 0.0
    %1102 = vmatprep.mubr.f32.mxu0 0.0
    %1103 = vmatmul.mubr.f32.gmra.mrb[0].mxu0 %v1033
    %v1104 = vpop.f32.mrb[0].mxu0
    %v1105 = vadd.f32 0.0, %v1104
    %v1106 = vpop.f32.mrb[0].mxu0
    %1107 = vmatprep.mubr.f32.mxu0 0.0
    %1108 = vmatmul.mubr.f32.gmra.mrb[0].mxu0 %v1036
    %v1109 = vpop.f32.mrb[0].mxu0
    %v1110 = vadd.f32 0.0, %v1109
    %v1111 = vpop.f32.mrb[0].mxu0
    %1112 = vdwg.mxu0
    %1113 = vrot.lane.b32.xlu0 %v534, 48
    %v1114 = vpop.permute.xlu0 %1113
    %v1117 = vsel %vm226, %v944, 0
    %v1120 = vsel %vm226, %v945, 0
    %1122 = vmatprep.subr.mxu0 0.0
    %1123 = vmatpush1.msra.mxu0 %v1114
    %1124 = vmatprep.subr.mxu0 0.0
    %1125 = vmatpush1.msra.mxu0 0.0
    %1126 = vmatprep.subr.mxu0 0.0
    %1127 = vmatpush1.msra.mxu0 0.0
    %1128 = vmatprep.subr.mxu0 0.0
    %1129 = vmatpush1.msra.mxu0 0.0
    %1130 = vmatprep.subr.mxu0 0.0
    %1131 = vmatpush1.msra.mxu0 0.0
    %1132 = vmatprep.subr.mxu0 0.0
    %1133 = vmatpush1.msra.mxu0 0.0
    %1134 = vmatprep.subr.mxu0 0.0
    %1135 = vmatpush1.msra.mxu0 0.0
    %1136 = vmatprep.subr.mxu0 0.0
    %1137 = vmatpush1.msra.mxu0 0.0
    %1138 = vmatprep.subr.mxu0 0.0
    %1139 = vmatpush1.msra.mxu0 0.0
    %1140 = vmatprep.subr.mxu0 0.0
    %1141 = vmatpush1.msra.mxu0 0.0
    %1142 = vmatprep.subr.mxu0 0.0
    %1143 = vmatpush1.msra.mxu0 0.0
    %1144 = vmatprep.subr.mxu0 0.0
    %1145 = vmatpush1.msra.mxu0 0.0
    %1146 = vmatprep.subr.mxu0 0.0
    %1147 = vmatpush1.msra.mxu0 0.0
    %1148 = vmatprep.subr.mxu0 0.0
    %1149 = vmatpush1.msra.mxu0 0.0
    %1150 = vmatprep.subr.mxu0 0.0
    %1151 = vmatpush1.msra.mxu0 0.0
    %1152 = vmatprep.subr.mxu0 0.0
    %1153 = vmatpush1.msra.mxu0 0.0
    %1154 = vmatprep.subr.mxu0 0.0
    %1155 = vmatpush1.msra.mxu0 0.0
    %1156 = vmatprep.subr.mxu0 0.0
    %1157 = vmatpush1.msra.mxu0 0.0
    %1158 = vmatprep.subr.mxu0 0.0
    %1159 = vmatpush1.msra.mxu0 0.0
    %1160 = vmatprep.subr.mxu0 0.0
    %1161 = vmatpush1.msra.mxu0 0.0
    %1162 = vmatprep.subr.mxu0 0.0
    %1163 = vmatpush1.msra.mxu0 0.0
    %1164 = vmatprep.subr.mxu0 0.0
    %1165 = vmatpush1.msra.mxu0 0.0
    %1166 = vmatprep.subr.mxu0 0.0
    %1167 = vmatpush1.msra.mxu0 0.0
    %1168 = vmatprep.subr.mxu0 0.0
    %1169 = vmatpush1.msra.mxu0 0.0
    %1170 = vmatprep.subr.mxu0 0.0
    %1171 = vmatpush1.msra.mxu0 0.0
    %1172 = vmatprep.subr.mxu0 0.0
    %1173 = vmatpush1.msra.mxu0 0.0
    %1174 = vmatprep.subr.mxu0 0.0
    %1175 = vmatpush1.msra.mxu0 0.0
    %1176 = vmatprep.subr.mxu0 0.0
    %1177 = vmatpush1.msra.mxu0 0.0
    %1178 = vmatprep.subr.mxu0 0.0
    %1179 = vmatpush1.msra.mxu0 0.0
    %1180 = vmatprep.subr.mxu0 0.0
    %1181 = vmatpush1.msra.mxu0 0.0
    %1182 = vmatprep.subr.mxu0 0.0
    %1183 = vmatpush1.msra.mxu0 0.0
    %1184 = vmatprep.subr.mxu0 0.0
    %1185 = vmatpush1.msra.mxu0 0.0
    %1186 = vmatprep.mubr.f32.mxu0 0.0
    %1187 = vmatmul.mubr.f32.gmra.mrb[0].mxu0 %v1117
    %v1188 = vpop.f32.mrb[0].mxu0
    %v1189 = vadd.f32 0.0, %v1188
    %v1190 = vpop.f32.mrb[0].mxu0
    %1191 = vmatprep.mubr.f32.mxu0 0.0
    %1192 = vmatmul.mubr.f32.gmra.mrb[0].mxu0 %v1120
    %v1193 = vpop.f32.mrb[0].mxu0
    %v1194 = vadd.f32 0.0, %v1193
    %v1195 = vpop.f32.mrb[0].mxu0
    %1196 = vdwg.mxu0
    %v1198 = vsel %vm226, %v946, 0
    %v1201 = vsel %vm226, %v947, 0
    %1203 = vmatprep.subr.mxu0 0.0
    %1204 = vmatpush1.msra.mxu0 %v1114
    %1205 = vmatprep.subr.mxu0 0.0
    %1206 = vmatpush1.msra.mxu0 0.0
    %1207 = vmatprep.subr.mxu0 0.0
    %1208 = vmatpush1.msra.mxu0 0.0
    %1209 = vmatprep.subr.mxu0 0.0
    %1210 = vmatpush1.msra.mxu0 0.0
    %1211 = vmatprep.subr.mxu0 0.0
    %1212 = vmatpush1.msra.mxu0 0.0
    %1213 = vmatprep.subr.mxu0 0.0
    %1214 = vmatpush1.msra.mxu0 0.0
    %1215 = vmatprep.subr.mxu0 0.0
    %1216 = vmatpush1.msra.mxu0 0.0
    %1217 = vmatprep.subr.mxu0 0.0
    %1218 = vmatpush1.msra.mxu0 0.0
    %1219 = vmatprep.subr.mxu0 0.0
    %1220 = vmatpush1.msra.mxu0 0.0
    %1221 = vmatprep.subr.mxu0 0.0
    %1222 = vmatpush1.msra.mxu0 0.0
    %1223 = vmatprep.subr.mxu0 0.0
    %1224 = vmatpush1.msra.mxu0 0.0
    %1225 = vmatprep.subr.mxu0 0.0
    %1226 = vmatpush1.msra.mxu0 0.0
    %1227 = vmatprep.subr.mxu0 0.0
    %1228 = vmatpush1.msra.mxu0 0.0
    %1229 = vmatprep.subr.mxu0 0.0
    %1230 = vmatpush1.msra.mxu0 0.0
    %1231 = vmatprep.subr.mxu0 0.0
    %1232 = vmatpush1.msra.mxu0 0.0
    %1233 = vmatprep.subr.mxu0 0.0
    %1234 = vmatpush1.msra.mxu0 0.0
    %1235 = vmatprep.subr.mxu0 0.0
    %1236 = vmatpush1.msra.mxu0 0.0
    %1237 = vmatprep.subr.mxu0 0.0
    %1238 = vmatpush1.msra.mxu0 0.0
    %1239 = vmatprep.subr.mxu0 0.0
    %1240 = vmatpush1.msra.mxu0 0.0
    %1241 = vmatprep.subr.mxu0 0.0
    %1242 = vmatpush1.msra.mxu0 0.0
    %1243 = vmatprep.subr.mxu0 0.0
    %1244 = vmatpush1.msra.mxu0 0.0
    %1245 = vmatprep.subr.mxu0 0.0
    %1246 = vmatpush1.msra.mxu0 0.0
    %1247 = vmatprep.subr.mxu0 0.0
    %1248 = vmatpush1.msra.mxu0 0.0
    %1249 = vmatprep.subr.mxu0 0.0
    %1250 = vmatpush1.msra.mxu0 0.0
    %1251 = vmatprep.subr.mxu0 0.0
    %1252 = vmatpush1.msra.mxu0 0.0
    %1253 = vmatprep.subr.mxu0 0.0
    %1254 = vmatpush1.msra.mxu0 0.0
    %1255 = vmatprep.subr.mxu0 0.0
    %1256 = vmatpush1.msra.mxu0 0.0
    %1257 = vmatprep.subr.mxu0 0.0
    %1258 = vmatpush1.msra.mxu0 0.0
    %1259 = vmatprep.subr.mxu0 0.0
    %1260 = vmatpush1.msra.mxu0 0.0
    %1261 = vmatprep.subr.mxu0 0.0
    %1262 = vmatpush1.msra.mxu0 0.0
    %1263 = vmatprep.subr.mxu0 0.0
    %1264 = vmatpush1.msra.mxu0 0.0
    %1265 = vmatprep.subr.mxu0 0.0
    %1266 = vmatpush1.msra.mxu0 0.0
    %1267 = vmatprep.mubr.f32.mxu0 0.0
    %1268 = vmatmul.mubr.f32.gmra.mrb[0].mxu0 %v1198
    %v1269 = vpop.f32.mrb[0].mxu0
    %v1270 = vadd.f32 0.0, %v1269
    %v1271 = vpop.f32.mrb[0].mxu0
    %1272 = vmatprep.mubr.f32.mxu0 0.0
    %1273 = vmatmul.mubr.f32.gmra.mrb[0].mxu0 %v1201
    %v1274 = vpop.f32.mrb[0].mxu0
    %v1275 = vadd.f32 0.0, %v1274
    %v1276 = vpop.f32.mrb[0].mxu0
    %1277 = vdwg.mxu0
    %1280 = vrot.lane.b32.xlu0 %v1105, 8
    %v1281 = vpop.permute.xlu0 %1280
    %1282 = vrot.lane.b32.xlu0 %v1110, 8
    %v1283 = vpop.permute.xlu0 %1282
    %1288 = vrot.lane.b32.xlu0 %v1189, 16
    %v1289 = vpop.permute.xlu0 %1288
    %1290 = vrot.lane.b32.xlu0 %v1194, 16
    %v1291 = vpop.permute.xlu0 %1290
    %1296 = vrot.lane.b32.xlu0 %v1270, 24
    %v1297 = vpop.permute.xlu0 %1296
    %1298 = vrot.lane.b32.xlu0 %v1275, 24
    %v1299 = vpop.permute.xlu0 %1298
    %v1302 = vsel %vm226, %v1024, %v1281
    %v1303 = vsel %vm226, %v1029, %v1283
    %vm1304 = vcmask 130048
    %v1305 = vsel %vm1304, %v1302, %v1289
    %v1306 = vsel %vm1304, %v1303, %v1291
    %vm1307 = vcmask 195584
    %v1308 = vsel %vm1307, %v1305, %v1297
    %v1309 = vsel %vm1307, %v1306, %v1299
    %1310 = vrot.lane.b32.xlu0 %v100, 96
    %v1311 = vpop.permute.xlu0 %1310
    %1312 = vrot.lane.b32.xlu0 %v101, 96
    %v1313 = vpop.permute.xlu0 %1312
    %1314 = vrot.lane.b32.xlu0 %v102, 96
    %v1315 = vpop.permute.xlu0 %1314
    %1316 = vrot.lane.b32.xlu0 %v103, 96
    %v1317 = vpop.permute.xlu0 %1316
    %v1323 = vsel %vm121, %v1308, 0
    %v1326 = vsel %vm121, %v1309, 0
    %1328 = vmatprep.subr.mxu0 0.0
    %1329 = vmatpush1.msra.mxu0 %v1311
    %1330 = vmatprep.subr.mxu0 0.0
    %1331 = vmatpush1.msra.mxu0 %v1313
    %1332 = vmatprep.subr.mxu0 0.0
    %1333 = vmatpush1.msra.mxu0 %v1315
    %1334 = vmatprep.subr.mxu0 0.0
    %1335 = vmatpush1.msra.mxu0 %v1317
    %1336 = vmatprep.subr.mxu0 0.0
    %1337 = vmatpush1.msra.mxu0 0.0
    %1338 = vmatprep.subr.mxu0 0.0
    %1339 = vmatpush1.msra.mxu0 0.0
    %1340 = vmatprep.subr.mxu0 0.0
    %1341 = vmatpush1.msra.mxu0 0.0
    %1342 = vmatprep.subr.mxu0 0.0
    %1343 = vmatpush1.msra.mxu0 0.0
    %1344 = vmatprep.subr.mxu0 0.0
    %1345 = vmatpush1.msra.mxu0 0.0
    %1346 = vmatprep.subr.mxu0 0.0
    %1347 = vmatpush1.msra.mxu0 0.0
    %1348 = vmatprep.subr.mxu0 0.0
    %1349 = vmatpush1.msra.mxu0 0.0
    %1350 = vmatprep.subr.mxu0 0.0
    %1351 = vmatpush1.msra.mxu0 0.0
    %1352 = vmatprep.subr.mxu0 0.0
    %1353 = vmatpush1.msra.mxu0 0.0
    %1354 = vmatprep.subr.mxu0 0.0
    %1355 = vmatpush1.msra.mxu0 0.0
    %1356 = vmatprep.subr.mxu0 0.0
    %1357 = vmatpush1.msra.mxu0 0.0
    %1358 = vmatprep.subr.mxu0 0.0
    %1359 = vmatpush1.msra.mxu0 0.0
    %1360 = vmatprep.subr.mxu0 0.0
    %1361 = vmatpush1.msra.mxu0 0.0
    %1362 = vmatprep.subr.mxu0 0.0
    %1363 = vmatpush1.msra.mxu0 0.0
    %1364 = vmatprep.subr.mxu0 0.0
    %1365 = vmatpush1.msra.mxu0 0.0
    %1366 = vmatprep.subr.mxu0 0.0
    %1367 = vmatpush1.msra.mxu0 0.0
    %1368 = vmatprep.subr.mxu0 0.0
    %1369 = vmatpush1.msra.mxu0 0.0
    %1370 = vmatprep.subr.mxu0 0.0
    %1371 = vmatpush1.msra.mxu0 0.0
    %1372 = vmatprep.subr.mxu0 0.0
    %1373 = vmatpush1.msra.mxu0 0.0
    %1374 = vmatprep.subr.mxu0 0.0
    %1375 = vmatpush1.msra.mxu0 0.0
    %1376 = vmatprep.subr.mxu0 0.0
    %1377 = vmatpush1.msra.mxu0 0.0
    %1378 = vmatprep.subr.mxu0 0.0
    %1379 = vmatpush1.msra.mxu0 0.0
    %1380 = vmatprep.subr.mxu0 0.0
    %1381 = vmatpush1.msra.mxu0 0.0
    %1382 = vmatprep.subr.mxu0 0.0
    %1383 = vmatpush1.msra.mxu0 0.0
    %1384 = vmatprep.subr.mxu0 0.0
    %1385 = vmatpush1.msra.mxu0 0.0
    %1386 = vmatprep.subr.mxu0 0.0
    %1387 = vmatpush1.msra.mxu0 0.0
    %1388 = vmatprep.subr.mxu0 0.0
    %1389 = vmatpush1.msra.mxu0 0.0
    %1390 = vmatprep.subr.mxu0 0.0
    %1391 = vmatpush1.msra.mxu0 0.0
    %1392 = vmatprep.mubr.f32.mxu0 0.0
    %1393 = vmatmul.mubr.f32.gmra.mrb[0].mxu0 %v1323
    %v1394 = vpop.f32.mrb[0].mxu0
    %v1395 = vadd.f32 0.0, %v1394
    %v1396 = vpop.f32.mrb[0].mxu0
    %1397 = vmatprep.mubr.f32.mxu0 0.0
    %1398 = vmatmul.mubr.f32.gmra.mrb[0].mxu0 %v1326
    %v1399 = vpop.f32.mrb[0].mxu0
    %v1400 = vadd.f32 0.0, %v1399
    %v1401 = vpop.f32.mrb[0].mxu0
    %1402 = vdwg.mxu0
    %1405 = vrot.lane.b32.xlu0 %v1395, 32
    %v1406 = vpop.permute.xlu0 %1405
    %1407 = vrot.lane.b32.xlu0 %v1400, 32
    %v1408 = vpop.permute.xlu0 %1407
    %v1411 = vadd.f32 %v511, %v1406
    %v1412 = vadd.f32 %v516, %v1408
    %v1414 = vlaneseq
    %v1415 = vshrl.u32 %v1414, 7
    %v1416 = vsub.s32 0, %v1415
    %v1417 = vrot.slane %v106, %v1416
    %1418 = vrot.lane.b32.xlu0 %v1417, 96
    %v1419 = vpop.permute.xlu0 %1418
    %1422 = vrot.lane.b32.xlu0 %v1411, 96
    %v1423 = vpop.permute.xlu0 %1422
    %1424 = vrot.lane.b32.xlu0 %v1412, 96
    %v1425 = vpop.permute.xlu0 %1424
    %v1426 = vsel %vm121, %v1419, 0
    %v1428 = vsel %vm121, %v1423, 0
    %v1430 = vsel %vm121, %v1425, 0
    %1432 = vmatprep.subr.mxu0 0.0
    %1433 = vmatpush1.xpose.msra.mxu0 %v1428
    %1434 = vmatprep.subr.mxu0 0.0
    %1435 = vmatpush1.xpose.msra.mxu0 %v1430
    %1436 = vmatprep.subr.mxu0 0.0
    %1437 = vmatpush1.xpose.msra.mxu0 0.0
    %1438 = vmatprep.subr.mxu0 0.0
    %1439 = vmatpush1.xpose.msra.mxu0 0.0
    %1440 = vmatprep.subr.mxu0 0.0
    %1441 = vmatpush1.xpose.msra.mxu0 0.0
    %1442 = vmatprep.subr.mxu0 0.0
    %1443 = vmatpush1.xpose.msra.mxu0 0.0
    %1444 = vmatprep.subr.mxu0 0.0
    %1445 = vmatpush1.xpose.msra.mxu0 0.0
    %1446 = vmatprep.subr.mxu0 0.0
    %1447 = vmatpush1.xpose.msra.mxu0 0.0
    %1448 = vmatprep.subr.mxu0 0.0
    %1449 = vmatpush1.xpose.msra.mxu0 0.0
    %1450 = vmatprep.subr.mxu0 0.0
    %1451 = vmatpush1.xpose.msra.mxu0 0.0
    %1452 = vmatprep.subr.mxu0 0.0
    %1453 = vmatpush1.xpose.msra.mxu0 0.0
    %1454 = vmatprep.subr.mxu0 0.0
    %1455 = vmatpush1.xpose.msra.mxu0 0.0
    %1456 = vmatprep.subr.mxu0 0.0
    %1457 = vmatpush1.xpose.msra.mxu0 0.0
    %1458 = vmatprep.subr.mxu0 0.0
    %1459 = vmatpush1.xpose.msra.mxu0 0.0
    %1460 = vmatprep.subr.mxu0 0.0
    %1461 = vmatpush1.xpose.msra.mxu0 0.0
    %1462 = vmatprep.subr.mxu0 0.0
    %1463 = vmatpush1.xpose.msra.mxu0 0.0
    %1464 = vmatprep.subr.mxu0 0.0
    %1465 = vmatpush1.xpose.msra.mxu0 0.0
    %1466 = vmatprep.subr.mxu0 0.0
    %1467 = vmatpush1.xpose.msra.mxu0 0.0
    %1468 = vmatprep.subr.mxu0 0.0
    %1469 = vmatpush1.xpose.msra.mxu0 0.0
    %1470 = vmatprep.subr.mxu0 0.0
    %1471 = vmatpush1.xpose.msra.mxu0 0.0
    %1472 = vmatprep.subr.mxu0 0.0
    %1473 = vmatpush1.xpose.msra.mxu0 0.0
    %1474 = vmatprep.subr.mxu0 0.0
    %1475 = vmatpush1.xpose.msra.mxu0 0.0
    %1476 = vmatprep.subr.mxu0 0.0
    %1477 = vmatpush1.xpose.msra.mxu0 0.0
    %1478 = vmatprep.subr.mxu0 0.0
    %1479 = vmatpush1.xpose.msra.mxu0 0.0
    %1480 = vmatprep.subr.mxu0 0.0
    %1481 = vmatpush1.xpose.msra.mxu0 0.0
    %1482 = vmatprep.subr.mxu0 0.0
    %1483 = vmatpush1.xpose.msra.mxu0 0.0
    %1484 = vmatprep.subr.mxu0 0.0
    %1485 = vmatpush1.xpose.msra.mxu0 0.0
    %1486 = vmatprep.subr.mxu0 0.0
    %1487 = vmatpush1.xpose.msra.mxu0 0.0
    %1488 = vmatprep.subr.mxu0 0.0
    %1489 = vmatpush1.xpose.msra.mxu0 0.0
    %1490 = vmatprep.subr.mxu0 0.0
    %1491 = vmatpush1.xpose.msra.mxu0 0.0
    %1492 = vmatprep.subr.mxu0 0.0
    %1493 = vmatpush1.xpose.msra.mxu0 0.0
    %1494 = vmatprep.subr.mxu0 0.0
    %1495 = vmatpush1.xpose.msra.mxu0 0.0
    %1496 = vmatprep.mubr.f32.mxu0 0.0
    %1497 = vmatmul.mubr.f32.gmra.mrb[0].mxu0 %v1426
    %v1498 = vpop.f32.mrb[0].mxu0
    %v1499 = vadd.f32 0.0, %v1498
    %v1500 = vpop.f32.mrb[0].mxu0
    %1501 = vdwg.mxu0
    %vm1502 = vcmask 65536
    %v1503 = vsel %vm1502, %v1499, -inf
    %1504 = vmax.xlane.f32.xlu0 %v1503
    %v1505 = vpop.xlane.xlu0 %1504
    %vm1506 = vcmp.eq.f32.partialorder %v1499, %v1505
    %v1507 = vsel %vm1506, %v207, 9
    %v1508 = vsel %vm1502, %v1507, 2147483647
    %v1509 = vand.u32 %v1508, 65535
    %v1510 = vshra.s32 %v1508, 16
    %v1511 = vcvt.s32.f32 %v1509
    %v1512 = vcvt.s32.f32 %v1510
    %1513 = vmin.xlane.f32.xlu0 %v1512
    %v1514 = vpop.xlane.xlu0 %1513
    %vm1515 = vcmp.eq.f32.partialorder %v1512, %v1514
    %v1516 = vsel %vm1515, %v1511, inf
    %1517 = vmin.xlane.f32.xlu0 %v1516
    %v1518 = vpop.xlane.xlu0 %1517
    %v1519 = vcvt.f32.s32 %v1518
    %v1520 = vcvt.f32.s32 %v1514
    %v1521 = vshll.u32 %v1520, 16
    %v1522 = vadd.s32 %v1521, %v1519
    %vm1523 = vcmp.eq.s32.totalorder %v207, %v1522
    %v1524 = vsel %vm1523, 1, 0
    %v1525 = vcvt.s32.f32 %v1524
    %vm1527 = vcmask 72704
    %v1529 = vsel %vm1527, %v1525, 0
    %vm1531 = vcmask 1040384
    %v1532 = vsel %vm1531, %v1425, 0
    %1534 = vmatprep.subr.mxu0 0.0
    %1535 = vmatpush1.msra.mxu0 %v1423
    %1536 = vmatprep.subr.mxu0 0.0
    %1537 = vmatpush1.msra.mxu0 %v1532
    %1538 = vmatprep.subr.mxu0 0.0
    %1539 = vmatpush1.msra.mxu0 0.0
    %1540 = vmatprep.subr.mxu0 0.0
    %1541 = vmatpush1.msra.mxu0 0.0
    %1542 = vmatprep.subr.mxu0 0.0
    %1543 = vmatpush1.msra.mxu0 0.0
    %1544 = vmatprep.subr.mxu0 0.0
    %1545 = vmatpush1.msra.mxu0 0.0
    %1546 = vmatprep.subr.mxu0 0.0
    %1547 = vmatpush1.msra.mxu0 0.0
    %1548 = vmatprep.subr.mxu0 0.0
    %1549 = vmatpush1.msra.mxu0 0.0
    %1550 = vmatprep.subr.mxu0 0.0
    %1551 = vmatpush1.msra.mxu0 0.0
    %1552 = vmatprep.subr.mxu0 0.0
    %1553 = vmatpush1.msra.mxu0 0.0
    %1554 = vmatprep.subr.mxu0 0.0
    %1555 = vmatpush1.msra.mxu0 0.0
    %1556 = vmatprep.subr.mxu0 0.0
    %1557 = vmatpush1.msra.mxu0 0.0
    %1558 = vmatprep.subr.mxu0 0.0
    %1559 = vmatpush1.msra.mxu0 0.0
    %1560 = vmatprep.subr.mxu0 0.0
    %1561 = vmatpush1.msra.mxu0 0.0
    %1562 = vmatprep.subr.mxu0 0.0
    %1563 = vmatpush1.msra.mxu0 0.0
    %1564 = vmatprep.subr.mxu0 0.0
    %1565 = vmatpush1.msra.mxu0 0.0
    %1566 = vmatprep.subr.mxu0 0.0
    %1567 = vmatpush1.msra.mxu0 0.0
    %1568 = vmatprep.subr.mxu0 0.0
    %1569 = vmatpush1.msra.mxu0 0.0
    %1570 = vmatprep.subr.mxu0 0.0
    %1571 = vmatpush1.msra.mxu0 0.0
    %1572 = vmatprep.subr.mxu0 0.0
    %1573 = vmatpush1.msra.mxu0 0.0
    %1574 = vmatprep.subr.mxu0 0.0
    %1575 = vmatpush1.msra.mxu0 0.0
    %1576 = vmatprep.subr.mxu0 0.0
    %1577 = vmatpush1.msra.mxu0 0.0
    %1578 = vmatprep.subr.mxu0 0.0
    %1579 = vmatpush1.msra.mxu0 0.0
    %1580 = vmatprep.subr.mxu0 0.0
    %1581 = vmatpush1.msra.mxu0 0.0
    %1582 = vmatprep.subr.mxu0 0.0
    %1583 = vmatpush1.msra.mxu0 0.0
    %1584 = vmatprep.subr.mxu0 0.0
    %1585 = vmatpush1.msra.mxu0 0.0
    %1586 = vmatprep.subr.mxu0 0.0
    %1587 = vmatpush1.msra.mxu0 0.0
    %1588 = vmatprep.subr.mxu0 0.0
    %1589 = vmatpush1.msra.mxu0 0.0
    %1590 = vmatprep.subr.mxu0 0.0
    %1591 = vmatpush1.msra.mxu0 0.0
    %1592 = vmatprep.subr.mxu0 0.0
    %1593 = vmatpush1.msra.mxu0 0.0
    %1594 = vmatprep.subr.mxu0 0.0
    %1595 = vmatpush1.msra.mxu0 0.0
    %1596 = vmatprep.subr.mxu0 0.0
    %1597 = vmatpush1.msra.mxu0 0.0
    %1598 = vmatprep.mubr.f32.mxu0 0.0
    %1599 = vmatmul.mubr.f32.gmra.mrb[0].mxu0 %v1529
    %v1600 = vpop.f32.mrb[0].mxu0
    %v1601 = vadd.f32 0.0, %v1600
    %v1602 = vpop.f32.mrb[0].mxu0
    %1603 = vdwg.mxu0
    %v1605 = vsel %vm121, %v1601, 0
    %1607 = vmatprep.subr.mxu0 0.0
    %1608 = vmatpush1.msra.mxu0 %v107
    %1609 = vmatprep.subr.mxu0 0.0
    %1610 = vmatpush1.msra.mxu0 %v108
    %1611 = vmatprep.subr.mxu0 0.0
    %1612 = vmatpush1.msra.mxu0 %v109
    %1613 = vmatprep.subr.mxu0 0.0
    %1614 = vmatpush1.msra.mxu0 %v110
    %1615 = vmatprep.subr.mxu0 0.0
    %1616 = vmatpush1.msra.mxu0 0.0
    %1617 = vmatprep.subr.mxu0 0.0
    %1618 = vmatpush1.msra.mxu0 0.0
    %1619 = vmatprep.subr.mxu0 0.0
    %1620 = vmatpush1.msra.mxu0 0.0
    %1621 = vmatprep.subr.mxu0 0.0
    %1622 = vmatpush1.msra.mxu0 0.0
    %1623 = vmatprep.subr.mxu0 0.0
    %1624 = vmatpush1.msra.mxu0 0.0
    %1625 = vmatprep.subr.mxu0 0.0
    %1626 = vmatpush1.msra.mxu0 0.0
    %1627 = vmatprep.subr.mxu0 0.0
    %1628 = vmatpush1.msra.mxu0 0.0
    %1629 = vmatprep.subr.mxu0 0.0
    %1630 = vmatpush1.msra.mxu0 0.0
    %1631 = vmatprep.subr.mxu0 0.0
    %1632 = vmatpush1.msra.mxu0 0.0
    %1633 = vmatprep.subr.mxu0 0.0
    %1634 = vmatpush1.msra.mxu0 0.0
    %1635 = vmatprep.subr.mxu0 0.0
    %1636 = vmatpush1.msra.mxu0 0.0
    %1637 = vmatprep.subr.mxu0 0.0
    %1638 = vmatpush1.msra.mxu0 0.0
    %1639 = vmatprep.subr.mxu0 0.0
    %1640 = vmatpush1.msra.mxu0 0.0
    %1641 = vmatprep.subr.mxu0 0.0
    %1642 = vmatpush1.msra.mxu0 0.0
    %1643 = vmatprep.subr.mxu0 0.0
    %1644 = vmatpush1.msra.mxu0 0.0
    %1645 = vmatprep.subr.mxu0 0.0
    %1646 = vmatpush1.msra.mxu0 0.0
    %1647 = vmatprep.subr.mxu0 0.0
    %1648 = vmatpush1.msra.mxu0 0.0
    %1649 = vmatprep.subr.mxu0 0.0
    %1650 = vmatpush1.msra.mxu0 0.0
    %1651 = vmatprep.subr.mxu0 0.0
    %1652 = vmatpush1.msra.mxu0 0.0
    %1653 = vmatprep.subr.mxu0 0.0
    %1654 = vmatpush1.msra.mxu0 0.0
    %1655 = vmatprep.subr.mxu0 0.0
    %1656 = vmatpush1.msra.mxu0 0.0
    %1657 = vmatprep.subr.mxu0 0.0
    %1658 = vmatpush1.msra.mxu0 0.0
    %1659 = vmatprep.subr.mxu0 0.0
    %1660 = vmatpush1.msra.mxu0 0.0
    %1661 = vmatprep.subr.mxu0 0.0
    %1662 = vmatpush1.msra.mxu0 0.0
    %1663 = vmatprep.subr.mxu0 0.0
    %1664 = vmatpush1.msra.mxu0 0.0
    %1665 = vmatprep.subr.mxu0 0.0
    %1666 = vmatpush1.msra.mxu0 0.0
    %1667 = vmatprep.subr.mxu0 0.0
    %1668 = vmatpush1.msra.mxu0 0.0
    %1669 = vmatprep.subr.mxu0 0.0
    %1670 = vmatpush1.msra.mxu0 0.0
    %1671 = vmatprep.mubr.f32.mxu0 0.0
    %1672 = vmatmul.mubr.f32.gmra.mrb[0].mxu0 %v1605
    %v1673 = vpop.f32.mrb[0].mxu0
    %v1674 = vadd.f32 0.0, %v1673
    %v1675 = vpop.f32.mrb[0].mxu0
    %1676 = vdwg.mxu0
    %v1677 = vld [vmem:[#allocation5 + $0x7] sm:$0x1]
    %vm1678 = vcmp.eq.s32.totalorder %v1522, 8
    %v1679 = vsel %vm1678, 1, 0
    %vm1680 = vcmp.eq.s32.totalorder %v1679, 1
    %v1681 = vsel %vm1680, %v1677, %v1674
    %1682 = vst.msk [vmem:[#allocation11] sm:$0x1] %vm1502, %v1499
    %1683 = vst [vmem:[#allocation12] sm:$0x1] %v1681
    %vm1684 = vcmask 0
    %1685 = vst.msk [vmem:[%s8] sm:$0x1] %vm1684, %v1522
    %1687 = vrot.lane.b32.xlu0 %v200, 96
    %v1688 = vpop.permute.xlu0 %1687
    %1690 = vmatprep.subr.mxu0 0.0
    %1691 = vmatpush1.msra.mxu0 %v1688
    %1692 = vmatprep.subr.mxu0 0.0
    %1693 = vmatpush1.msra.mxu0 0.0
    %1694 = vmatprep.subr.mxu0 0.0
    %1695 = vmatpush1.msra.mxu0 0.0
    %1696 = vmatprep.subr.mxu0 0.0
    %1697 = vmatpush1.msra.mxu0 0.0
    %1698 = vmatprep.subr.mxu0 0.0
    %1699 = vmatpush1.msra.mxu0 0.0
    %1700 = vmatprep.subr.mxu0 0.0
    %1701 = vmatpush1.msra.mxu0 0.0
    %1702 = vmatprep.subr.mxu0 0.0
    %1703 = vmatpush1.msra.mxu0 0.0
    %1704 = vmatprep.subr.mxu0 0.0
    %1705 = vmatpush1.msra.mxu0 0.0
    %1706 = vmatprep.subr.mxu0 0.0
    %1707 = vmatpush1.msra.mxu0 0.0
    %1708 = vmatprep.subr.mxu0 0.0
    %1709 = vmatpush1.msra.mxu0 0.0
    %1710 = vmatprep.subr.mxu0 0.0
    %1711 = vmatpush1.msra.mxu0 0.0
    %1712 = vmatprep.subr.mxu0 0.0
    %1713 = vmatpush1.msra.mxu0 0.0
    %1714 = vmatprep.subr.mxu0 0.0
    %1715 = vmatpush1.msra.mxu0 0.0
    %1716 = vmatprep.subr.mxu0 0.0
    %1717 = vmatpush1.msra.mxu0 0.0
    %1718 = vmatprep.subr.mxu0 0.0
    %1719 = vmatpush1.msra.mxu0 0.0
    %1720 = vmatprep.subr.mxu0 0.0
    %1721 = vmatpush1.msra.mxu0 0.0
    %1722 = vmatprep.subr.mxu0 0.0
    %1723 = vmatpush1.msra.mxu0 0.0
    %1724 = vmatprep.subr.mxu0 0.0
    %1725 = vmatpush1.msra.mxu0 0.0
    %1726 = vmatprep.subr.mxu0 0.0
    %1727 = vmatpush1.msra.mxu0 0.0
    %1728 = vmatprep.subr.mxu0 0.0
    %1729 = vmatpush1.msra.mxu0 0.0
    %1730 = vmatprep.subr.mxu0 0.0
    %1731 = vmatpush1.msra.mxu0 0.0
    %1732 = vmatprep.subr.mxu0 0.0
    %1733 = vmatpush1.msra.mxu0 0.0
    %1734 = vmatprep.subr.mxu0 0.0
    %1735 = vmatpush1.msra.mxu0 0.0
    %1736 = vmatprep.subr.mxu0 0.0
    %1737 = vmatpush1.msra.mxu0 0.0
    %1738 = vmatprep.subr.mxu0 0.0
    %1739 = vmatpush1.msra.mxu0 0.0
    %1740 = vmatprep.subr.mxu0 0.0
    %1741 = vmatpush1.msra.mxu0 0.0
    %1742 = vmatprep.subr.mxu0 0.0
    %1743 = vmatpush1.msra.mxu0 0.0
    %1744 = vmatprep.subr.mxu0 0.0
    %1745 = vmatpush1.msra.mxu0 0.0
    %1746 = vmatprep.subr.mxu0 0.0
    %1747 = vmatpush1.msra.mxu0 0.0
    %1748 = vmatprep.subr.mxu0 0.0
    %1749 = vmatpush1.msra.mxu0 0.0
    %1750 = vmatprep.subr.mxu0 0.0
    %1751 = vmatpush1.msra.mxu0 0.0
    %1752 = vmatprep.subr.mxu0 0.0
    %1753 = vmatpush1.msra.mxu0 0.0
    %1754 = vmatprep.mubr.f32.mxu0 0.0
    %1755 = vmatmul.mubr.f32.gmra.mrb[0].mxu0 %v228
    %v1756 = vpop.f32.mrb[0].mxu0
    %v1757 = vadd.f32 0.0, %v1756
    %v1758 = vpop.f32.mrb[0].mxu0
    %1759 = vmatprep.mubr.f32.mxu0 0.0
    %1760 = vmatmul.mubr.f32.gmra.mrb[0].mxu0 %v231
    %v1761 = vpop.f32.mrb[0].mxu0
    %v1762 = vadd.f32 0.0, %v1761
    %v1763 = vpop.f32.mrb[0].mxu0
    %1764 = vdwg.mxu0
    %1765 = vmatprep.subr.mxu0 0.0
    %1766 = vmatpush1.msra.mxu0 %v200
    %1767 = vmatprep.subr.mxu0 0.0
    %1768 = vmatpush1.msra.mxu0 0.0
    %1769 = vmatprep.subr.mxu0 0.0
    %1770 = vmatpush1.msra.mxu0 0.0
    %1771 = vmatprep.subr.mxu0 0.0
    %1772 = vmatpush1.msra.mxu0 0.0
    %1773 = vmatprep.subr.mxu0 0.0
    %1774 = vmatpush1.msra.mxu0 0.0
    %1775 = vmatprep.subr.mxu0 0.0
    %1776 = vmatpush1.msra.mxu0 0.0
    %1777 = vmatprep.subr.mxu0 0.0
    %1778 = vmatpush1.msra.mxu0 0.0
    %1779 = vmatprep.subr.mxu0 0.0
    %1780 = vmatpush1.msra.mxu0 0.0
    %1781 = vmatprep.subr.mxu0 0.0
    %1782 = vmatpush1.msra.mxu0 0.0
    %1783 = vmatprep.subr.mxu0 0.0
    %1784 = vmatpush1.msra.mxu0 0.0
    %1785 = vmatprep.subr.mxu0 0.0
    %1786 = vmatpush1.msra.mxu0 0.0
    %1787 = vmatprep.subr.mxu0 0.0
    %1788 = vmatpush1.msra.mxu0 0.0
    %1789 = vmatprep.subr.mxu0 0.0
    %1790 = vmatpush1.msra.mxu0 0.0
    %1791 = vmatprep.subr.mxu0 0.0
    %1792 = vmatpush1.msra.mxu0 0.0
    %1793 = vmatprep.subr.mxu0 0.0
    %1794 = vmatpush1.msra.mxu0 0.0
    %1795 = vmatprep.subr.mxu0 0.0
    %1796 = vmatpush1.msra.mxu0 0.0
    %1797 = vmatprep.subr.mxu0 0.0
    %1798 = vmatpush1.msra.mxu0 0.0
    %1799 = vmatprep.subr.mxu0 0.0
    %1800 = vmatpush1.msra.mxu0 0.0
    %1801 = vmatprep.subr.mxu0 0.0
    %1802 = vmatpush1.msra.mxu0 0.0
    %1803 = vmatprep.subr.mxu0 0.0
    %1804 = vmatpush1.msra.mxu0 0.0
    %1805 = vmatprep.subr.mxu0 0.0
    %1806 = vmatpush1.msra.mxu0 0.0
    %1807 = vmatprep.subr.mxu0 0.0
    %1808 = vmatpush1.msra.mxu0 0.0
    %1809 = vmatprep.subr.mxu0 0.0
    %1810 = vmatpush1.msra.mxu0 0.0
    %1811 = vmatprep.subr.mxu0 0.0
    %1812 = vmatpush1.msra.mxu0 0.0
    %1813 = vmatprep.subr.mxu0 0.0
    %1814 = vmatpush1.msra.mxu0 0.0
    %1815 = vmatprep.subr.mxu0 0.0
    %1816 = vmatpush1.msra.mxu0 0.0
    %1817 = vmatprep.subr.mxu0 0.0
    %1818 = vmatpush1.msra.mxu0 0.0
    %1819 = vmatprep.subr.mxu0 0.0
    %1820 = vmatpush1.msra.mxu0 0.0
    %1821 = vmatprep.subr.mxu0 0.0
    %1822 = vmatpush1.msra.mxu0 0.0
    %1823 = vmatprep.subr.mxu0 0.0
    %1824 = vmatpush1.msra.mxu0 0.0
    %1825 = vmatprep.subr.mxu0 0.0
    %1826 = vmatpush1.msra.mxu0 0.0
    %1827 = vmatprep.subr.mxu0 0.0
    %1828 = vmatpush1.msra.mxu0 0.0
    %1829 = vmatprep.mubr.f32.mxu0 0.0
    %1830 = vmatmul.mubr.f32.gmra.mrb[0].mxu0 %v309
    %v1831 = vpop.f32.mrb[0].mxu0
    %v1832 = vadd.f32 %v1757, %v1831
    %v1833 = vpop.f32.mrb[0].mxu0
    %1834 = vmatprep.mubr.f32.mxu0 0.0
    %1835 = vmatmul.mubr.f32.gmra.mrb[0].mxu0 %v312
    %v1836 = vpop.f32.mrb[0].mxu0
    %v1837 = vadd.f32 %v1762, %v1836
    %v1838 = vpop.f32.mrb[0].mxu0
    %1839 = vdwg.mxu0
    %v1840 = vadd.f32 %v1832, %v111
    %v1841 = vadd.f32 %v1837, %v112
    %v1843 = vsel %vm121, %v1840, 0
    %v1846 = vsel %vm121, %v1841, 0
    %1848 = vmatprep.subr.mxu0 0.0
    %1849 = vmatpush1.msra.mxu0 %v424
    %1850 = vmatprep.subr.mxu0 0.0
    %1851 = vmatpush1.msra.mxu0 %v425
    %1852 = vmatprep.subr.mxu0 0.0
    %1853 = vmatpush1.msra.mxu0 %v426
    %1854 = vmatprep.subr.mxu0 0.0
    %1855 = vmatpush1.msra.mxu0 %v427
    %1856 = vmatprep.subr.mxu0 0.0
    %1857 = vmatpush1.msra.mxu0 0.0
    %1858 = vmatprep.subr.mxu0 0.0
    %1859 = vmatpush1.msra.mxu0 0.0
    %1860 = vmatprep.subr.mxu0 0.0
    %1861 = vmatpush1.msra.mxu0 0.0
    %1862 = vmatprep.subr.mxu0 0.0
    %1863 = vmatpush1.msra.mxu0 0.0
    %1864 = vmatprep.subr.mxu0 0.0
    %1865 = vmatpush1.msra.mxu0 0.0
    %1866 = vmatprep.subr.mxu0 0.0
    %1867 = vmatpush1.msra.mxu0 0.0
    %1868 = vmatprep.subr.mxu0 0.0
    %1869 = vmatpush1.msra.mxu0 0.0
    %1870 = vmatprep.subr.mxu0 0.0
    %1871 = vmatpush1.msra.mxu0 0.0
    %1872 = vmatprep.subr.mxu0 0.0
    %1873 = vmatpush1.msra.mxu0 0.0
    %1874 = vmatprep.subr.mxu0 0.0
    %1875 = vmatpush1.msra.mxu0 0.0
    %1876 = vmatprep.subr.mxu0 0.0
    %1877 = vmatpush1.msra.mxu0 0.0
    %1878 = vmatprep.subr.mxu0 0.0
    %1879 = vmatpush1.msra.mxu0 0.0
    %1880 = vmatprep.subr.mxu0 0.0
    %1881 = vmatpush1.msra.mxu0 0.0
    %1882 = vmatprep.subr.mxu0 0.0
    %1883 = vmatpush1.msra.mxu0 0.0
    %1884 = vmatprep.subr.mxu0 0.0
    %1885 = vmatpush1.msra.mxu0 0.0
    %1886 = vmatprep.subr.mxu0 0.0
    %1887 = vmatpush1.msra.mxu0 0.0
    %1888 = vmatprep.subr.mxu0 0.0
    %1889 = vmatpush1.msra.mxu0 0.0
    %1890 = vmatprep.subr.mxu0 0.0
    %1891 = vmatpush1.msra.mxu0 0.0
    %1892 = vmatprep.subr.mxu0 0.0
    %1893 = vmatpush1.msra.mxu0 0.0
    %1894 = vmatprep.subr.mxu0 0.0
    %1895 = vmatpush1.msra.mxu0 0.0
    %1896 = vmatprep.subr.mxu0 0.0
    %1897 = vmatpush1.msra.mxu0 0.0
    %1898 = vmatprep.subr.mxu0 0.0
    %1899 = vmatpush1.msra.mxu0 0.0
    %1900 = vmatprep.subr.mxu0 0.0
    %1901 = vmatpush1.msra.mxu0 0.0
    %1902 = vmatprep.subr.mxu0 0.0
    %1903 = vmatpush1.msra.mxu0 0.0
    %1904 = vmatprep.subr.mxu0 0.0
    %1905 = vmatpush1.msra.mxu0 0.0
    %1906 = vmatprep.subr.mxu0 0.0
    %1907 = vmatpush1.msra.mxu0 0.0
    %1908 = vmatprep.subr.mxu0 0.0
    %1909 = vmatpush1.msra.mxu0 0.0
    %1910 = vmatprep.subr.mxu0 0.0
    %1911 = vmatpush1.msra.mxu0 0.0
    %1912 = vmatprep.mubr.f32.mxu0 0.0
    %1913 = vmatmul.mubr.f32.gmra.mrb[0].mxu0 %v1843
    %v1914 = vpop.f32.mrb[0].mxu0
    %v1915 = vadd.f32 %v436, %v1914
    %v1916 = vpop.f32.mrb[0].mxu0
    %1917 = vmatprep.mubr.f32.mxu0 0.0
    %1918 = vmatmul.mubr.f32.gmra.mrb[0].mxu0 %v1846
    %v1919 = vpop.f32.mrb[0].mxu0
    %v1920 = vadd.f32 %v436, %v1919
    %v1921 = vpop.f32.mrb[0].mxu0
    %1922 = vdwg.mxu0
    %1925 = vrot.lane.b32.xlu0 %v1915, 120
    %v1926 = vpop.permute.xlu0 %1925
    %1927 = vrot.lane.b32.xlu0 %v1920, 120
    %v1928 = vpop.permute.xlu0 %1927
    %1929 = vrot.lane.b32.xlu0 %v1915, 112
    %v1930 = vpop.permute.xlu0 %1929
    %1931 = vrot.lane.b32.xlu0 %v1920, 112
    %v1932 = vpop.permute.xlu0 %1931
    %1933 = vrot.lane.b32.xlu0 %v1915, 104
    %v1934 = vpop.permute.xlu0 %1933
    %1935 = vrot.lane.b32.xlu0 %v1920, 104
    %v1936 = vpop.permute.xlu0 %1935
    %1937 = vrot.lane.b32.xlu0 %v200, 120
    %v1938 = vpop.permute.xlu0 %1937
    %1939 = vrot.lane.b32.xlu0 %v200, 64
    %v1940 = vpop.permute.xlu0 %1939
    %v1941 = vsel %vm226, %v1915, 0
    %v1943 = vsel %vm226, %v1920, 0
    %v1945 = vsel %vm226, %v1940, 0
    %1947 = vmatprep.subr.mxu0 0.0
    %1948 = vmatpush1.xpose.msra.mxu0 %v1945
    %1949 = vmatprep.subr.mxu0 0.0
    %1950 = vmatpush1.xpose.msra.mxu0 0.0
    %1951 = vmatprep.subr.mxu0 0.0
    %1952 = vmatpush1.xpose.msra.mxu0 0.0
    %1953 = vmatprep.subr.mxu0 0.0
    %1954 = vmatpush1.xpose.msra.mxu0 0.0
    %1955 = vmatprep.subr.mxu0 0.0
    %1956 = vmatpush1.xpose.msra.mxu0 0.0
    %1957 = vmatprep.subr.mxu0 0.0
    %1958 = vmatpush1.xpose.msra.mxu0 0.0
    %1959 = vmatprep.subr.mxu0 0.0
    %1960 = vmatpush1.xpose.msra.mxu0 0.0
    %1961 = vmatprep.subr.mxu0 0.0
    %1962 = vmatpush1.xpose.msra.mxu0 0.0
    %1963 = vmatprep.subr.mxu0 0.0
    %1964 = vmatpush1.xpose.msra.mxu0 0.0
    %1965 = vmatprep.subr.mxu0 0.0
    %1966 = vmatpush1.xpose.msra.mxu0 0.0
    %1967 = vmatprep.subr.mxu0 0.0
    %1968 = vmatpush1.xpose.msra.mxu0 0.0
    %1969 = vmatprep.subr.mxu0 0.0
    %1970 = vmatpush1.xpose.msra.mxu0 0.0
    %1971 = vmatprep.subr.mxu0 0.0
    %1972 = vmatpush1.xpose.msra.mxu0 0.0
    %1973 = vmatprep.subr.mxu0 0.0
    %1974 = vmatpush1.xpose.msra.mxu0 0.0
    %1975 = vmatprep.subr.mxu0 0.0
    %1976 = vmatpush1.xpose.msra.mxu0 0.0
    %1977 = vmatprep.subr.mxu0 0.0
    %1978 = vmatpush1.xpose.msra.mxu0 0.0
    %1979 = vmatprep.subr.mxu0 0.0
    %1980 = vmatpush1.xpose.msra.mxu0 0.0
    %1981 = vmatprep.subr.mxu0 0.0
    %1982 = vmatpush1.xpose.msra.mxu0 0.0
    %1983 = vmatprep.subr.mxu0 0.0
    %1984 = vmatpush1.xpose.msra.mxu0 0.0
    %1985 = vmatprep.subr.mxu0 0.0
    %1986 = vmatpush1.xpose.msra.mxu0 0.0
    %1987 = vmatprep.subr.mxu0 0.0
    %1988 = vmatpush1.xpose.msra.mxu0 0.0
    %1989 = vmatprep.subr.mxu0 0.0
    %1990 = vmatpush1.xpose.msra.mxu0 0.0
    %1991 = vmatprep.subr.mxu0 0.0
    %1992 = vmatpush1.xpose.msra.mxu0 0.0
    %1993 = vmatprep.subr.mxu0 0.0
    %1994 = vmatpush1.xpose.msra.mxu0 0.0
    %1995 = vmatprep.subr.mxu0 0.0
    %1996 = vmatpush1.xpose.msra.mxu0 0.0
    %1997 = vmatprep.subr.mxu0 0.0
    %1998 = vmatpush1.xpose.msra.mxu0 0.0
    %1999 = vmatprep.subr.mxu0 0.0
    %2000 = vmatpush1.xpose.msra.mxu0 0.0
    %2001 = vmatprep.subr.mxu0 0.0
    %2002 = vmatpush1.xpose.msra.mxu0 0.0
    %2003 = vmatprep.subr.mxu0 0.0
    %2004 = vmatpush1.xpose.msra.mxu0 0.0
    %2005 = vmatprep.subr.mxu0 0.0
    %2006 = vmatpush1.xpose.msra.mxu0 0.0
    %2007 = vmatprep.subr.mxu0 0.0
    %2008 = vmatpush1.xpose.msra.mxu0 0.0
    %2009 = vmatprep.subr.mxu0 0.0
    %2010 = vmatpush1.xpose.msra.mxu0 0.0
    %2011 = vmatprep.mubr.f32.mxu0 0.0
    %2012 = vmatmul.mubr.f32.gmra.mrb[0].mxu0 %v1941
    %v2013 = vpop.f32.mrb[0].mxu0
    %v2014 = vadd.f32 0.0, %v2013
    %v2015 = vpop.f32.mrb[0].mxu0
    %2016 = vmatprep.mubr.f32.mxu0 0.0
    %2017 = vmatmul.mubr.f32.gmra.mrb[0].mxu0 %v1943
    %v2018 = vpop.f32.mrb[0].mxu0
    %v2019 = vadd.f32 0.0, %v2018
    %v2020 = vpop.f32.mrb[0].mxu0
    %2021 = vdwg.mxu0
    %v2022 = vsel %vm226, %v1926, 0
    %v2024 = vsel %vm226, %v1928, 0
    %2026 = vmatprep.subr.mxu0 0.0
    %2027 = vmatpush1.xpose.msra.mxu0 %v1945
    %2028 = vmatprep.subr.mxu0 0.0
    %2029 = vmatpush1.xpose.msra.mxu0 0.0
    %2030 = vmatprep.subr.mxu0 0.0
    %2031 = vmatpush1.xpose.msra.mxu0 0.0
    %2032 = vmatprep.subr.mxu0 0.0
    %2033 = vmatpush1.xpose.msra.mxu0 0.0
    %2034 = vmatprep.subr.mxu0 0.0
    %2035 = vmatpush1.xpose.msra.mxu0 0.0
    %2036 = vmatprep.subr.mxu0 0.0
    %2037 = vmatpush1.xpose.msra.mxu0 0.0
    %2038 = vmatprep.subr.mxu0 0.0
    %2039 = vmatpush1.xpose.msra.mxu0 0.0
    %2040 = vmatprep.subr.mxu0 0.0
    %2041 = vmatpush1.xpose.msra.mxu0 0.0
    %2042 = vmatprep.subr.mxu0 0.0
    %2043 = vmatpush1.xpose.msra.mxu0 0.0
    %2044 = vmatprep.subr.mxu0 0.0
    %2045 = vmatpush1.xpose.msra.mxu0 0.0
    %2046 = vmatprep.subr.mxu0 0.0
    %2047 = vmatpush1.xpose.msra.mxu0 0.0
    %2048 = vmatprep.subr.mxu0 0.0
    %2049 = vmatpush1.xpose.msra.mxu0 0.0
    %2050 = vmatprep.subr.mxu0 0.0
    %2051 = vmatpush1.xpose.msra.mxu0 0.0
    %2052 = vmatprep.subr.mxu0 0.0
    %2053 = vmatpush1.xpose.msra.mxu0 0.0
    %2054 = vmatprep.subr.mxu0 0.0
    %2055 = vmatpush1.xpose.msra.mxu0 0.0
    %2056 = vmatprep.subr.mxu0 0.0
    %2057 = vmatpush1.xpose.msra.mxu0 0.0
    %2058 = vmatprep.subr.mxu0 0.0
    %2059 = vmatpush1.xpose.msra.mxu0 0.0
    %2060 = vmatprep.subr.mxu0 0.0
    %2061 = vmatpush1.xpose.msra.mxu0 0.0
    %2062 = vmatprep.subr.mxu0 0.0
    %2063 = vmatpush1.xpose.msra.mxu0 0.0
    %2064 = vmatprep.subr.mxu0 0.0
    %2065 = vmatpush1.xpose.msra.mxu0 0.0
    %2066 = vmatprep.subr.mxu0 0.0
    %2067 = vmatpush1.xpose.msra.mxu0 0.0
    %2068 = vmatprep.subr.mxu0 0.0
    %2069 = vmatpush1.xpose.msra.mxu0 0.0
    %2070 = vmatprep.subr.mxu0 0.0
    %2071 = vmatpush1.xpose.msra.mxu0 0.0
    %2072 = vmatprep.subr.mxu0 0.0
    %2073 = vmatpush1.xpose.msra.mxu0 0.0
    %2074 = vmatprep.subr.mxu0 0.0
    %2075 = vmatpush1.xpose.msra.mxu0 0.0
    %2076 = vmatprep.subr.mxu0 0.0
    %2077 = vmatpush1.xpose.msra.mxu0 0.0
    %2078 = vmatprep.subr.mxu0 0.0
    %2079 = vmatpush1.xpose.msra.mxu0 0.0
    %2080 = vmatprep.subr.mxu0 0.0
    %2081 = vmatpush1.xpose.msra.mxu0 0.0
    %2082 = vmatprep.subr.mxu0 0.0
    %2083 = vmatpush1.xpose.msra.mxu0 0.0
    %2084 = vmatprep.subr.mxu0 0.0
    %2085 = vmatpush1.xpose.msra.mxu0 0.0
    %2086 = vmatprep.subr.mxu0 0.0
    %2087 = vmatpush1.xpose.msra.mxu0 0.0
    %2088 = vmatprep.subr.mxu0 0.0
    %2089 = vmatpush1.xpose.msra.mxu0 0.0
    %2090 = vmatprep.mubr.f32.mxu0 0.0
    %2091 = vmatmul.mubr.f32.gmra.mrb[0].mxu0 %v2022
    %v2092 = vpop.f32.mrb[0].mxu0
    %v2093 = vadd.f32 0.0, %v2092
    %v2094 = vpop.f32.mrb[0].mxu0
    %2095 = vmatprep.mubr.f32.mxu0 0.0
    %2096 = vmatmul.mubr.f32.gmra.mrb[0].mxu0 %v2024
    %v2097 = vpop.f32.mrb[0].mxu0
    %v2098 = vadd.f32 0.0, %v2097
    %v2099 = vpop.f32.mrb[0].mxu0
    %2100 = vdwg.mxu0
    %2101 = vrot.lane.b32.xlu0 %v1938, 64
    %v2102 = vpop.permute.xlu0 %2101
    %v2103 = vsel %vm226, %v1930, 0
    %v2105 = vsel %vm226, %v1932, 0
    %v2107 = vsel %vm226, %v2102, 0
    %2109 = vmatprep.subr.mxu0 0.0
    %2110 = vmatpush1.xpose.msra.mxu0 %v2107
    %2111 = vmatprep.subr.mxu0 0.0
    %2112 = vmatpush1.xpose.msra.mxu0 0.0
    %2113 = vmatprep.subr.mxu0 0.0
    %2114 = vmatpush1.xpose.msra.mxu0 0.0
    %2115 = vmatprep.subr.mxu0 0.0
    %2116 = vmatpush1.xpose.msra.mxu0 0.0
    %2117 = vmatprep.subr.mxu0 0.0
    %2118 = vmatpush1.xpose.msra.mxu0 0.0
    %2119 = vmatprep.subr.mxu0 0.0
    %2120 = vmatpush1.xpose.msra.mxu0 0.0
    %2121 = vmatprep.subr.mxu0 0.0
    %2122 = vmatpush1.xpose.msra.mxu0 0.0
    %2123 = vmatprep.subr.mxu0 0.0
    %2124 = vmatpush1.xpose.msra.mxu0 0.0
    %2125 = vmatprep.subr.mxu0 0.0
    %2126 = vmatpush1.xpose.msra.mxu0 0.0
    %2127 = vmatprep.subr.mxu0 0.0
    %2128 = vmatpush1.xpose.msra.mxu0 0.0
    %2129 = vmatprep.subr.mxu0 0.0
    %2130 = vmatpush1.xpose.msra.mxu0 0.0
    %2131 = vmatprep.subr.mxu0 0.0
    %2132 = vmatpush1.xpose.msra.mxu0 0.0
    %2133 = vmatprep.subr.mxu0 0.0
    %2134 = vmatpush1.xpose.msra.mxu0 0.0
    %2135 = vmatprep.subr.mxu0 0.0
    %2136 = vmatpush1.xpose.msra.mxu0 0.0
    %2137 = vmatprep.subr.mxu0 0.0
    %2138 = vmatpush1.xpose.msra.mxu0 0.0
    %2139 = vmatprep.subr.mxu0 0.0
    %2140 = vmatpush1.xpose.msra.mxu0 0.0
    %2141 = vmatprep.subr.mxu0 0.0
    %2142 = vmatpush1.xpose.msra.mxu0 0.0
    %2143 = vmatprep.subr.mxu0 0.0
    %2144 = vmatpush1.xpose.msra.mxu0 0.0
    %2145 = vmatprep.subr.mxu0 0.0
    %2146 = vmatpush1.xpose.msra.mxu0 0.0
    %2147 = vmatprep.subr.mxu0 0.0
    %2148 = vmatpush1.xpose.msra.mxu0 0.0
    %2149 = vmatprep.subr.mxu0 0.0
    %2150 = vmatpush1.xpose.msra.mxu0 0.0
    %2151 = vmatprep.subr.mxu0 0.0
    %2152 = vmatpush1.xpose.msra.mxu0 0.0
    %2153 = vmatprep.subr.mxu0 0.0
    %2154 = vmatpush1.xpose.msra.mxu0 0.0
    %2155 = vmatprep.subr.mxu0 0.0
    %2156 = vmatpush1.xpose.msra.mxu0 0.0
    %2157 = vmatprep.subr.mxu0 0.0
    %2158 = vmatpush1.xpose.msra.mxu0 0.0
    %2159 = vmatprep.subr.mxu0 0.0
    %2160 = vmatpush1.xpose.msra.mxu0 0.0
    %2161 = vmatprep.subr.mxu0 0.0
    %2162 = vmatpush1.xpose.msra.mxu0 0.0
    %2163 = vmatprep.subr.mxu0 0.0
    %2164 = vmatpush1.xpose.msra.mxu0 0.0
    %2165 = vmatprep.subr.mxu0 0.0
    %2166 = vmatpush1.xpose.msra.mxu0 0.0
    %2167 = vmatprep.subr.mxu0 0.0
    %2168 = vmatpush1.xpose.msra.mxu0 0.0
    %2169 = vmatprep.subr.mxu0 0.0
    %2170 = vmatpush1.xpose.msra.mxu0 0.0
    %2171 = vmatprep.subr.mxu0 0.0
    %2172 = vmatpush1.xpose.msra.mxu0 0.0
    %2173 = vmatprep.mubr.f32.mxu0 0.0
    %2174 = vmatmul.mubr.f32.gmra.mrb[0].mxu0 %v2103
    %v2175 = vpop.f32.mrb[0].mxu0
    %v2176 = vadd.f32 0.0, %v2175
    %v2177 = vpop.f32.mrb[0].mxu0
    %2178 = vmatprep.mubr.f32.mxu0 0.0
    %2179 = vmatmul.mubr.f32.gmra.mrb[0].mxu0 %v2105
    %v2180 = vpop.f32.mrb[0].mxu0
    %v2181 = vadd.f32 0.0, %v2180
    %v2182 = vpop.f32.mrb[0].mxu0
    %2183 = vdwg.mxu0
    %v2184 = vsel %vm226, %v1934, 0
    %v2186 = vsel %vm226, %v1936, 0
    %2188 = vmatprep.subr.mxu0 0.0
    %2189 = vmatpush1.xpose.msra.mxu0 %v2107
    %2190 = vmatprep.subr.mxu0 0.0
    %2191 = vmatpush1.xpose.msra.mxu0 0.0
    %2192 = vmatprep.subr.mxu0 0.0
    %2193 = vmatpush1.xpose.msra.mxu0 0.0
    %2194 = vmatprep.subr.mxu0 0.0
    %2195 = vmatpush1.xpose.msra.mxu0 0.0
    %2196 = vmatprep.subr.mxu0 0.0
    %2197 = vmatpush1.xpose.msra.mxu0 0.0
    %2198 = vmatprep.subr.mxu0 0.0
    %2199 = vmatpush1.xpose.msra.mxu0 0.0
    %2200 = vmatprep.subr.mxu0 0.0
    %2201 = vmatpush1.xpose.msra.mxu0 0.0
    %2202 = vmatprep.subr.mxu0 0.0
    %2203 = vmatpush1.xpose.msra.mxu0 0.0
    %2204 = vmatprep.subr.mxu0 0.0
    %2205 = vmatpush1.xpose.msra.mxu0 0.0
    %2206 = vmatprep.subr.mxu0 0.0
    %2207 = vmatpush1.xpose.msra.mxu0 0.0
    %2208 = vmatprep.subr.mxu0 0.0
    %2209 = vmatpush1.xpose.msra.mxu0 0.0
    %2210 = vmatprep.subr.mxu0 0.0
    %2211 = vmatpush1.xpose.msra.mxu0 0.0
    %2212 = vmatprep.subr.mxu0 0.0
    %2213 = vmatpush1.xpose.msra.mxu0 0.0
    %2214 = vmatprep.subr.mxu0 0.0
    %2215 = vmatpush1.xpose.msra.mxu0 0.0
    %2216 = vmatprep.subr.mxu0 0.0
    %2217 = vmatpush1.xpose.msra.mxu0 0.0
    %2218 = vmatprep.subr.mxu0 0.0
    %2219 = vmatpush1.xpose.msra.mxu0 0.0
    %2220 = vmatprep.subr.mxu0 0.0
    %2221 = vmatpush1.xpose.msra.mxu0 0.0
    %2222 = vmatprep.subr.mxu0 0.0
    %2223 = vmatpush1.xpose.msra.mxu0 0.0
    %2224 = vmatprep.subr.mxu0 0.0
    %2225 = vmatpush1.xpose.msra.mxu0 0.0
    %2226 = vmatprep.subr.mxu0 0.0
    %2227 = vmatpush1.xpose.msra.mxu0 0.0
    %2228 = vmatprep.subr.mxu0 0.0
    %2229 = vmatpush1.xpose.msra.mxu0 0.0
    %2230 = vmatprep.subr.mxu0 0.0
    %2231 = vmatpush1.xpose.msra.mxu0 0.0
    %2232 = vmatprep.subr.mxu0 0.0
    %2233 = vmatpush1.xpose.msra.mxu0 0.0
    %2234 = vmatprep.subr.mxu0 0.0
    %2235 = vmatpush1.xpose.msra.mxu0 0.0
    %2236 = vmatprep.subr.mxu0 0.0
    %2237 = vmatpush1.xpose.msra.mxu0 0.0
    %2238 = vmatprep.subr.mxu0 0.0
    %2239 = vmatpush1.xpose.msra.mxu0 0.0
    %2240 = vmatprep.subr.mxu0 0.0
    %2241 = vmatpush1.xpose.msra.mxu0 0.0
    %2242 = vmatprep.subr.mxu0 0.0
    %2243 = vmatpush1.xpose.msra.mxu0 0.0
    %2244 = vmatprep.subr.mxu0 0.0
    %2245 = vmatpush1.xpose.msra.mxu0 0.0
    %2246 = vmatprep.subr.mxu0 0.0
    %2247 = vmatpush1.xpose.msra.mxu0 0.0
    %2248 = vmatprep.subr.mxu0 0.0
    %2249 = vmatpush1.xpose.msra.mxu0 0.0
    %2250 = vmatprep.subr.mxu0 0.0
    %2251 = vmatpush1.xpose.msra.mxu0 0.0
    %2252 = vmatprep.mubr.f32.mxu0 0.0
    %2253 = vmatmul.mubr.f32.gmra.mrb[0].mxu0 %v2184
    %v2254 = vpop.f32.mrb[0].mxu0
    %v2255 = vadd.f32 0.0, %v2254
    %v2256 = vpop.f32.mrb[0].mxu0
    %2257 = vmatprep.mubr.f32.mxu0 0.0
    %2258 = vmatmul.mubr.f32.gmra.mrb[0].mxu0 %v2186
    %v2259 = vpop.f32.mrb[0].mxu0
    %v2260 = vadd.f32 0.0, %v2259
    %v2261 = vpop.f32.mrb[0].mxu0
    %2262 = vdwg.mxu0
    %v2263 = vsel %vm226, %v2014, -inf
    %2264 = vmax.xlane.f32.xlu0 %v2263
    %v2265 = vpop.xlane.xlu0 %2264
    %v2266 = vsel %vm862, %v2019, -inf
    %2267 = vmax.xlane.f32.xlu0 %v2266
    %v2268 = vpop.xlane.xlu0 %2267
    %v2269 = vsel %vm226, %v2093, -inf
    %2270 = vmax.xlane.f32.xlu0 %v2269
    %v2271 = vpop.xlane.xlu0 %2270
    %v2272 = vsel %vm862, %v2098, -inf
    %2273 = vmax.xlane.f32.xlu0 %v2272
    %v2274 = vpop.xlane.xlu0 %2273
    %v2275 = vsel %vm226, %v2176, -inf
    %2276 = vmax.xlane.f32.xlu0 %v2275
    %v2277 = vpop.xlane.xlu0 %2276
    %v2278 = vsel %vm862, %v2181, -inf
    %2279 = vmax.xlane.f32.xlu0 %v2278
    %v2280 = vpop.xlane.xlu0 %2279
    %v2281 = vsel %vm226, %v2255, -inf
    %2282 = vmax.xlane.f32.xlu0 %v2281
    %v2283 = vpop.xlane.xlu0 %2282
    %v2284 = vsel %vm862, %v2260, -inf
    %2285 = vmax.xlane.f32.xlu0 %v2284
    %v2286 = vpop.xlane.xlu0 %2285
    %v2287 = vsub.f32 %v2014, %v2265
    %v2288 = vsub.f32 %v2019, %v2268
    %v2289 = vsub.f32 %v2093, %v2271
    %v2290 = vsub.f32 %v2098, %v2274
    %v2291 = vsub.f32 %v2176, %v2277
    %v2292 = vsub.f32 %v2181, %v2280
    %v2293 = vsub.f32 %v2255, %v2283
    %v2294 = vsub.f32 %v2260, %v2286
    %v2295 = vmul.f32 %v2287, 1.442695
    %v2296 = vpow.pop %v2295
    %v2297 = vmul.f32 %v2288, 1.442695
    %v2298 = vpow.pop %v2297
    %v2299 = vmul.f32 %v2289, 1.442695
    %v2300 = vpow.pop %v2299
    %v2301 = vmul.f32 %v2290, 1.442695
    %v2302 = vpow.pop %v2301
    %v2303 = vmul.f32 %v2291, 1.442695
    %v2304 = vpow.pop %v2303
    %v2305 = vmul.f32 %v2292, 1.442695
    %v2306 = vpow.pop %v2305
    %v2307 = vmul.f32 %v2293, 1.442695
    %v2308 = vpow.pop %v2307
    %v2309 = vmul.f32 %v2294, 1.442695
    %v2310 = vpow.pop %v2309
    %v2311 = vsel %vm226, %v2296, 0.0
    %2312 = vadd.xlane.f32.xlu0 %v2311
    %v2313 = vpop.xlane.xlu0 %2312
    %v2314 = vsel %vm862, %v2298, 0.0
    %2315 = vadd.xlane.f32.xlu0 %v2314
    %v2316 = vpop.xlane.xlu0 %2315
    %v2317 = vsel %vm226, %v2300, 0.0
    %2318 = vadd.xlane.f32.xlu0 %v2317
    %v2319 = vpop.xlane.xlu0 %2318
    %v2320 = vsel %vm862, %v2302, 0.0
    %2321 = vadd.xlane.f32.xlu0 %v2320
    %v2322 = vpop.xlane.xlu0 %2321
    %v2323 = vsel %vm226, %v2304, 0.0
    %2324 = vadd.xlane.f32.xlu0 %v2323
    %v2325 = vpop.xlane.xlu0 %2324
    %v2326 = vsel %vm862, %v2306, 0.0
    %2327 = vadd.xlane.f32.xlu0 %v2326
    %v2328 = vpop.xlane.xlu0 %2327
    %v2329 = vsel %vm226, %v2308, 0.0
    %2330 = vadd.xlane.f32.xlu0 %v2329
    %v2331 = vpop.xlane.xlu0 %2330
    %v2332 = vsel %vm862, %v2310, 0.0
    %2333 = vadd.xlane.f32.xlu0 %v2332
    %v2334 = vpop.xlane.xlu0 %2333
    %v2335 = vrcp.pop %v2313
    %v2336 = vrcp.pop %v2316
    %v2337 = vrcp.pop %v2319
    %v2338 = vrcp.pop %v2322
    %v2339 = vrcp.pop %v2325
    %v2340 = vrcp.pop %v2328
    %v2341 = vrcp.pop %v2331
    %v2342 = vrcp.pop %v2334
    %v2343 = vmul.f32 %v2296, %v2335
    %v2344 = vmul.f32 %v2298, %v2336
    %v2345 = vmul.f32 %v2300, %v2337
    %v2346 = vmul.f32 %v2302, %v2338
    %v2347 = vmul.f32 %v2304, %v2339
    %v2348 = vmul.f32 %v2306, %v2340
    %v2349 = vmul.f32 %v2308, %v2341
    %v2350 = vmul.f32 %v2310, %v2342
    %2351 = vrot.lane.b32.xlu0 %v200, 48
    %v2352 = vpop.permute.xlu0 %2351
    %v2355 = vsel %vm226, %v2343, 0
    %v2358 = vsel %vm226, %v2344, 0
    %2360 = vmatprep.subr.mxu0 0.0
    %2361 = vmatpush1.msra.mxu0 %v2352
    %2362 = vmatprep.subr.mxu0 0.0
    %2363 = vmatpush1.msra.mxu0 0.0
    %2364 = vmatprep.subr.mxu0 0.0
    %2365 = vmatpush1.msra.mxu0 0.0
    %2366 = vmatprep.subr.mxu0 0.0
    %2367 = vmatpush1.msra.mxu0 0.0
    %2368 = vmatprep.subr.mxu0 0.0
    %2369 = vmatpush1.msra.mxu0 0.0
    %2370 = vmatprep.subr.mxu0 0.0
    %2371 = vmatpush1.msra.mxu0 0.0
    %2372 = vmatprep.subr.mxu0 0.0
    %2373 = vmatpush1.msra.mxu0 0.0
    %2374 = vmatprep.subr.mxu0 0.0
    %2375 = vmatpush1.msra.mxu0 0.0
    %2376 = vmatprep.subr.mxu0 0.0
    %2377 = vmatpush1.msra.mxu0 0.0
    %2378 = vmatprep.subr.mxu0 0.0
    %2379 = vmatpush1.msra.mxu0 0.0
    %2380 = vmatprep.subr.mxu0 0.0
    %2381 = vmatpush1.msra.mxu0 0.0
    %2382 = vmatprep.subr.mxu0 0.0
    %2383 = vmatpush1.msra.mxu0 0.0
    %2384 = vmatprep.subr.mxu0 0.0
    %2385 = vmatpush1.msra.mxu0 0.0
    %2386 = vmatprep.subr.mxu0 0.0
    %2387 = vmatpush1.msra.mxu0 0.0
    %2388 = vmatprep.subr.mxu0 0.0
    %2389 = vmatpush1.msra.mxu0 0.0
    %2390 = vmatprep.subr.mxu0 0.0
    %2391 = vmatpush1.msra.mxu0 0.0
    %2392 = vmatprep.subr.mxu0 0.0
    %2393 = vmatpush1.msra.mxu0 0.0
    %2394 = vmatprep.subr.mxu0 0.0
    %2395 = vmatpush1.msra.mxu0 0.0
    %2396 = vmatprep.subr.mxu0 0.0
    %2397 = vmatpush1.msra.mxu0 0.0
    %2398 = vmatprep.subr.mxu0 0.0
    %2399 = vmatpush1.msra.mxu0 0.0
    %2400 = vmatprep.subr.mxu0 0.0
    %2401 = vmatpush1.msra.mxu0 0.0
    %2402 = vmatprep.subr.mxu0 0.0
    %2403 = vmatpush1.msra.mxu0 0.0
    %2404 = vmatprep.subr.mxu0 0.0
    %2405 = vmatpush1.msra.mxu0 0.0
    %2406 = vmatprep.subr.mxu0 0.0
    %2407 = vmatpush1.msra.mxu0 0.0
    %2408 = vmatprep.subr.mxu0 0.0
    %2409 = vmatpush1.msra.mxu0 0.0
    %2410 = vmatprep.subr.mxu0 0.0
    %2411 = vmatpush1.msra.mxu0 0.0
    %2412 = vmatprep.subr.mxu0 0.0
    %2413 = vmatpush1.msra.mxu0 0.0
    %2414 = vmatprep.subr.mxu0 0.0
    %2415 = vmatpush1.msra.mxu0 0.0
    %2416 = vmatprep.subr.mxu0 0.0
    %2417 = vmatpush1.msra.mxu0 0.0
    %2418 = vmatprep.subr.mxu0 0.0
    %2419 = vmatpush1.msra.mxu0 0.0
    %2420 = vmatprep.subr.mxu0 0.0
    %2421 = vmatpush1.msra.mxu0 0.0
    %2422 = vmatprep.subr.mxu0 0.0
    %2423 = vmatpush1.msra.mxu0 0.0
    %2424 = vmatprep.mubr.f32.mxu0 0.0
    %2425 = vmatmul.mubr.f32.gmra.mrb[0].mxu0 %v2355
    %v2426 = vpop.f32.mrb[0].mxu0
    %v2427 = vadd.f32 0.0, %v2426
    %v2428 = vpop.f32.mrb[0].mxu0
    %2429 = vmatprep.mubr.f32.mxu0 0.0
    %2430 = vmatmul.mubr.f32.gmra.mrb[0].mxu0 %v2358
    %v2431 = vpop.f32.mrb[0].mxu0
    %v2432 = vadd.f32 0.0, %v2431
    %v2433 = vpop.f32.mrb[0].mxu0
    %2434 = vdwg.mxu0
    %v2436 = vsel %vm226, %v2345, 0
    %v2439 = vsel %vm226, %v2346, 0
    %2441 = vmatprep.subr.mxu0 0.0
    %2442 = vmatpush1.msra.mxu0 %v2352
    %2443 = vmatprep.subr.mxu0 0.0
    %2444 = vmatpush1.msra.mxu0 0.0
    %2445 = vmatprep.subr.mxu0 0.0
    %2446 = vmatpush1.msra.mxu0 0.0
    %2447 = vmatprep.subr.mxu0 0.0
    %2448 = vmatpush1.msra.mxu0 0.0
    %2449 = vmatprep.subr.mxu0 0.0
    %2450 = vmatpush1.msra.mxu0 0.0
    %2451 = vmatprep.subr.mxu0 0.0
    %2452 = vmatpush1.msra.mxu0 0.0
    %2453 = vmatprep.subr.mxu0 0.0
    %2454 = vmatpush1.msra.mxu0 0.0
    %2455 = vmatprep.subr.mxu0 0.0
    %2456 = vmatpush1.msra.mxu0 0.0
    %2457 = vmatprep.subr.mxu0 0.0
    %2458 = vmatpush1.msra.mxu0 0.0
    %2459 = vmatprep.subr.mxu0 0.0
    %2460 = vmatpush1.msra.mxu0 0.0
    %2461 = vmatprep.subr.mxu0 0.0
    %2462 = vmatpush1.msra.mxu0 0.0
    %2463 = vmatprep.subr.mxu0 0.0
    %2464 = vmatpush1.msra.mxu0 0.0
    %2465 = vmatprep.subr.mxu0 0.0
    %2466 = vmatpush1.msra.mxu0 0.0
    %2467 = vmatprep.subr.mxu0 0.0
    %2468 = vmatpush1.msra.mxu0 0.0
    %2469 = vmatprep.subr.mxu0 0.0
    %2470 = vmatpush1.msra.mxu0 0.0
    %2471 = vmatprep.subr.mxu0 0.0
    %2472 = vmatpush1.msra.mxu0 0.0
    %2473 = vmatprep.subr.mxu0 0.0
    %2474 = vmatpush1.msra.mxu0 0.0
    %2475 = vmatprep.subr.mxu0 0.0
    %2476 = vmatpush1.msra.mxu0 0.0
    %2477 = vmatprep.subr.mxu0 0.0
    %2478 = vmatpush1.msra.mxu0 0.0
    %2479 = vmatprep.subr.mxu0 0.0
    %2480 = vmatpush1.msra.mxu0 0.0
    %2481 = vmatprep.subr.mxu0 0.0
    %2482 = vmatpush1.msra.mxu0 0.0
    %2483 = vmatprep.subr.mxu0 0.0
    %2484 = vmatpush1.msra.mxu0 0.0
    %2485 = vmatprep.subr.mxu0 0.0
    %2486 = vmatpush1.msra.mxu0 0.0
    %2487 = vmatprep.subr.mxu0 0.0
    %2488 = vmatpush1.msra.mxu0 0.0
    %2489 = vmatprep.subr.mxu0 0.0
    %2490 = vmatpush1.msra.mxu0 0.0
    %2491 = vmatprep.subr.mxu0 0.0
    %2492 = vmatpush1.msra.mxu0 0.0
    %2493 = vmatprep.subr.mxu0 0.0
    %2494 = vmatpush1.msra.mxu0 0.0
    %2495 = vmatprep.subr.mxu0 0.0
    %2496 = vmatpush1.msra.mxu0 0.0
    %2497 = vmatprep.subr.mxu0 0.0
    %2498 = vmatpush1.msra.mxu0 0.0
    %2499 = vmatprep.subr.mxu0 0.0
    %2500 = vmatpush1.msra.mxu0 0.0
    %2501 = vmatprep.subr.mxu0 0.0
    %2502 = vmatpush1.msra.mxu0 0.0
    %2503 = vmatprep.subr.mxu0 0.0
    %2504 = vmatpush1.msra.mxu0 0.0
    %2505 = vmatprep.mubr.f32.mxu0 0.0
    %2506 = vmatmul.mubr.f32.gmra.mrb[0].mxu0 %v2436
    %v2507 = vpop.f32.mrb[0].mxu0
    %v2508 = vadd.f32 0.0, %v2507
    %v2509 = vpop.f32.mrb[0].mxu0
    %2510 = vmatprep.mubr.f32.mxu0 0.0
    %2511 = vmatmul.mubr.f32.gmra.mrb[0].mxu0 %v2439
    %v2512 = vpop.f32.mrb[0].mxu0
    %v2513 = vadd.f32 0.0, %v2512
    %v2514 = vpop.f32.mrb[0].mxu0
    %2515 = vdwg.mxu0
    %2516 = vrot.lane.b32.xlu0 %v1938, 48
    %v2517 = vpop.permute.xlu0 %2516
    %v2520 = vsel %vm226, %v2347, 0
    %v2523 = vsel %vm226, %v2348, 0
    %2525 = vmatprep.subr.mxu0 0.0
    %2526 = vmatpush1.msra.mxu0 %v2517
    %2527 = vmatprep.subr.mxu0 0.0
    %2528 = vmatpush1.msra.mxu0 0.0
    %2529 = vmatprep.subr.mxu0 0.0
    %2530 = vmatpush1.msra.mxu0 0.0
    %2531 = vmatprep.subr.mxu0 0.0
    %2532 = vmatpush1.msra.mxu0 0.0
    %2533 = vmatprep.subr.mxu0 0.0
    %2534 = vmatpush1.msra.mxu0 0.0
    %2535 = vmatprep.subr.mxu0 0.0
    %2536 = vmatpush1.msra.mxu0 0.0
    %2537 = vmatprep.subr.mxu0 0.0
    %2538 = vmatpush1.msra.mxu0 0.0
    %2539 = vmatprep.subr.mxu0 0.0
    %2540 = vmatpush1.msra.mxu0 0.0
    %2541 = vmatprep.subr.mxu0 0.0
    %2542 = vmatpush1.msra.mxu0 0.0
    %2543 = vmatprep.subr.mxu0 0.0
    %2544 = vmatpush1.msra.mxu0 0.0
    %2545 = vmatprep.subr.mxu0 0.0
    %2546 = vmatpush1.msra.mxu0 0.0
    %2547 = vmatprep.subr.mxu0 0.0
    %2548 = vmatpush1.msra.mxu0 0.0
    %2549 = vmatprep.subr.mxu0 0.0
    %2550 = vmatpush1.msra.mxu0 0.0
    %2551 = vmatprep.subr.mxu0 0.0
    %2552 = vmatpush1.msra.mxu0 0.0
    %2553 = vmatprep.subr.mxu0 0.0
    %2554 = vmatpush1.msra.mxu0 0.0
    %2555 = vmatprep.subr.mxu0 0.0
    %2556 = vmatpush1.msra.mxu0 0.0
    %2557 = vmatprep.subr.mxu0 0.0
    %2558 = vmatpush1.msra.mxu0 0.0
    %2559 = vmatprep.subr.mxu0 0.0
    %2560 = vmatpush1.msra.mxu0 0.0
    %2561 = vmatprep.subr.mxu0 0.0
    %2562 = vmatpush1.msra.mxu0 0.0
    %2563 = vmatprep.subr.mxu0 0.0
    %2564 = vmatpush1.msra.mxu0 0.0
    %2565 = vmatprep.subr.mxu0 0.0
    %2566 = vmatpush1.msra.mxu0 0.0
    %2567 = vmatprep.subr.mxu0 0.0
    %2568 = vmatpush1.msra.mxu0 0.0
    %2569 = vmatprep.subr.mxu0 0.0
    %2570 = vmatpush1.msra.mxu0 0.0
    %2571 = vmatprep.subr.mxu0 0.0
    %2572 = vmatpush1.msra.mxu0 0.0
    %2573 = vmatprep.subr.mxu0 0.0
    %2574 = vmatpush1.msra.mxu0 0.0
    %2575 = vmatprep.subr.mxu0 0.0
    %2576 = vmatpush1.msra.mxu0 0.0
    %2577 = vmatprep.subr.mxu0 0.0
    %2578 = vmatpush1.msra.mxu0 0.0
    %2579 = vmatprep.subr.mxu0 0.0
    %2580 = vmatpush1.msra.mxu0 0.0
    %2581 = vmatprep.subr.mxu0 0.0
    %2582 = vmatpush1.msra.mxu0 0.0
    %2583 = vmatprep.subr.mxu0 0.0
    %2584 = vmatpush1.msra.mxu0 0.0
    %2585 = vmatprep.subr.mxu0 0.0
    %2586 = vmatpush1.msra.mxu0 0.0
    %2587 = vmatprep.subr.mxu0 0.0
    %2588 = vmatpush1.msra.mxu0 0.0
    %2589 = vmatprep.mubr.f32.mxu0 0.0
    %2590 = vmatmul.mubr.f32.gmra.mrb[0].mxu0 %v2520
    %v2591 = vpop.f32.mrb[0].mxu0
    %v2592 = vadd.f32 0.0, %v2591
    %v2593 = vpop.f32.mrb[0].mxu0
    %2594 = vmatprep.mubr.f32.mxu0 0.0
    %2595 = vmatmul.mubr.f32.gmra.mrb[0].mxu0 %v2523
    %v2596 = vpop.f32.mrb[0].mxu0
    %v2597 = vadd.f32 0.0, %v2596
    %v2598 = vpop.f32.mrb[0].mxu0
    %2599 = vdwg.mxu0
    %v2601 = vsel %vm226, %v2349, 0
    %v2604 = vsel %vm226, %v2350, 0
    %2606 = vmatprep.subr.mxu0 0.0
    %2607 = vmatpush1.msra.mxu0 %v2517
    %2608 = vmatprep.subr.mxu0 0.0
    %2609 = vmatpush1.msra.mxu0 0.0
    %2610 = vmatprep.subr.mxu0 0.0
    %2611 = vmatpush1.msra.mxu0 0.0
    %2612 = vmatprep.subr.mxu0 0.0
    %2613 = vmatpush1.msra.mxu0 0.0
    %2614 = vmatprep.subr.mxu0 0.0
    %2615 = vmatpush1.msra.mxu0 0.0
    %2616 = vmatprep.subr.mxu0 0.0
    %2617 = vmatpush1.msra.mxu0 0.0
    %2618 = vmatprep.subr.mxu0 0.0
    %2619 = vmatpush1.msra.mxu0 0.0
    %2620 = vmatprep.subr.mxu0 0.0
    %2621 = vmatpush1.msra.mxu0 0.0
    %2622 = vmatprep.subr.mxu0 0.0
    %2623 = vmatpush1.msra.mxu0 0.0
    %2624 = vmatprep.subr.mxu0 0.0
    %2625 = vmatpush1.msra.mxu0 0.0
    %2626 = vmatprep.subr.mxu0 0.0
    %2627 = vmatpush1.msra.mxu0 0.0
    %2628 = vmatprep.subr.mxu0 0.0
    %2629 = vmatpush1.msra.mxu0 0.0
    %2630 = vmatprep.subr.mxu0 0.0
    %2631 = vmatpush1.msra.mxu0 0.0
    %2632 = vmatprep.subr.mxu0 0.0
    %2633 = vmatpush1.msra.mxu0 0.0
    %2634 = vmatprep.subr.mxu0 0.0
    %2635 = vmatpush1.msra.mxu0 0.0
    %2636 = vmatprep.subr.mxu0 0.0
    %2637 = vmatpush1.msra.mxu0 0.0
    %2638 = vmatprep.subr.mxu0 0.0
    %2639 = vmatpush1.msra.mxu0 0.0
    %2640 = vmatprep.subr.mxu0 0.0
    %2641 = vmatpush1.msra.mxu0 0.0
    %2642 = vmatprep.subr.mxu0 0.0
    %2643 = vmatpush1.msra.mxu0 0.0
    %2644 = vmatprep.subr.mxu0 0.0
    %2645 = vmatpush1.msra.mxu0 0.0
    %2646 = vmatprep.subr.mxu0 0.0
    %2647 = vmatpush1.msra.mxu0 0.0
    %2648 = vmatprep.subr.mxu0 0.0
    %2649 = vmatpush1.msra.mxu0 0.0
    %2650 = vmatprep.subr.mxu0 0.0
    %2651 = vmatpush1.msra.mxu0 0.0
    %2652 = vmatprep.subr.mxu0 0.0
    %2653 = vmatpush1.msra.mxu0 0.0
    %2654 = vmatprep.subr.mxu0 0.0
    %2655 = vmatpush1.msra.mxu0 0.0
    %2656 = vmatprep.subr.mxu0 0.0
    %2657 = vmatpush1.msra.mxu0 0.0
    %2658 = vmatprep.subr.mxu0 0.0
    %2659 = vmatpush1.msra.mxu0 0.0
    %2660 = vmatprep.subr.mxu0 0.0
    %2661 = vmatpush1.msra.mxu0 0.0
    %2662 = vmatprep.subr.mxu0 0.0
    %2663 = vmatpush1.msra.mxu0 0.0
    %2664 = vmatprep.subr.mxu0 0.0
    %2665 = vmatpush1.msra.mxu0 0.0
    %2666 = vmatprep.subr.mxu0 0.0
    %2667 = vmatpush1.msra.mxu0 0.0
    %2668 = vmatprep.subr.mxu0 0.0
    %2669 = vmatpush1.msra.mxu0 0.0
    %2670 = vmatprep.mubr.f32.mxu0 0.0
    %2671 = vmatmul.mubr.f32.gmra.mrb[0].mxu0 %v2601
    %v2672 = vpop.f32.mrb[0].mxu0
    %v2673 = vadd.f32 0.0, %v2672
    %v2674 = vpop.f32.mrb[0].mxu0
    %2675 = vmatprep.mubr.f32.mxu0 0.0
    %2676 = vmatmul.mubr.f32.gmra.mrb[0].mxu0 %v2604
    %v2677 = vpop.f32.mrb[0].mxu0
    %v2678 = vadd.f32 0.0, %v2677
    %v2679 = vpop.f32.mrb[0].mxu0
    %2680 = vdwg.mxu0
    %2683 = vrot.lane.b32.xlu0 %v2508, 8
    %v2684 = vpop.permute.xlu0 %2683
    %2685 = vrot.lane.b32.xlu0 %v2513, 8
    %v2686 = vpop.permute.xlu0 %2685
    %2691 = vrot.lane.b32.xlu0 %v2592, 16
    %v2692 = vpop.permute.xlu0 %2691
    %2693 = vrot.lane.b32.xlu0 %v2597, 16
    %v2694 = vpop.permute.xlu0 %2693
    %2699 = vrot.lane.b32.xlu0 %v2673, 24
    %v2700 = vpop.permute.xlu0 %2699
    %2701 = vrot.lane.b32.xlu0 %v2678, 24
    %v2702 = vpop.permute.xlu0 %2701
    %v2705 = vsel %vm226, %v2427, %v2684
    %v2706 = vsel %vm226, %v2432, %v2686
    %v2707 = vsel %vm1304, %v2705, %v2692
    %v2708 = vsel %vm1304, %v2706, %v2694
    %v2709 = vsel %vm1307, %v2707, %v2700
    %v2710 = vsel %vm1307, %v2708, %v2702
    %v2712 = vsel %vm121, %v2709, 0
    %v2715 = vsel %vm121, %v2710, 0
    %2717 = vmatprep.subr.mxu0 0.0
    %2718 = vmatpush1.msra.mxu0 %v1311
    %2719 = vmatprep.subr.mxu0 0.0
    %2720 = vmatpush1.msra.mxu0 %v1313
    %2721 = vmatprep.subr.mxu0 0.0
    %2722 = vmatpush1.msra.mxu0 %v1315
    %2723 = vmatprep.subr.mxu0 0.0
    %2724 = vmatpush1.msra.mxu0 %v1317
    %2725 = vmatprep.subr.mxu0 0.0
    %2726 = vmatpush1.msra.mxu0 0.0
    %2727 = vmatprep.subr.mxu0 0.0
    %2728 = vmatpush1.msra.mxu0 0.0
    %2729 = vmatprep.subr.mxu0 0.0
    %2730 = vmatpush1.msra.mxu0 0.0
    %2731 = vmatprep.subr.mxu0 0.0
    %2732 = vmatpush1.msra.mxu0 0.0
    %2733 = vmatprep.subr.mxu0 0.0
    %2734 = vmatpush1.msra.mxu0 0.0
    %2735 = vmatprep.subr.mxu0 0.0
    %2736 = vmatpush1.msra.mxu0 0.0
    %2737 = vmatprep.subr.mxu0 0.0
    %2738 = vmatpush1.msra.mxu0 0.0
    %2739 = vmatprep.subr.mxu0 0.0
    %2740 = vmatpush1.msra.mxu0 0.0
    %2741 = vmatprep.subr.mxu0 0.0
    %2742 = vmatpush1.msra.mxu0 0.0
    %2743 = vmatprep.subr.mxu0 0.0
    %2744 = vmatpush1.msra.mxu0 0.0
    %2745 = vmatprep.subr.mxu0 0.0
    %2746 = vmatpush1.msra.mxu0 0.0
    %2747 = vmatprep.subr.mxu0 0.0
    %2748 = vmatpush1.msra.mxu0 0.0
    %2749 = vmatprep.subr.mxu0 0.0
    %2750 = vmatpush1.msra.mxu0 0.0
    %2751 = vmatprep.subr.mxu0 0.0
    %2752 = vmatpush1.msra.mxu0 0.0
    %2753 = vmatprep.subr.mxu0 0.0
    %2754 = vmatpush1.msra.mxu0 0.0
    %2755 = vmatprep.subr.mxu0 0.0
    %2756 = vmatpush1.msra.mxu0 0.0
    %2757 = vmatprep.subr.mxu0 0.0
    %2758 = vmatpush1.msra.mxu0 0.0
    %2759 = vmatprep.subr.mxu0 0.0
    %2760 = vmatpush1.msra.mxu0 0.0
    %2761 = vmatprep.subr.mxu0 0.0
    %2762 = vmatpush1.msra.mxu0 0.0
    %2763 = vmatprep.subr.mxu0 0.0
    %2764 = vmatpush1.msra.mxu0 0.0
    %2765 = vmatprep.subr.mxu0 0.0
    %2766 = vmatpush1.msra.mxu0 0.0
    %2767 = vmatprep.subr.mxu0 0.0
    %2768 = vmatpush1.msra.mxu0 0.0
    %2769 = vmatprep.subr.mxu0 0.0
    %2770 = vmatpush1.msra.mxu0 0.0
    %2771 = vmatprep.subr.mxu0 0.0
    %2772 = vmatpush1.msra.mxu0 0.0
    %2773 = vmatprep.subr.mxu0 0.0
    %2774 = vmatpush1.msra.mxu0 0.0
    %2775 = vmatprep.subr.mxu0 0.0
    %2776 = vmatpush1.msra.mxu0 0.0
    %2777 = vmatprep.subr.mxu0 0.0
    %2778 = vmatpush1.msra.mxu0 0.0
    %2779 = vmatprep.subr.mxu0 0.0
    %2780 = vmatpush1.msra.mxu0 0.0
    %2781 = vmatprep.mubr.f32.mxu0 0.0
    %2782 = vmatmul.mubr.f32.gmra.mrb[0].mxu0 %v2712
    %v2783 = vpop.f32.mrb[0].mxu0
    %v2784 = vadd.f32 0.0, %v2783
    %v2785 = vpop.f32.mrb[0].mxu0
    %2786 = vmatprep.mubr.f32.mxu0 0.0
    %2787 = vmatmul.mubr.f32.gmra.mrb[0].mxu0 %v2715
    %v2788 = vpop.f32.mrb[0].mxu0
    %v2789 = vadd.f32 0.0, %v2788
    %v2790 = vpop.f32.mrb[0].mxu0
    %2791 = vdwg.mxu0
    %2794 = vrot.lane.b32.xlu0 %v2784, 32
    %v2795 = vpop.permute.xlu0 %2794
    %2796 = vrot.lane.b32.xlu0 %v2789, 32
    %v2797 = vpop.permute.xlu0 %2796
    %v2800 = vadd.f32 %v1915, %v2795
    %v2801 = vadd.f32 %v1920, %v2797
    %2804 = vrot.lane.b32.xlu0 %v2800, 96
    %v2805 = vpop.permute.xlu0 %2804
    %2806 = vrot.lane.b32.xlu0 %v2801, 96
    %v2807 = vpop.permute.xlu0 %2806
    %v2808 = vsel %vm121, %v2805, 0
    %v2810 = vsel %vm121, %v2807, 0
    %2812 = vmatprep.subr.mxu0 0.0
    %2813 = vmatpush1.xpose.msra.mxu0 %v2808
    %2814 = vmatprep.subr.mxu0 0.0
    %2815 = vmatpush1.xpose.msra.mxu0 %v2810
    %2816 = vmatprep.subr.mxu0 0.0
    %2817 = vmatpush1.xpose.msra.mxu0 0.0
    %2818 = vmatprep.subr.mxu0 0.0
    %2819 = vmatpush1.xpose.msra.mxu0 0.0
    %2820 = vmatprep.subr.mxu0 0.0
    %2821 = vmatpush1.xpose.msra.mxu0 0.0
    %2822 = vmatprep.subr.mxu0 0.0
    %2823 = vmatpush1.xpose.msra.mxu0 0.0
    %2824 = vmatprep.subr.mxu0 0.0
    %2825 = vmatpush1.xpose.msra.mxu0 0.0
    %2826 = vmatprep.subr.mxu0 0.0
    %2827 = vmatpush1.xpose.msra.mxu0 0.0
    %2828 = vmatprep.subr.mxu0 0.0
    %2829 = vmatpush1.xpose.msra.mxu0 0.0
    %2830 = vmatprep.subr.mxu0 0.0
    %2831 = vmatpush1.xpose.msra.mxu0 0.0
    %2832 = vmatprep.subr.mxu0 0.0
    %2833 = vmatpush1.xpose.msra.mxu0 0.0
    %2834 = vmatprep.subr.mxu0 0.0
    %2835 = vmatpush1.xpose.msra.mxu0 0.0
    %2836 = vmatprep.subr.mxu0 0.0
    %2837 = vmatpush1.xpose.msra.mxu0 0.0
    %2838 = vmatprep.subr.mxu0 0.0
    %2839 = vmatpush1.xpose.msra.mxu0 0.0
    %2840 = vmatprep.subr.mxu0 0.0
    %2841 = vmatpush1.xpose.msra.mxu0 0.0
    %2842 = vmatprep.subr.mxu0 0.0
    %2843 = vmatpush1.xpose.msra.mxu0 0.0
    %2844 = vmatprep.subr.mxu0 0.0
    %2845 = vmatpush1.xpose.msra.mxu0 0.0
    %2846 = vmatprep.subr.mxu0 0.0
    %2847 = vmatpush1.xpose.msra.mxu0 0.0
    %2848 = vmatprep.subr.mxu0 0.0
    %2849 = vmatpush1.xpose.msra.mxu0 0.0
    %2850 = vmatprep.subr.mxu0 0.0
    %2851 = vmatpush1.xpose.msra.mxu0 0.0
    %2852 = vmatprep.subr.mxu0 0.0
    %2853 = vmatpush1.xpose.msra.mxu0 0.0
    %2854 = vmatprep.subr.mxu0 0.0
    %2855 = vmatpush1.xpose.msra.mxu0 0.0
    %2856 = vmatprep.subr.mxu0 0.0
    %2857 = vmatpush1.xpose.msra.mxu0 0.0
    %2858 = vmatprep.subr.mxu0 0.0
    %2859 = vmatpush1.xpose.msra.mxu0 0.0
    %2860 = vmatprep.subr.mxu0 0.0
    %2861 = vmatpush1.xpose.msra.mxu0 0.0
    %2862 = vmatprep.subr.mxu0 0.0
    %2863 = vmatpush1.xpose.msra.mxu0 0.0
    %2864 = vmatprep.subr.mxu0 0.0
    %2865 = vmatpush1.xpose.msra.mxu0 0.0
    %2866 = vmatprep.subr.mxu0 0.0
    %2867 = vmatpush1.xpose.msra.mxu0 0.0
    %2868 = vmatprep.subr.mxu0 0.0
    %2869 = vmatpush1.xpose.msra.mxu0 0.0
    %2870 = vmatprep.subr.mxu0 0.0
    %2871 = vmatpush1.xpose.msra.mxu0 0.0
    %2872 = vmatprep.subr.mxu0 0.0
    %2873 = vmatpush1.xpose.msra.mxu0 0.0
    %2874 = vmatprep.subr.mxu0 0.0
    %2875 = vmatpush1.xpose.msra.mxu0 0.0
    %2876 = vmatprep.mubr.f32.mxu0 0.0
    %2877 = vmatmul.mubr.f32.gmra.mrb[0].mxu0 %v1426
    %v2878 = vpop.f32.mrb[0].mxu0
    %v2879 = vadd.f32 0.0, %v2878
    %v2880 = vpop.f32.mrb[0].mxu0
    %2881 = vdwg.mxu0
    %v2882 = vsel %vm1502, %v2879, -inf
    %2883 = vmax.xlane.f32.xlu0 %v2882
    %v2884 = vpop.xlane.xlu0 %2883
    %vm2885 = vcmp.eq.f32.partialorder %v2879, %v2884
    %v2886 = vsel %vm2885, %v207, 9
    %v2887 = vsel %vm1502, %v2886, 2147483647
    %v2888 = vand.u32 %v2887, 65535
    %v2889 = vshra.s32 %v2887, 16
    %v2890 = vcvt.s32.f32 %v2888
    %v2891 = vcvt.s32.f32 %v2889
    %2892 = vmin.xlane.f32.xlu0 %v2891
    %v2893 = vpop.xlane.xlu0 %2892
    %vm2894 = vcmp.eq.f32.partialorder %v2891, %v2893
    %v2895 = vsel %vm2894, %v2890, inf
    %2896 = vmin.xlane.f32.xlu0 %v2895
    %v2897 = vpop.xlane.xlu0 %2896
    %v2898 = vcvt.f32.s32 %v2897
    %v2899 = vcvt.f32.s32 %v2893
    %v2900 = vshll.u32 %v2899, 16
    %v2901 = vadd.s32 %v2900, %v2898
    %vm2902 = vcmp.eq.s32.totalorder %v207, %v2901
    %v2903 = vsel %vm2902, 1, 0
    %v2904 = vcvt.s32.f32 %v2903
    %v2907 = vsel %vm1527, %v2904, 0
    %v2909 = vsel %vm1531, %v2807, 0
    %2911 = vmatprep.subr.mxu0 0.0
    %2912 = vmatpush1.msra.mxu0 %v2805
    %2913 = vmatprep.subr.mxu0 0.0
    %2914 = vmatpush1.msra.mxu0 %v2909
    %2915 = vmatprep.subr.mxu0 0.0
    %2916 = vmatpush1.msra.mxu0 0.0
    %2917 = vmatprep.subr.mxu0 0.0
    %2918 = vmatpush1.msra.mxu0 0.0
    %2919 = vmatprep.subr.mxu0 0.0
    %2920 = vmatpush1.msra.mxu0 0.0
    %2921 = vmatprep.subr.mxu0 0.0
    %2922 = vmatpush1.msra.mxu0 0.0
    %2923 = vmatprep.subr.mxu0 0.0
    %2924 = vmatpush1.msra.mxu0 0.0
    %2925 = vmatprep.subr.mxu0 0.0
    %2926 = vmatpush1.msra.mxu0 0.0
    %2927 = vmatprep.subr.mxu0 0.0
    %2928 = vmatpush1.msra.mxu0 0.0
    %2929 = vmatprep.subr.mxu0 0.0
    %2930 = vmatpush1.msra.mxu0 0.0
    %2931 = vmatprep.subr.mxu0 0.0
    %2932 = vmatpush1.msra.mxu0 0.0
    %2933 = vmatprep.subr.mxu0 0.0
    %2934 = vmatpush1.msra.mxu0 0.0
    %2935 = vmatprep.subr.mxu0 0.0
    %2936 = vmatpush1.msra.mxu0 0.0
    %2937 = vmatprep.subr.mxu0 0.0
    %2938 = vmatpush1.msra.mxu0 0.0
    %2939 = vmatprep.subr.mxu0 0.0
    %2940 = vmatpush1.msra.mxu0 0.0
    %2941 = vmatprep.subr.mxu0 0.0
    %2942 = vmatpush1.msra.mxu0 0.0
    %2943 = vmatprep.subr.mxu0 0.0
    %2944 = vmatpush1.msra.mxu0 0.0
    %2945 = vmatprep.subr.mxu0 0.0
    %2946 = vmatpush1.msra.mxu0 0.0
    %2947 = vmatprep.subr.mxu0 0.0
    %2948 = vmatpush1.msra.mxu0 0.0
    %2949 = vmatprep.subr.mxu0 0.0
    %2950 = vmatpush1.msra.mxu0 0.0
    %2951 = vmatprep.subr.mxu0 0.0
    %2952 = vmatpush1.msra.mxu0 0.0
    %2953 = vmatprep.subr.mxu0 0.0
    %2954 = vmatpush1.msra.mxu0 0.0
    %2955 = vmatprep.subr.mxu0 0.0
    %2956 = vmatpush1.msra.mxu0 0.0
    %2957 = vmatprep.subr.mxu0 0.0
    %2958 = vmatpush1.msra.mxu0 0.0
    %2959 = vmatprep.subr.mxu0 0.0
    %2960 = vmatpush1.msra.mxu0 0.0
    %2961 = vmatprep.subr.mxu0 0.0
    %2962 = vmatpush1.msra.mxu0 0.0
    %2963 = vmatprep.subr.mxu0 0.0
    %2964 = vmatpush1.msra.mxu0 0.0
    %2965 = vmatprep.subr.mxu0 0.0
    %2966 = vmatpush1.msra.mxu0 0.0
    %2967 = vmatprep.subr.mxu0 0.0
    %2968 = vmatpush1.msra.mxu0 0.0
    %2969 = vmatprep.subr.mxu0 0.0
    %2970 = vmatpush1.msra.mxu0 0.0
    %2971 = vmatprep.subr.mxu0 0.0
    %2972 = vmatpush1.msra.mxu0 0.0
    %2973 = vmatprep.subr.mxu0 0.0
    %2974 = vmatpush1.msra.mxu0 0.0
    %2975 = vmatprep.mubr.f32.mxu0 0.0
    %2976 = vmatmul.mubr.f32.gmra.mrb[0].mxu0 %v2907
    %v2977 = vpop.f32.mrb[0].mxu0
    %v2978 = vadd.f32 0.0, %v2977
    %v2979 = vpop.f32.mrb[0].mxu0
    %2980 = vdwg.mxu0
    %v2982 = vsel %vm121, %v2978, 0
    %2984 = vmatprep.subr.mxu0 0.0
    %2985 = vmatpush1.msra.mxu0 %v107
    %2986 = vmatprep.subr.mxu0 0.0
    %2987 = vmatpush1.msra.mxu0 %v108
    %2988 = vmatprep.subr.mxu0 0.0
    %2989 = vmatpush1.msra.mxu0 %v109
    %2990 = vmatprep.subr.mxu0 0.0
    %2991 = vmatpush1.msra.mxu0 %v110
    %2992 = vmatprep.subr.mxu0 0.0
    %2993 = vmatpush1.msra.mxu0 0.0
    %2994 = vmatprep.subr.mxu0 0.0
    %2995 = vmatpush1.msra.mxu0 0.0
    %2996 = vmatprep.subr.mxu0 0.0
    %2997 = vmatpush1.msra.mxu0 0.0
    %2998 = vmatprep.subr.mxu0 0.0
    %2999 = vmatpush1.msra.mxu0 0.0
    %3000 = vmatprep.subr.mxu0 0.0
    %3001 = vmatpush1.msra.mxu0 0.0
    %3002 = vmatprep.subr.mxu0 0.0
    %3003 = vmatpush1.msra.mxu0 0.0
    %3004 = vmatprep.subr.mxu0 0.0
    %3005 = vmatpush1.msra.mxu0 0.0
    %3006 = vmatprep.subr.mxu0 0.0
    %3007 = vmatpush1.msra.mxu0 0.0
    %3008 = vmatprep.subr.mxu0 0.0
    %3009 = vmatpush1.msra.mxu0 0.0
    %3010 = vmatprep.subr.mxu0 0.0
    %3011 = vmatpush1.msra.mxu0 0.0
    %3012 = vmatprep.subr.mxu0 0.0
    %3013 = vmatpush1.msra.mxu0 0.0
    %3014 = vmatprep.subr.mxu0 0.0
    %3015 = vmatpush1.msra.mxu0 0.0
    %3016 = vmatprep.subr.mxu0 0.0
    %3017 = vmatpush1.msra.mxu0 0.0
    %3018 = vmatprep.subr.mxu0 0.0
    %3019 = vmatpush1.msra.mxu0 0.0
    %3020 = vmatprep.subr.mxu0 0.0
    %3021 = vmatpush1.msra.mxu0 0.0
    %3022 = vmatprep.subr.mxu0 0.0
    %3023 = vmatpush1.msra.mxu0 0.0
    %3024 = vmatprep.subr.mxu0 0.0
    %3025 = vmatpush1.msra.mxu0 0.0
    %3026 = vmatprep.subr.mxu0 0.0
    %3027 = vmatpush1.msra.mxu0 0.0
    %3028 = vmatprep.subr.mxu0 0.0
    %3029 = vmatpush1.msra.mxu0 0.0
    %3030 = vmatprep.subr.mxu0 0.0
    %3031 = vmatpush1.msra.mxu0 0.0
    %3032 = vmatprep.subr.mxu0 0.0
    %3033 = vmatpush1.msra.mxu0 0.0
    %3034 = vmatprep.subr.mxu0 0.0
    %3035 = vmatpush1.msra.mxu0 0.0
    %3036 = vmatprep.subr.mxu0 0.0
    %3037 = vmatpush1.msra.mxu0 0.0
    %3038 = vmatprep.subr.mxu0 0.0
    %3039 = vmatpush1.msra.mxu0 0.0
    %3040 = vmatprep.subr.mxu0 0.0
    %3041 = vmatpush1.msra.mxu0 0.0
    %3042 = vmatprep.subr.mxu0 0.0
    %3043 = vmatpush1.msra.mxu0 0.0
    %3044 = vmatprep.subr.mxu0 0.0
    %3045 = vmatpush1.msra.mxu0 0.0
    %3046 = vmatprep.subr.mxu0 0.0
    %3047 = vmatpush1.msra.mxu0 0.0
    %3048 = vmatprep.mubr.f32.mxu0 0.0
    %3049 = vmatmul.mubr.f32.gmra.mrb[0].mxu0 %v2982
    %v3050 = vpop.f32.mrb[0].mxu0
    %v3051 = vadd.f32 0.0, %v3050
    %v3052 = vpop.f32.mrb[0].mxu0
    %3053 = vdwg.mxu0
    %s3054 = scalar_lea.vmem [#allocation5], 8
    %v3055 = vld [vmem:[%s3054 + $0x7] sm:$0x1]
    %vm3056 = vcmp.eq.s32.totalorder %v2901, 8
    %v3057 = vsel %vm3056, 1, 0
    %vm3058 = vcmp.eq.s32.totalorder %v3057, 1
    %v3059 = vsel %vm3058, %v3055, %v3051
    %3060 = vst.msk [vmem:[#allocation11 + $0x1] sm:$0x1] %vm1502, %v2879
    %3061 = vst [vmem:[#allocation12 + $0x1] sm:$0x1] %v3059
    %3062 = vst.msk [vmem:[%s8 + $0x1] sm:$0x1] %vm1684, %v2901
    // Predicated region
    $region46: #{edit_lm_forward.1} parent=1 // pred_check
      _
    $region47: #{edit_lm_forward.1} parent=1 // pred_check_branch
      %3064 = sbr.rel (0) target = $region49
    $region48: #{edit_lm_forward.1} parent=1 // pred_region
      %s3066 = ssub.s32 32, 32
      %3067 = vsyncadd [#allocation4], %s3066
      %s3069 = sshll.u32 [#allocation11], 4
      %s3070 = int_to_ptr.vmem [resolvable:$true] %s3069
      %3072 = dma.vmem_to_hbm [thread:$0]  %s3070, 32, %s6, [#allocation4]
    $region49: #{edit_lm_forward.1} parent=1 // pred_fallthru
      _
    // Predicated region
    $region50: #{edit_lm_forward.1} parent=1 // pred_check
      _
    $region51: #{edit_lm_forward.1} parent=1 // pred_check_branch
      %3074 = sbr.rel (0) target = $region53
    $region52: #{edit_lm_forward.1} parent=1 // pred_region
      %s3076 = ssub.s32 32, 32
      %3077 = vsyncadd [#allocation13], %s3076
      %s3079 = sshll.u32 [#allocation12], 4
      %s3080 = int_to_ptr.vmem [resolvable:$true] %s3079
      %3082 = dma.vmem_to_hbm [thread:$0]  %s3080, 32, %s7, [#allocation13]
    $region53: #{edit_lm_forward.1} parent=1 // pred_fallthru
      _
    // Predicated region
    $region54: #{edit_lm_forward.1} parent=1 // pred_check
      _
    $region55: #{edit_lm_forward.1} parent=1 // pred_check_branch
      %3084 = sbr.rel (0) target = $region57
    $region56: #{edit_lm_forward.1} parent=1 // pred_region
      _
    $region57: #{edit_lm_forward.1} parent=1 // pred_fallthru
      _
    // Predicated region
    $region58: #{edit_lm_forward.1} parent=1 // pred_check
      _
    $region59: #{edit_lm_forward.1} parent=1 // pred_check_branch
      %3086 = sbr.rel (0) target = $region61
    $region60: #{edit_lm_forward.1} parent=1 // pred_region
      %3087 = dma.done [#allocation4], 32
    $region61: #{edit_lm_forward.1} parent=1 // pred_fallthru
      _
    // Predicated region
    $region62: #{edit_lm_forward.1} parent=1 // pred_check
      _
    $region63: #{edit_lm_forward.1} parent=1 // pred_check_branch
      %3089 = sbr.rel (0) target = $region65
    $region64: #{edit_lm_forward.1} parent=1 // pred_region
      %3090 = dma.done [#allocation13], 32
    $region65: #{edit_lm_forward.1} parent=1 // pred_fallthru
      _
    // Predicated region
    $region66: #{edit_lm_forward.1} parent=1 // pred_check
      _
    $region67: #{edit_lm_forward.1} parent=1 // pred_check_branch
      %3092 = sbr.rel (0) target = $region69
    $region68: #{edit_lm_forward.1} parent=1 // pred_region
      _
    $region69: #{edit_lm_forward.1} parent=1 // pred_fallthru
      _
    %3093 = vsyncpa [#allocation3], 1
    %3094 = vsyncpa [#allocation6], 1
    %3095 = vsyncpa [#allocation9], 1
    %3096 = vsyncpa [#allocation4], 1
    %3097 = vsyncpa [#allocation13], 1

</llo_original>
